<compile_context>
chip_gen: v5e
topology: v5e:2x2
jax: 0.10.0
libtpu: 0.0.40
codegen_flags: <defaults>
</compile_context>

<pallas_src>
import math

import jax
import jax.numpy as jnp
from jax import lax
from jax.experimental import pallas as pl
from jax.experimental.pallas import tpu as pltpu


def _round_up(x, m):
    return ((x + m - 1) // m) * m


# ----------------------------------------------------------------------------
# Fused kernel factory.
#
# ref layout (in order):
#   x_ref                          : (T*BT, I)   batch-tile's sequence, flat
#   per layer l (4 refs each):
#     w_ih : (in_l, 3Hp)  packed input->gate weights  (gate order r | z | n)
#     w_hh : (Hp,   3Hp)  packed hidden->gate weights
#     b_i  : (1,    3Hp)  [b_ih_r+b_hh_r | b_ih_z+b_hh_z | b_ih_n]
#     b_hn : (1,    Hp)   b_hh_n  (applied inside r * (.))
#   head refs:
#     w1 (Hp, NOp), b1 (1, NOp), bn_scale (1, NOp), bn_shift (1, NOp),
#     w2 (NOp, NCp), b2 (1, NCp)
#   outputs: logprob1 (BT, NOp), logits (BT, NCp)       (lane-dense, padded)
#   scratch: seq_sc (T*BT, Hp)   inter-layer hidden sequence (flat)
#            gi_sc  (gc*BT, 3Hp) time-chunked hoisted input projections
# ----------------------------------------------------------------------------
def _make_classifier_kernel(num_layers, T, BT, Hp, gc):
    n_chunks = -(-T // gc)
    H2 = 2 * Hp

    def kernel(*refs):
        idx = 0
        x_ref = refs[idx]; idx += 1
        gru_refs = []
        for _ in range(num_layers):
            gru_refs.append(refs[idx:idx + 4]); idx += 4
        w1_ref, b1_ref, bns_ref, bnb_ref, w2_ref, b2_ref = refs[idx:idx + 6]
        idx += 6
        logprob1_ref, logits_ref = refs[idx:idx + 2]; idx += 2
        seq_sc, gi_sc = refs[idx:idx + 2]

        h = None
        for l, (wih_ref, whh_ref, bi_ref, bhn_ref) in enumerate(gru_refs):
            wih = wih_ref[...]                       # (in_l, 3Hp)
            whh = whh_ref[...]                       # (Hp, 3Hp)
            bi = bi_ref[...]                         # (1, 3Hp)
            # Hoisted once per layer: JAX does not CSE broadcast_in_dim, and the
            # statically unrolled time loop would otherwise emit T broadcasts.
            bhn_b = jnp.broadcast_to(bhn_ref[...], (BT, Hp))
            write_seq = (l != num_layers - 1)        # last layer: only hT consumed
            in_ref = x_ref if l == 0 else seq_sc

            h = jnp.zeros((BT, Hp), jnp.float32)

            def step(row_gi, row_seq, hh, _whh=whh, _bhn=bhn_b, _ws=write_seq):
                gi_t = gi_sc[pl.ds(row_gi, BT), :]                     # (BT, 3Hp)
                gh = jnp.dot(hh, _whh, preferred_element_type=jnp.float32)
                # fused r/z sigmoid over the contiguous, lane-aligned [0:2Hp) slice
                rz = jax.nn.sigmoid(gi_t[:, :H2] + gh[:, :H2])
                r, z = rz[:, :Hp], rz[:, Hp:]
                n = jnp.tanh(gi_t[:, H2:] + r * (gh[:, H2:] + _bhn))
                h_new = (1.0 - z) * n + z * hh
                if _ws:
                    seq_sc[pl.ds(row_seq, BT), :] = h_new
                return h_new

            for c in range(n_chunks):                # static: T, gc compile-time
                t0 = c * gc
                tc = min(gc, T - t0)

                # Hoisted input projection for this time-chunk: one big MXU matmul.
                xin = in_ref[pl.ds(t0 * BT, tc * BT), :]
                gi_sc[pl.ds(0, tc * BT), :] = (
                    jnp.dot(xin, wih, preferred_element_type=jnp.float32) + bi)

                if tc <= 32:
                    # full static unroll: cross-step scheduler visibility
                    for tt in range(tc):
                        h = step(tt * BT, (t0 + tt) * BT, h)
                else:
                    def body(tt, hh, _t0=t0):
                        row_gi = pl.multiple_of(tt * BT, BT)
                        row_seq = pl.multiple_of((_t0 + tt) * BT, BT)
                        return step(row_gi, row_seq, hh)
                    # partial unroll: overlap step t's EUP/VPU with t+1's MXU push
                    # without blowing vreg live ranges at large Hp
                    h = lax.fori_loop(0, tc, body, h, unroll=8)

        # ---- head: linear -> L2 normalize -> ReLU -> folded BN(eval) -> dense ----
        logprob = jnp.dot(h, w1_ref[...],
                          preferred_element_type=jnp.float32) + b1_ref[...]
        ss = jnp.sum(logprob * logprob, axis=-1, keepdims=True)
        # F.normalize(p=2, eps=1e-12): rsqrt (EUP) instead of sqrt + divide (VPU)
        logprob1 = logprob * lax.rsqrt(jnp.maximum(ss, 1e-24))
        logprob1_ref[...] = logprob1

        xh = jnp.maximum(logprob1, 0.0) * bns_ref[...] + bnb_ref[...]
        logits_ref[...] = jnp.dot(xh, w2_ref[...],
                                  preferred_element_type=jnp.float32) + b2_ref[...]

    return kernel


# ----------------------------------------------------------------------------
# Full forward pass (Classifier.forward, aux=0, rnn='GRU', unidirectional)
# ----------------------------------------------------------------------------
@jax.jit
def classifier_forward(x, params):
    # x: (batch, num_inputs, seq_len)  ->  (seq_len, batch, num_inputs)
    x_seq = jnp.transpose(x, (2, 0, 1)).astype(jnp.float32)
    T, B, I = x_seq.shape

    gru = params["gru"]
    num_layers = len(gru)
    H = gru[0]["w_hh"].shape[-1]
    head = params["head"]
    NO = head["w1"].shape[1]
    NC = head["w2"].shape[1]

    # ---- lane/sublane-aligned padded sizes ---------------------------------
    Hp = _round_up(H, 128)        # gate boundaries r|z|n land on lane-tile edges
    NOp = _round_up(NO, 128)      # lane-dense (unmasked) output stores
    NCp = _round_up(NC, 128)
    Bp8 = _round_up(B, 8)         # sublane tile
    BT = min(Bp8, 64)             # batch tile; >=2 tiles -> both v7x TensorCores
    nbt = -(-Bp8 // BT)
    Bp = nbt * BT

    def pad1(a, n):
        return jnp.pad(a, (0, n - a.shape[0]))

    def pad2(a, r, c):
        return jnp.pad(a, ((0, r - a.shape[0]), (0, c - a.shape[1])))

    def pack_w(w3, rows):         # (3, in, H) -> (rows, 3Hp), gate order r|z|n
        return jnp.concatenate([pad2(w3[g], rows, Hp) for g in range(3)], axis=1)

    # ---- GRU parameters: packed, zero-padded, r/z biases pre-summed --------
    layer_inputs = []
    for l, lp in enumerate(gru):
        in_rows = I if l == 0 else Hp
        w_ih = pack_w(lp["w_ih"], in_rows)                  # (in_rows, 3Hp)
        w_hh = pack_w(lp["w_hh"], Hp)                       # (Hp, 3Hp)
        b_ih, b_hh = lp["b_ih"], lp["b_hh"]
        b_i = jnp.concatenate([pad1(b_ih[0] + b_hh[0], Hp),
                               pad1(b_ih[1] + b_hh[1], Hp),
                               pad1(b_ih[2], Hp)]).reshape(1, 3 * Hp)
        b_hn = pad1(b_hh[2], Hp).reshape(1, Hp)             # stays inside r*(.)
        layer_inputs += [w_ih, w_hh, b_i, b_hn]

    # ---- head parameters: fold eval-mode BatchNorm1d (eps=1e-5), pad -------
    bn_scale = head["gamma"] * lax.rsqrt(head["rv"] + 1e-5)
    bn_shift = head["beta"] - head["rm"] * bn_scale
    head_inputs = [
        pad2(head["w1"], Hp, NOp),
        pad1(head["b1"], NOp).reshape(1, NOp),
        pad1(bn_scale, NOp).reshape(1, NOp),
        pad1(bn_shift, NOp).reshape(1, NOp),
        pad2(head["w2"], NOp, NCp),
        pad1(head["b2"], NCp).reshape(1, NCp),
    ]

    # ---- input: zero-pad batch, flat per-batch-tile layout (no in-kernel
    #      reshapes of non-(8,128)-aligned buffers) --------------------------
    x_pad = jnp.pad(x_seq, ((0, 0), (0, Bp - B), (0, 0)))
    x_blocks = (x_pad.reshape(T, nbt, BT, I)
                .transpose(1, 0, 2, 3)
                .reshape(nbt, T * BT, I))

    # time-chunk for the hoisted input projection (bounds gi scratch VMEM)
    gc = max(1, min(T, (8 << 20) // (BT * 3 * Hp * 4)))

    inputs = [x_blocks] + layer_inputs + head_inputs

    def resident(arr):                       # full-array block, stays in VMEM
        nd = arr.ndim
        return pl.BlockSpec(arr.shape, lambda b, _nd=nd: (0,) * _nd)

    in_specs = [pl.BlockSpec((None, T * BT, I), lambda b: (b, 0, 0))]
    in_specs += [resident(a) for a in inputs[1:]]

    out_specs = (pl.BlockSpec((BT, NOp), lambda b: (b, 0)),
                 pl.BlockSpec((BT, NCp), lambda b: (b, 0)))

    scratch_shapes = [
        pltpu.VMEM((T * BT, Hp), jnp.float32),        # inter-layer hidden sequence
        pltpu.VMEM((gc * BT, 3 * Hp), jnp.float32),   # chunked input projections
    ]

    # VMEM budget: resident weights + double-buffered x/out blocks + scratch,
    # with headroom; never request the whole chip (v7x TC has only 64 MiB).
    in_bytes = 4 * T * BT * I + sum(4 * int(a.size) for a in inputs[1:])
    out_bytes = 4 * BT * (NOp + NCp)
    scratch_bytes = 4 * (T * BT * Hp + gc * BT * 3 * Hp)
    vmem_needed = 2 * (in_bytes + out_bytes) + scratch_bytes
    vmem_limit = int(min(max(vmem_needed + (8 << 20), 32 << 20), 48 << 20))

    kernel = _make_classifier_kernel(num_layers, T, BT, Hp, gc)

    logprob1_p, logits_p = pl.pallas_call(
        kernel,
        out_shape=(
            jax.ShapeDtypeStruct((Bp, NOp), jnp.float32),
            jax.ShapeDtypeStruct((Bp, NCp), jnp.float32),
        ),
        grid_spec=pltpu.PrefetchScalarGridSpec(
            num_scalar_prefetch=0,
            grid=(nbt,),
            in_specs=in_specs,
            out_specs=out_specs,
            scratch_shapes=scratch_shapes,
        ),
        compiler_params=pltpu.CompilerParams(
            dimension_semantics=("parallel",),
            vmem_limit_bytes=vmem_limit,
        ),
    )(*inputs)

    # Slice the lane-dense padded outputs back to logical shapes.
    return logprob1_p[:B, :NO], logits_p[:B, :NC]


# ----------------------------------------------------------------------------
# Parameter construction (deterministic, PyTorch-like uniform init), natural
# per-gate layout; packing/padding happens in classifier_forward.
# ----------------------------------------------------------------------------
def init_params(key, num_inputs, hidden_rnn, num_layers, num_outputs, num_class):
    def uniform(k, shape, bound):
        return jax.random.uniform(k, shape, jnp.float32, -bound, bound)

    H = hidden_rnn
    k_rnn = 1.0 / (H ** 0.5)
    params = {"gru": []}
    for layer in range(num_layers):
        in_dim = num_inputs if layer == 0 else H
        key, k1, k2, k3, k4 = jax.random.split(key, 5)
        params["gru"].append({
            # per-gate, already transposed for right multiplication, order r,z,n
            "w_ih": uniform(k1, (3, in_dim, H), k_rnn),
            "w_hh": uniform(k2, (3, H, H), k_rnn),
            "b_ih": uniform(k3, (3, H), k_rnn),
            "b_hh": uniform(k4, (3, H), k_rnn),
        })

    key, k1, k2, k3, k4 = jax.random.split(key, 5)
    k_lin = 1.0 / (H ** 0.5)
    k_dense = 1.0 / (num_outputs ** 0.5)
    params["head"] = {
        "w1": uniform(k1, (H, num_outputs), k_lin),
        "b1": uniform(k2, (num_outputs,), k_lin),
        # BatchNorm1d defaults of a freshly constructed module (eval mode)
        "gamma": jnp.ones((num_outputs,), jnp.float32),
        "beta": jnp.zeros((num_outputs,), jnp.float32),
        "rm": jnp.zeros((num_outputs,), jnp.float32),
        "rv": jnp.ones((num_outputs,), jnp.float32),
        "w2": uniform(k3, (num_outputs, num_class), k_dense),
        "b2": uniform(k4, (num_class,), k_dense),
    }
    return params


if __name__ == "__main__":
    key = jax.random.PRNGKey(0)

    # Small shapes consistent with the module's forward
    batch, num_inputs, seq_len = 2, 4, 8
    hidden_rnn, num_layers = 32, 2
    num_outputs, num_class = 16, 10

    key, kx, kp = jax.random.split(key, 3)
    x = jax.random.normal(kx, (batch, num_inputs, seq_len), jnp.float32)
    params = init_params(kp, num_inputs, hidden_rnn, num_layers,
                         num_outputs, num_class)

    logprob1, logprob2 = classifier_forward(x, params)
    jax.block_until_ready((logprob1, logprob2))

    assert logprob1.shape == (batch, num_outputs)
    assert logprob2.shape == (batch, num_class)
    assert jnp.all(jnp.isfinite(logprob1)) and jnp.all(jnp.isfinite(logprob2))
    # L2-normalized rows should have unit norm (padded columns are exactly zero)
    row_norms = jnp.sqrt(jnp.sum(logprob1 * logprob1, axis=-1))
    assert jnp.allclose(row_norms, 1.0, atol=1e-4)

    print("KERNEL_OK")
</pallas_src>

<mosaic_0001>
module attributes {stable_mosaic.version = 11 : i64} {
  func.func @kernel(%arg0: i32, %arg1: memref<1x64x4xf32, #tpu.memory_space<vmem>>, %arg2: memref<4x384xf32, #tpu.memory_space<vmem>>, %arg3: memref<128x384xf32, #tpu.memory_space<vmem>>, %arg4: memref<1x384xf32, #tpu.memory_space<vmem>>, %arg5: memref<1x128xf32, #tpu.memory_space<vmem>>, %arg6: memref<128x384xf32, #tpu.memory_space<vmem>>, %arg7: memref<128x384xf32, #tpu.memory_space<vmem>>, %arg8: memref<1x384xf32, #tpu.memory_space<vmem>>, %arg9: memref<1x128xf32, #tpu.memory_space<vmem>>, %arg10: memref<128x128xf32, #tpu.memory_space<vmem>>, %arg11: memref<1x128xf32, #tpu.memory_space<vmem>>, %arg12: memref<1x128xf32, #tpu.memory_space<vmem>>, %arg13: memref<1x128xf32, #tpu.memory_space<vmem>>, %arg14: memref<128x128xf32, #tpu.memory_space<vmem>>, %arg15: memref<1x128xf32, #tpu.memory_space<vmem>>, %arg16: memref<8x128xf32, #tpu.memory_space<vmem>>, %arg17: memref<8x128xf32, #tpu.memory_space<vmem>>, %arg18: memref<64x128xf32, #tpu.memory_space<vmem>>, %arg19: memref<64x384xf32, #tpu.memory_space<vmem>>) attributes {dimension_semantics = [#tpu.dimension_semantics<parallel>], iteration_bounds = array<i64: 1>, scalar_prefetch = 0 : i64, scratch_operands = 2 : i64, tpu.core_type = #tpu.core_type<tc>, window_params = [{transform_indices = @transform_0, window_bounds = array<i64: 1, 64, 4>}, {pipeline_mode = #tpu.pipeline_mode<synchronous>, transform_indices = @transform_1, window_bounds = array<i64: 4, 384>}, {pipeline_mode = #tpu.pipeline_mode<synchronous>, transform_indices = @transform_2, window_bounds = array<i64: 128, 384>}, {pipeline_mode = #tpu.pipeline_mode<synchronous>, transform_indices = @transform_3, window_bounds = array<i64: 1, 384>}, {pipeline_mode = #tpu.pipeline_mode<synchronous>, transform_indices = @transform_4, window_bounds = array<i64: 1, 128>}, {pipeline_mode = #tpu.pipeline_mode<synchronous>, transform_indices = @transform_5, window_bounds = array<i64: 128, 384>}, {pipeline_mode = #tpu.pipeline_mode<synchronous>, transform_indices = @transform_6, window_bounds = array<i64: 128, 384>}, {pipeline_mode = #tpu.pipeline_mode<synchronous>, transform_indices = @transform_7, window_bounds = array<i64: 1, 384>}, {pipeline_mode = #tpu.pipeline_mode<synchronous>, transform_indices = @transform_8, window_bounds = array<i64: 1, 128>}, {pipeline_mode = #tpu.pipeline_mode<synchronous>, transform_indices = @transform_9, window_bounds = array<i64: 128, 128>}, {pipeline_mode = #tpu.pipeline_mode<synchronous>, transform_indices = @transform_10, window_bounds = array<i64: 1, 128>}, {pipeline_mode = #tpu.pipeline_mode<synchronous>, transform_indices = @transform_11, window_bounds = array<i64: 1, 128>}, {pipeline_mode = #tpu.pipeline_mode<synchronous>, transform_indices = @transform_12, window_bounds = array<i64: 1, 128>}, {pipeline_mode = #tpu.pipeline_mode<synchronous>, transform_indices = @transform_13, window_bounds = array<i64: 128, 128>}, {pipeline_mode = #tpu.pipeline_mode<synchronous>, transform_indices = @transform_14, window_bounds = array<i64: 1, 128>}, {transform_indices = @transform_15, window_bounds = array<i64: 8, 128>}, {transform_indices = @transform_16, window_bounds = array<i64: 8, 128>}]} {
    %c0 = arith.constant 0 : index
    %c0_0 = arith.constant 0 : index
    %0 = vector.load %arg2[%c0, %c0_0] : memref<4x384xf32, #tpu.memory_space<vmem>>, vector<4x384xf32>
    %c0_1 = arith.constant 0 : index
    %c0_2 = arith.constant 0 : index
    %1 = vector.load %arg3[%c0_1, %c0_2] : memref<128x384xf32, #tpu.memory_space<vmem>>, vector<128x384xf32>
    %c0_3 = arith.constant 0 : index
    %c0_4 = arith.constant 0 : index
    %2 = vector.load %arg4[%c0_3, %c0_4] : memref<1x384xf32, #tpu.memory_space<vmem>>, vector<1x384xf32>
    %c0_5 = arith.constant 0 : index
    %c0_6 = arith.constant 0 : index
    %3 = vector.load %arg5[%c0_5, %c0_6] : memref<1x128xf32, #tpu.memory_space<vmem>>, vector<1x128xf32>
    %4 = vector.shape_cast %3 : vector<1x128xf32> to vector<1x128xf32>
    %5 = vector.broadcast %4 : vector<1x128xf32> to vector<8x128xf32>
    %cst = arith.constant 0.000000e+00 : f32
    %6 = vector.broadcast %cst : f32 to vector<8x128xf32>
    %c0_7 = arith.constant 0 : index
    %c0_8 = arith.constant 0 : index
    %c0_9 = arith.constant 0 : index
    %7 = vector.load %arg1[%c0_7, %c0_8, %c0_9] : memref<1x64x4xf32, #tpu.memory_space<vmem>>, vector<1x64x4xf32>
    %8 = vector.shape_cast %7 : vector<1x64x4xf32> to vector<64x4xf32>
    %cst_10 = arith.constant dense<0.000000e+00> : vector<64x384xf32>
    %9 = tpu.matmul %8, %0, %cst_10 {dimension_numbers = #tpu.dot_dimension_numbers<[1], [0], [0], [1], [0, 0, 1, 1], [], []>} : vector<64x4xf32>, vector<4x384xf32>, vector<64x384xf32> -> vector<64x384xf32>
    %10 = vector.broadcast %2 : vector<1x384xf32> to vector<64x384xf32>
    %11 = arith.addf %9, %10 : vector<64x384xf32>
    %c0_11 = arith.constant 0 : index
    %c0_12 = arith.constant 0 : index
    %12 = vector.load %arg19[%c0_11, %c0_12] : memref<64x384xf32, #tpu.memory_space<vmem>>, vector<64x384xf32>
    tpu.vector_store %arg19[%c0_11, %c0_12], %11 {strides = array<i32>} : memref<64x384xf32, #tpu.memory_space<vmem>>, vector<64x384xf32>,
    %c0_13 = arith.constant 0 : index
    %c0_14 = arith.constant 0 : index
    %13 = vector.load %arg19[%c0_13, %c0_14] : memref<64x384xf32, #tpu.memory_space<vmem>>, vector<8x384xf32>
    %cst_15 = arith.constant dense<0.000000e+00> : vector<8x384xf32>
    %14 = tpu.matmul %6, %1, %cst_15 {dimension_numbers = #tpu.dot_dimension_numbers<[1], [0], [0], [1], [0, 0, 1, 1], [], []>} : vector<8x128xf32>, vector<128x384xf32>, vector<8x384xf32> -> vector<8x384xf32>
    %15 = vector.extract_strided_slice %13 {offsets = [0, 0], sizes = [8, 256], strides = [1, 1]} : vector<8x384xf32> to vector<8x256xf32>
    %16 = vector.extract_strided_slice %14 {offsets = [0, 0], sizes = [8, 256], strides = [1, 1]} : vector<8x384xf32> to vector<8x256xf32>
    %17 = arith.addf %15, %16 : vector<8x256xf32>
    %18 = arith.negf %17 : vector<8x256xf32>
    %19 = math.exp %18 : vector<8x256xf32>
    %cst_16 = arith.constant 1.000000e+00 : f32
    %20 = vector.broadcast %cst_16 : f32 to vector<8x256xf32>
    %21 = arith.addf %20, %19 : vector<8x256xf32>
    %22 = arith.divf %20, %21 : vector<8x256xf32>
    %23 = vector.extract_strided_slice %22 {offsets = [0, 0], sizes = [8, 128], strides = [1, 1]} : vector<8x256xf32> to vector<8x128xf32>
    %24 = vector.extract_strided_slice %22 {offsets = [0, 128], sizes = [8, 128], strides = [1, 1]} : vector<8x256xf32> to vector<8x128xf32>
    %25 = vector.extract_strided_slice %13 {offsets = [0, 256], sizes = [8, 128], strides = [1, 1]} : vector<8x384xf32> to vector<8x128xf32>
    %26 = vector.extract_strided_slice %14 {offsets = [0, 256], sizes = [8, 128], strides = [1, 1]} : vector<8x384xf32> to vector<8x128xf32>
    %27 = arith.addf %26, %5 : vector<8x128xf32>
    %28 = arith.mulf %23, %27 : vector<8x128xf32>
    %29 = arith.addf %25, %28 : vector<8x128xf32>
    %30 = math.tanh %29 : vector<8x128xf32>
    %cst_17 = arith.constant 1.000000e+00 : f32
    %31 = vector.broadcast %cst_17 : f32 to vector<8x128xf32>
    %32 = arith.subf %31, %24 : vector<8x128xf32>
    %33 = arith.mulf %32, %30 : vector<8x128xf32>
    %34 = arith.mulf %24, %6 : vector<8x128xf32>
    %35 = arith.addf %33, %34 : vector<8x128xf32>
    %c0_18 = arith.constant 0 : index
    %c0_19 = arith.constant 0 : index
    %36 = vector.load %arg18[%c0_18, %c0_19] : memref<64x128xf32, #tpu.memory_space<vmem>>, vector<8x128xf32>
    tpu.vector_store %arg18[%c0_18, %c0_19], %35 {strides = array<i32>} : memref<64x128xf32, #tpu.memory_space<vmem>>, vector<8x128xf32>,
    %c8 = arith.constant 8 : index
    %c0_20 = arith.constant 0 : index
    %37 = vector.load %arg19[%c8, %c0_20] : memref<64x384xf32, #tpu.memory_space<vmem>>, vector<8x384xf32>
    %cst_21 = arith.constant dense<0.000000e+00> : vector<8x384xf32>
    %38 = tpu.matmul %35, %1, %cst_21 {dimension_numbers = #tpu.dot_dimension_numbers<[1], [0], [0], [1], [0, 0, 1, 1], [], []>} : vector<8x128xf32>, vector<128x384xf32>, vector<8x384xf32> -> vector<8x384xf32>
    %39 = vector.extract_strided_slice %37 {offsets = [0, 0], sizes = [8, 256], strides = [1, 1]} : vector<8x384xf32> to vector<8x256xf32>
    %40 = vector.extract_strided_slice %38 {offsets = [0, 0], sizes = [8, 256], strides = [1, 1]} : vector<8x384xf32> to vector<8x256xf32>
    %41 = arith.addf %39, %40 : vector<8x256xf32>
    %42 = arith.negf %41 : vector<8x256xf32>
    %43 = math.exp %42 : vector<8x256xf32>
    %cst_22 = arith.constant 1.000000e+00 : f32
    %44 = vector.broadcast %cst_22 : f32 to vector<8x256xf32>
    %45 = arith.addf %44, %43 : vector<8x256xf32>
    %46 = arith.divf %44, %45 : vector<8x256xf32>
    %47 = vector.extract_strided_slice %46 {offsets = [0, 0], sizes = [8, 128], strides = [1, 1]} : vector<8x256xf32> to vector<8x128xf32>
    %48 = vector.extract_strided_slice %46 {offsets = [0, 128], sizes = [8, 128], strides = [1, 1]} : vector<8x256xf32> to vector<8x128xf32>
    %49 = vector.extract_strided_slice %37 {offsets = [0, 256], sizes = [8, 128], strides = [1, 1]} : vector<8x384xf32> to vector<8x128xf32>
    %50 = vector.extract_strided_slice %38 {offsets = [0, 256], sizes = [8, 128], strides = [1, 1]} : vector<8x384xf32> to vector<8x128xf32>
    %51 = arith.addf %50, %5 : vector<8x128xf32>
    %52 = arith.mulf %47, %51 : vector<8x128xf32>
    %53 = arith.addf %49, %52 : vector<8x128xf32>
    %54 = math.tanh %53 : vector<8x128xf32>
    %cst_23 = arith.constant 1.000000e+00 : f32
    %55 = vector.broadcast %cst_23 : f32 to vector<8x128xf32>
    %56 = arith.subf %55, %48 : vector<8x128xf32>
    %57 = arith.mulf %56, %54 : vector<8x128xf32>
    %58 = arith.mulf %48, %35 : vector<8x128xf32>
    %59 = arith.addf %57, %58 : vector<8x128xf32>
    %c8_24 = arith.constant 8 : index
    %c0_25 = arith.constant 0 : index
    %60 = vector.load %arg18[%c8_24, %c0_25] : memref<64x128xf32, #tpu.memory_space<vmem>>, vector<8x128xf32>
    tpu.vector_store %arg18[%c8_24, %c0_25], %59 {strides = array<i32>} : memref<64x128xf32, #tpu.memory_space<vmem>>, vector<8x128xf32>,
    %c16 = arith.constant 16 : index
    %c0_26 = arith.constant 0 : index
    %61 = vector.load %arg19[%c16, %c0_26] : memref<64x384xf32, #tpu.memory_space<vmem>>, vector<8x384xf32>
    %cst_27 = arith.constant dense<0.000000e+00> : vector<8x384xf32>
    %62 = tpu.matmul %59, %1, %cst_27 {dimension_numbers = #tpu.dot_dimension_numbers<[1], [0], [0], [1], [0, 0, 1, 1], [], []>} : vector<8x128xf32>, vector<128x384xf32>, vector<8x384xf32> -> vector<8x384xf32>
    %63 = vector.extract_strided_slice %61 {offsets = [0, 0], sizes = [8, 256], strides = [1, 1]} : vector<8x384xf32> to vector<8x256xf32>
    %64 = vector.extract_strided_slice %62 {offsets = [0, 0], sizes = [8, 256], strides = [1, 1]} : vector<8x384xf32> to vector<8x256xf32>
    %65 = arith.addf %63, %64 : vector<8x256xf32>
    %66 = arith.negf %65 : vector<8x256xf32>
    %67 = math.exp %66 : vector<8x256xf32>
    %cst_28 = arith.constant 1.000000e+00 : f32
    %68 = vector.broadcast %cst_28 : f32 to vector<8x256xf32>
    %69 = arith.addf %68, %67 : vector<8x256xf32>
    %70 = arith.divf %68, %69 : vector<8x256xf32>
    %71 = vector.extract_strided_slice %70 {offsets = [0, 0], sizes = [8, 128], strides = [1, 1]} : vector<8x256xf32> to vector<8x128xf32>
    %72 = vector.extract_strided_slice %70 {offsets = [0, 128], sizes = [8, 128], strides = [1, 1]} : vector<8x256xf32> to vector<8x128xf32>
    %73 = vector.extract_strided_slice %61 {offsets = [0, 256], sizes = [8, 128], strides = [1, 1]} : vector<8x384xf32> to vector<8x128xf32>
    %74 = vector.extract_strided_slice %62 {offsets = [0, 256], sizes = [8, 128], strides = [1, 1]} : vector<8x384xf32> to vector<8x128xf32>
    %75 = arith.addf %74, %5 : vector<8x128xf32>
    %76 = arith.mulf %71, %75 : vector<8x128xf32>
    %77 = arith.addf %73, %76 : vector<8x128xf32>
    %78 = math.tanh %77 : vector<8x128xf32>
    %cst_29 = arith.constant 1.000000e+00 : f32
    %79 = vector.broadcast %cst_29 : f32 to vector<8x128xf32>
    %80 = arith.subf %79, %72 : vector<8x128xf32>
    %81 = arith.mulf %80, %78 : vector<8x128xf32>
    %82 = arith.mulf %72, %59 : vector<8x128xf32>
    %83 = arith.addf %81, %82 : vector<8x128xf32>
    %c16_30 = arith.constant 16 : index
    %c0_31 = arith.constant 0 : index
    %84 = vector.load %arg18[%c16_30, %c0_31] : memref<64x128xf32, #tpu.memory_space<vmem>>, vector<8x128xf32>
    tpu.vector_store %arg18[%c16_30, %c0_31], %83 {strides = array<i32>} : memref<64x128xf32, #tpu.memory_space<vmem>>, vector<8x128xf32>,
    %c24 = arith.constant 24 : index
    %c0_32 = arith.constant 0 : index
    %85 = vector.load %arg19[%c24, %c0_32] : memref<64x384xf32, #tpu.memory_space<vmem>>, vector<8x384xf32>
    %cst_33 = arith.constant dense<0.000000e+00> : vector<8x384xf32>
    %86 = tpu.matmul %83, %1, %cst_33 {dimension_numbers = #tpu.dot_dimension_numbers<[1], [0], [0], [1], [0, 0, 1, 1], [], []>} : vector<8x128xf32>, vector<128x384xf32>, vector<8x384xf32> -> vector<8x384xf32>
    %87 = vector.extract_strided_slice %85 {offsets = [0, 0], sizes = [8, 256], strides = [1, 1]} : vector<8x384xf32> to vector<8x256xf32>
    %88 = vector.extract_strided_slice %86 {offsets = [0, 0], sizes = [8, 256], strides = [1, 1]} : vector<8x384xf32> to vector<8x256xf32>
    %89 = arith.addf %87, %88 : vector<8x256xf32>
    %90 = arith.negf %89 : vector<8x256xf32>
    %91 = math.exp %90 : vector<8x256xf32>
    %cst_34 = arith.constant 1.000000e+00 : f32
    %92 = vector.broadcast %cst_34 : f32 to vector<8x256xf32>
    %93 = arith.addf %92, %91 : vector<8x256xf32>
    %94 = arith.divf %92, %93 : vector<8x256xf32>
    %95 = vector.extract_strided_slice %94 {offsets = [0, 0], sizes = [8, 128], strides = [1, 1]} : vector<8x256xf32> to vector<8x128xf32>
    %96 = vector.extract_strided_slice %94 {offsets = [0, 128], sizes = [8, 128], strides = [1, 1]} : vector<8x256xf32> to vector<8x128xf32>
    %97 = vector.extract_strided_slice %85 {offsets = [0, 256], sizes = [8, 128], strides = [1, 1]} : vector<8x384xf32> to vector<8x128xf32>
    %98 = vector.extract_strided_slice %86 {offsets = [0, 256], sizes = [8, 128], strides = [1, 1]} : vector<8x384xf32> to vector<8x128xf32>
    %99 = arith.addf %98, %5 : vector<8x128xf32>
    %100 = arith.mulf %95, %99 : vector<8x128xf32>
    %101 = arith.addf %97, %100 : vector<8x128xf32>
    %102 = math.tanh %101 : vector<8x128xf32>
    %cst_35 = arith.constant 1.000000e+00 : f32
    %103 = vector.broadcast %cst_35 : f32 to vector<8x128xf32>
    %104 = arith.subf %103, %96 : vector<8x128xf32>
    %105 = arith.mulf %104, %102 : vector<8x128xf32>
    %106 = arith.mulf %96, %83 : vector<8x128xf32>
    %107 = arith.addf %105, %106 : vector<8x128xf32>
    %c24_36 = arith.constant 24 : index
    %c0_37 = arith.constant 0 : index
    %108 = vector.load %arg18[%c24_36, %c0_37] : memref<64x128xf32, #tpu.memory_space<vmem>>, vector<8x128xf32>
    tpu.vector_store %arg18[%c24_36, %c0_37], %107 {strides = array<i32>} : memref<64x128xf32, #tpu.memory_space<vmem>>, vector<8x128xf32>,
    %c32 = arith.constant 32 : index
    %c0_38 = arith.constant 0 : index
    %109 = vector.load %arg19[%c32, %c0_38] : memref<64x384xf32, #tpu.memory_space<vmem>>, vector<8x384xf32>
    %cst_39 = arith.constant dense<0.000000e+00> : vector<8x384xf32>
    %110 = tpu.matmul %107, %1, %cst_39 {dimension_numbers = #tpu.dot_dimension_numbers<[1], [0], [0], [1], [0, 0, 1, 1], [], []>} : vector<8x128xf32>, vector<128x384xf32>, vector<8x384xf32> -> vector<8x384xf32>
    %111 = vector.extract_strided_slice %109 {offsets = [0, 0], sizes = [8, 256], strides = [1, 1]} : vector<8x384xf32> to vector<8x256xf32>
    %112 = vector.extract_strided_slice %110 {offsets = [0, 0], sizes = [8, 256], strides = [1, 1]} : vector<8x384xf32> to vector<8x256xf32>
    %113 = arith.addf %111, %112 : vector<8x256xf32>
    %114 = arith.negf %113 : vector<8x256xf32>
    %115 = math.exp %114 : vector<8x256xf32>
    %cst_40 = arith.constant 1.000000e+00 : f32
    %116 = vector.broadcast %cst_40 : f32 to vector<8x256xf32>
    %117 = arith.addf %116, %115 : vector<8x256xf32>
    %118 = arith.divf %116, %117 : vector<8x256xf32>
    %119 = vector.extract_strided_slice %118 {offsets = [0, 0], sizes = [8, 128], strides = [1, 1]} : vector<8x256xf32> to vector<8x128xf32>
    %120 = vector.extract_strided_slice %118 {offsets = [0, 128], sizes = [8, 128], strides = [1, 1]} : vector<8x256xf32> to vector<8x128xf32>
    %121 = vector.extract_strided_slice %109 {offsets = [0, 256], sizes = [8, 128], strides = [1, 1]} : vector<8x384xf32> to vector<8x128xf32>
    %122 = vector.extract_strided_slice %110 {offsets = [0, 256], sizes = [8, 128], strides = [1, 1]} : vector<8x384xf32> to vector<8x128xf32>
    %123 = arith.addf %122, %5 : vector<8x128xf32>
    %124 = arith.mulf %119, %123 : vector<8x128xf32>
    %125 = arith.addf %121, %124 : vector<8x128xf32>
    %126 = math.tanh %125 : vector<8x128xf32>
    %cst_41 = arith.constant 1.000000e+00 : f32
    %127 = vector.broadcast %cst_41 : f32 to vector<8x128xf32>
    %128 = arith.subf %127, %120 : vector<8x128xf32>
    %129 = arith.mulf %128, %126 : vector<8x128xf32>
    %130 = arith.mulf %120, %107 : vector<8x128xf32>
    %131 = arith.addf %129, %130 : vector<8x128xf32>
    %c32_42 = arith.constant 32 : index
    %c0_43 = arith.constant 0 : index
    %132 = vector.load %arg18[%c32_42, %c0_43] : memref<64x128xf32, #tpu.memory_space<vmem>>, vector<8x128xf32>
    tpu.vector_store %arg18[%c32_42, %c0_43], %131 {strides = array<i32>} : memref<64x128xf32, #tpu.memory_space<vmem>>, vector<8x128xf32>,
    %c40 = arith.constant 40 : index
    %c0_44 = arith.constant 0 : index
    %133 = vector.load %arg19[%c40, %c0_44] : memref<64x384xf32, #tpu.memory_space<vmem>>, vector<8x384xf32>
    %cst_45 = arith.constant dense<0.000000e+00> : vector<8x384xf32>
    %134 = tpu.matmul %131, %1, %cst_45 {dimension_numbers = #tpu.dot_dimension_numbers<[1], [0], [0], [1], [0, 0, 1, 1], [], []>} : vector<8x128xf32>, vector<128x384xf32>, vector<8x384xf32> -> vector<8x384xf32>
    %135 = vector.extract_strided_slice %133 {offsets = [0, 0], sizes = [8, 256], strides = [1, 1]} : vector<8x384xf32> to vector<8x256xf32>
    %136 = vector.extract_strided_slice %134 {offsets = [0, 0], sizes = [8, 256], strides = [1, 1]} : vector<8x384xf32> to vector<8x256xf32>
    %137 = arith.addf %135, %136 : vector<8x256xf32>
    %138 = arith.negf %137 : vector<8x256xf32>
    %139 = math.exp %138 : vector<8x256xf32>
    %cst_46 = arith.constant 1.000000e+00 : f32
    %140 = vector.broadcast %cst_46 : f32 to vector<8x256xf32>
    %141 = arith.addf %140, %139 : vector<8x256xf32>
    %142 = arith.divf %140, %141 : vector<8x256xf32>
    %143 = vector.extract_strided_slice %142 {offsets = [0, 0], sizes = [8, 128], strides = [1, 1]} : vector<8x256xf32> to vector<8x128xf32>
    %144 = vector.extract_strided_slice %142 {offsets = [0, 128], sizes = [8, 128], strides = [1, 1]} : vector<8x256xf32> to vector<8x128xf32>
    %145 = vector.extract_strided_slice %133 {offsets = [0, 256], sizes = [8, 128], strides = [1, 1]} : vector<8x384xf32> to vector<8x128xf32>
    %146 = vector.extract_strided_slice %134 {offsets = [0, 256], sizes = [8, 128], strides = [1, 1]} : vector<8x384xf32> to vector<8x128xf32>
    %147 = arith.addf %146, %5 : vector<8x128xf32>
    %148 = arith.mulf %143, %147 : vector<8x128xf32>
    %149 = arith.addf %145, %148 : vector<8x128xf32>
    %150 = math.tanh %149 : vector<8x128xf32>
    %cst_47 = arith.constant 1.000000e+00 : f32
    %151 = vector.broadcast %cst_47 : f32 to vector<8x128xf32>
    %152 = arith.subf %151, %144 : vector<8x128xf32>
    %153 = arith.mulf %152, %150 : vector<8x128xf32>
    %154 = arith.mulf %144, %131 : vector<8x128xf32>
    %155 = arith.addf %153, %154 : vector<8x128xf32>
    %c40_48 = arith.constant 40 : index
    %c0_49 = arith.constant 0 : index
    %156 = vector.load %arg18[%c40_48, %c0_49] : memref<64x128xf32, #tpu.memory_space<vmem>>, vector<8x128xf32>
    tpu.vector_store %arg18[%c40_48, %c0_49], %155 {strides = array<i32>} : memref<64x128xf32, #tpu.memory_space<vmem>>, vector<8x128xf32>,
    %c48 = arith.constant 48 : index
    %c0_50 = arith.constant 0 : index
    %157 = vector.load %arg19[%c48, %c0_50] : memref<64x384xf32, #tpu.memory_space<vmem>>, vector<8x384xf32>
    %cst_51 = arith.constant dense<0.000000e+00> : vector<8x384xf32>
    %158 = tpu.matmul %155, %1, %cst_51 {dimension_numbers = #tpu.dot_dimension_numbers<[1], [0], [0], [1], [0, 0, 1, 1], [], []>} : vector<8x128xf32>, vector<128x384xf32>, vector<8x384xf32> -> vector<8x384xf32>
    %159 = vector.extract_strided_slice %157 {offsets = [0, 0], sizes = [8, 256], strides = [1, 1]} : vector<8x384xf32> to vector<8x256xf32>
    %160 = vector.extract_strided_slice %158 {offsets = [0, 0], sizes = [8, 256], strides = [1, 1]} : vector<8x384xf32> to vector<8x256xf32>
    %161 = arith.addf %159, %160 : vector<8x256xf32>
    %162 = arith.negf %161 : vector<8x256xf32>
    %163 = math.exp %162 : vector<8x256xf32>
    %cst_52 = arith.constant 1.000000e+00 : f32
    %164 = vector.broadcast %cst_52 : f32 to vector<8x256xf32>
    %165 = arith.addf %164, %163 : vector<8x256xf32>
    %166 = arith.divf %164, %165 : vector<8x256xf32>
    %167 = vector.extract_strided_slice %166 {offsets = [0, 0], sizes = [8, 128], strides = [1, 1]} : vector<8x256xf32> to vector<8x128xf32>
    %168 = vector.extract_strided_slice %166 {offsets = [0, 128], sizes = [8, 128], strides = [1, 1]} : vector<8x256xf32> to vector<8x128xf32>
    %169 = vector.extract_strided_slice %157 {offsets = [0, 256], sizes = [8, 128], strides = [1, 1]} : vector<8x384xf32> to vector<8x128xf32>
    %170 = vector.extract_strided_slice %158 {offsets = [0, 256], sizes = [8, 128], strides = [1, 1]} : vector<8x384xf32> to vector<8x128xf32>
    %171 = arith.addf %170, %5 : vector<8x128xf32>
    %172 = arith.mulf %167, %171 : vector<8x128xf32>
    %173 = arith.addf %169, %172 : vector<8x128xf32>
    %174 = math.tanh %173 : vector<8x128xf32>
    %cst_53 = arith.constant 1.000000e+00 : f32
    %175 = vector.broadcast %cst_53 : f32 to vector<8x128xf32>
    %176 = arith.subf %175, %168 : vector<8x128xf32>
    %177 = arith.mulf %176, %174 : vector<8x128xf32>
    %178 = arith.mulf %168, %155 : vector<8x128xf32>
    %179 = arith.addf %177, %178 : vector<8x128xf32>
    %c48_54 = arith.constant 48 : index
    %c0_55 = arith.constant 0 : index
    %180 = vector.load %arg18[%c48_54, %c0_55] : memref<64x128xf32, #tpu.memory_space<vmem>>, vector<8x128xf32>
    tpu.vector_store %arg18[%c48_54, %c0_55], %179 {strides = array<i32>} : memref<64x128xf32, #tpu.memory_space<vmem>>, vector<8x128xf32>,
    %c56 = arith.constant 56 : index
    %c0_56 = arith.constant 0 : index
    %181 = vector.load %arg19[%c56, %c0_56] : memref<64x384xf32, #tpu.memory_space<vmem>>, vector<8x384xf32>
    %cst_57 = arith.constant dense<0.000000e+00> : vector<8x384xf32>
    %182 = tpu.matmul %179, %1, %cst_57 {dimension_numbers = #tpu.dot_dimension_numbers<[1], [0], [0], [1], [0, 0, 1, 1], [], []>} : vector<8x128xf32>, vector<128x384xf32>, vector<8x384xf32> -> vector<8x384xf32>
    %183 = vector.extract_strided_slice %181 {offsets = [0, 0], sizes = [8, 256], strides = [1, 1]} : vector<8x384xf32> to vector<8x256xf32>
    %184 = vector.extract_strided_slice %182 {offsets = [0, 0], sizes = [8, 256], strides = [1, 1]} : vector<8x384xf32> to vector<8x256xf32>
    %185 = arith.addf %183, %184 : vector<8x256xf32>
    %186 = arith.negf %185 : vector<8x256xf32>
    %187 = math.exp %186 : vector<8x256xf32>
    %cst_58 = arith.constant 1.000000e+00 : f32
    %188 = vector.broadcast %cst_58 : f32 to vector<8x256xf32>
    %189 = arith.addf %188, %187 : vector<8x256xf32>
    %190 = arith.divf %188, %189 : vector<8x256xf32>
    %191 = vector.extract_strided_slice %190 {offsets = [0, 0], sizes = [8, 128], strides = [1, 1]} : vector<8x256xf32> to vector<8x128xf32>
    %192 = vector.extract_strided_slice %190 {offsets = [0, 128], sizes = [8, 128], strides = [1, 1]} : vector<8x256xf32> to vector<8x128xf32>
    %193 = vector.extract_strided_slice %181 {offsets = [0, 256], sizes = [8, 128], strides = [1, 1]} : vector<8x384xf32> to vector<8x128xf32>
    %194 = vector.extract_strided_slice %182 {offsets = [0, 256], sizes = [8, 128], strides = [1, 1]} : vector<8x384xf32> to vector<8x128xf32>
    %195 = arith.addf %194, %5 : vector<8x128xf32>
    %196 = arith.mulf %191, %195 : vector<8x128xf32>
    %197 = arith.addf %193, %196 : vector<8x128xf32>
    %198 = math.tanh %197 : vector<8x128xf32>
    %cst_59 = arith.constant 1.000000e+00 : f32
    %199 = vector.broadcast %cst_59 : f32 to vector<8x128xf32>
    %200 = arith.subf %199, %192 : vector<8x128xf32>
    %201 = arith.mulf %200, %198 : vector<8x128xf32>
    %202 = arith.mulf %192, %179 : vector<8x128xf32>
    %203 = arith.addf %201, %202 : vector<8x128xf32>
    %c56_60 = arith.constant 56 : index
    %c0_61 = arith.constant 0 : index
    %204 = vector.load %arg18[%c56_60, %c0_61] : memref<64x128xf32, #tpu.memory_space<vmem>>, vector<8x128xf32>
    tpu.vector_store %arg18[%c56_60, %c0_61], %203 {strides = array<i32>} : memref<64x128xf32, #tpu.memory_space<vmem>>, vector<8x128xf32>,
    %c0_62 = arith.constant 0 : index
    %c0_63 = arith.constant 0 : index
    %205 = vector.load %arg6[%c0_62, %c0_63] : memref<128x384xf32, #tpu.memory_space<vmem>>, vector<128x384xf32>
    %c0_64 = arith.constant 0 : index
    %c0_65 = arith.constant 0 : index
    %206 = vector.load %arg7[%c0_64, %c0_65] : memref<128x384xf32, #tpu.memory_space<vmem>>, vector<128x384xf32>
    %c0_66 = arith.constant 0 : index
    %c0_67 = arith.constant 0 : index
    %207 = vector.load %arg8[%c0_66, %c0_67] : memref<1x384xf32, #tpu.memory_space<vmem>>, vector<1x384xf32>
    %c0_68 = arith.constant 0 : index
    %c0_69 = arith.constant 0 : index
    %208 = vector.load %arg9[%c0_68, %c0_69] : memref<1x128xf32, #tpu.memory_space<vmem>>, vector<1x128xf32>
    %209 = vector.shape_cast %208 : vector<1x128xf32> to vector<1x128xf32>
    %210 = vector.broadcast %209 : vector<1x128xf32> to vector<8x128xf32>
    %cst_70 = arith.constant 0.000000e+00 : f32
    %211 = vector.broadcast %cst_70 : f32 to vector<8x128xf32>
    %c0_71 = arith.constant 0 : index
    %c0_72 = arith.constant 0 : index
    %212 = vector.load %arg18[%c0_71, %c0_72] : memref<64x128xf32, #tpu.memory_space<vmem>>, vector<64x128xf32>
    %cst_73 = arith.constant dense<0.000000e+00> : vector<64x384xf32>
    %213 = tpu.matmul %212, %205, %cst_73 {dimension_numbers = #tpu.dot_dimension_numbers<[1], [0], [0], [1], [0, 0, 1, 1], [], []>} : vector<64x128xf32>, vector<128x384xf32>, vector<64x384xf32> -> vector<64x384xf32>
    %214 = vector.broadcast %207 : vector<1x384xf32> to vector<64x384xf32>
    %215 = arith.addf %213, %214 : vector<64x384xf32>
    %c0_74 = arith.constant 0 : index
    %c0_75 = arith.constant 0 : index
    %216 = vector.load %arg19[%c0_74, %c0_75] : memref<64x384xf32, #tpu.memory_space<vmem>>, vector<64x384xf32>
    tpu.vector_store %arg19[%c0_74, %c0_75], %215 {strides = array<i32>} : memref<64x384xf32, #tpu.memory_space<vmem>>, vector<64x384xf32>,
    %c0_76 = arith.constant 0 : index
    %c0_77 = arith.constant 0 : index
    %217 = vector.load %arg19[%c0_76, %c0_77] : memref<64x384xf32, #tpu.memory_space<vmem>>, vector<8x384xf32>
    %cst_78 = arith.constant dense<0.000000e+00> : vector<8x384xf32>
    %218 = tpu.matmul %211, %206, %cst_78 {dimension_numbers = #tpu.dot_dimension_numbers<[1], [0], [0], [1], [0, 0, 1, 1], [], []>} : vector<8x128xf32>, vector<128x384xf32>, vector<8x384xf32> -> vector<8x384xf32>
    %219 = vector.extract_strided_slice %217 {offsets = [0, 0], sizes = [8, 256], strides = [1, 1]} : vector<8x384xf32> to vector<8x256xf32>
    %220 = vector.extract_strided_slice %218 {offsets = [0, 0], sizes = [8, 256], strides = [1, 1]} : vector<8x384xf32> to vector<8x256xf32>
    %221 = arith.addf %219, %220 : vector<8x256xf32>
    %222 = arith.negf %221 : vector<8x256xf32>
    %223 = math.exp %222 : vector<8x256xf32>
    %cst_79 = arith.constant 1.000000e+00 : f32
    %224 = vector.broadcast %cst_79 : f32 to vector<8x256xf32>
    %225 = arith.addf %224, %223 : vector<8x256xf32>
    %226 = arith.divf %224, %225 : vector<8x256xf32>
    %227 = vector.extract_strided_slice %226 {offsets = [0, 0], sizes = [8, 128], strides = [1, 1]} : vector<8x256xf32> to vector<8x128xf32>
    %228 = vector.extract_strided_slice %226 {offsets = [0, 128], sizes = [8, 128], strides = [1, 1]} : vector<8x256xf32> to vector<8x128xf32>
    %229 = vector.extract_strided_slice %217 {offsets = [0, 256], sizes = [8, 128], strides = [1, 1]} : vector<8x384xf32> to vector<8x128xf32>
    %230 = vector.extract_strided_slice %218 {offsets = [0, 256], sizes = [8, 128], strides = [1, 1]} : vector<8x384xf32> to vector<8x128xf32>
    %231 = arith.addf %230, %210 : vector<8x128xf32>
    %232 = arith.mulf %227, %231 : vector<8x128xf32>
    %233 = arith.addf %229, %232 : vector<8x128xf32>
    %234 = math.tanh %233 : vector<8x128xf32>
    %cst_80 = arith.constant 1.000000e+00 : f32
    %235 = vector.broadcast %cst_80 : f32 to vector<8x128xf32>
    %236 = arith.subf %235, %228 : vector<8x128xf32>
    %237 = arith.mulf %236, %234 : vector<8x128xf32>
    %238 = arith.mulf %228, %211 : vector<8x128xf32>
    %239 = arith.addf %237, %238 : vector<8x128xf32>
    %c8_81 = arith.constant 8 : index
    %c0_82 = arith.constant 0 : index
    %240 = vector.load %arg19[%c8_81, %c0_82] : memref<64x384xf32, #tpu.memory_space<vmem>>, vector<8x384xf32>
    %cst_83 = arith.constant dense<0.000000e+00> : vector<8x384xf32>
    %241 = tpu.matmul %239, %206, %cst_83 {dimension_numbers = #tpu.dot_dimension_numbers<[1], [0], [0], [1], [0, 0, 1, 1], [], []>} : vector<8x128xf32>, vector<128x384xf32>, vector<8x384xf32> -> vector<8x384xf32>
    %242 = vector.extract_strided_slice %240 {offsets = [0, 0], sizes = [8, 256], strides = [1, 1]} : vector<8x384xf32> to vector<8x256xf32>
    %243 = vector.extract_strided_slice %241 {offsets = [0, 0], sizes = [8, 256], strides = [1, 1]} : vector<8x384xf32> to vector<8x256xf32>
    %244 = arith.addf %242, %243 : vector<8x256xf32>
    %245 = arith.negf %244 : vector<8x256xf32>
    %246 = math.exp %245 : vector<8x256xf32>
    %cst_84 = arith.constant 1.000000e+00 : f32
    %247 = vector.broadcast %cst_84 : f32 to vector<8x256xf32>
    %248 = arith.addf %247, %246 : vector<8x256xf32>
    %249 = arith.divf %247, %248 : vector<8x256xf32>
    %250 = vector.extract_strided_slice %249 {offsets = [0, 0], sizes = [8, 128], strides = [1, 1]} : vector<8x256xf32> to vector<8x128xf32>
    %251 = vector.extract_strided_slice %249 {offsets = [0, 128], sizes = [8, 128], strides = [1, 1]} : vector<8x256xf32> to vector<8x128xf32>
    %252 = vector.extract_strided_slice %240 {offsets = [0, 256], sizes = [8, 128], strides = [1, 1]} : vector<8x384xf32> to vector<8x128xf32>
    %253 = vector.extract_strided_slice %241 {offsets = [0, 256], sizes = [8, 128], strides = [1, 1]} : vector<8x384xf32> to vector<8x128xf32>
    %254 = arith.addf %253, %210 : vector<8x128xf32>
    %255 = arith.mulf %250, %254 : vector<8x128xf32>
    %256 = arith.addf %252, %255 : vector<8x128xf32>
    %257 = math.tanh %256 : vector<8x128xf32>
    %cst_85 = arith.constant 1.000000e+00 : f32
    %258 = vector.broadcast %cst_85 : f32 to vector<8x128xf32>
    %259 = arith.subf %258, %251 : vector<8x128xf32>
    %260 = arith.mulf %259, %257 : vector<8x128xf32>
    %261 = arith.mulf %251, %239 : vector<8x128xf32>
    %262 = arith.addf %260, %261 : vector<8x128xf32>
    %c16_86 = arith.constant 16 : index
    %c0_87 = arith.constant 0 : index
    %263 = vector.load %arg19[%c16_86, %c0_87] : memref<64x384xf32, #tpu.memory_space<vmem>>, vector<8x384xf32>
    %cst_88 = arith.constant dense<0.000000e+00> : vector<8x384xf32>
    %264 = tpu.matmul %262, %206, %cst_88 {dimension_numbers = #tpu.dot_dimension_numbers<[1], [0], [0], [1], [0, 0, 1, 1], [], []>} : vector<8x128xf32>, vector<128x384xf32>, vector<8x384xf32> -> vector<8x384xf32>
    %265 = vector.extract_strided_slice %263 {offsets = [0, 0], sizes = [8, 256], strides = [1, 1]} : vector<8x384xf32> to vector<8x256xf32>
    %266 = vector.extract_strided_slice %264 {offsets = [0, 0], sizes = [8, 256], strides = [1, 1]} : vector<8x384xf32> to vector<8x256xf32>
    %267 = arith.addf %265, %266 : vector<8x256xf32>
    %268 = arith.negf %267 : vector<8x256xf32>
    %269 = math.exp %268 : vector<8x256xf32>
    %cst_89 = arith.constant 1.000000e+00 : f32
    %270 = vector.broadcast %cst_89 : f32 to vector<8x256xf32>
    %271 = arith.addf %270, %269 : vector<8x256xf32>
    %272 = arith.divf %270, %271 : vector<8x256xf32>
    %273 = vector.extract_strided_slice %272 {offsets = [0, 0], sizes = [8, 128], strides = [1, 1]} : vector<8x256xf32> to vector<8x128xf32>
    %274 = vector.extract_strided_slice %272 {offsets = [0, 128], sizes = [8, 128], strides = [1, 1]} : vector<8x256xf32> to vector<8x128xf32>
    %275 = vector.extract_strided_slice %263 {offsets = [0, 256], sizes = [8, 128], strides = [1, 1]} : vector<8x384xf32> to vector<8x128xf32>
    %276 = vector.extract_strided_slice %264 {offsets = [0, 256], sizes = [8, 128], strides = [1, 1]} : vector<8x384xf32> to vector<8x128xf32>
    %277 = arith.addf %276, %210 : vector<8x128xf32>
    %278 = arith.mulf %273, %277 : vector<8x128xf32>
    %279 = arith.addf %275, %278 : vector<8x128xf32>
    %280 = math.tanh %279 : vector<8x128xf32>
    %cst_90 = arith.constant 1.000000e+00 : f32
    %281 = vector.broadcast %cst_90 : f32 to vector<8x128xf32>
    %282 = arith.subf %281, %274 : vector<8x128xf32>
    %283 = arith.mulf %282, %280 : vector<8x128xf32>
    %284 = arith.mulf %274, %262 : vector<8x128xf32>
    %285 = arith.addf %283, %284 : vector<8x128xf32>
    %c24_91 = arith.constant 24 : index
    %c0_92 = arith.constant 0 : index
    %286 = vector.load %arg19[%c24_91, %c0_92] : memref<64x384xf32, #tpu.memory_space<vmem>>, vector<8x384xf32>
    %cst_93 = arith.constant dense<0.000000e+00> : vector<8x384xf32>
    %287 = tpu.matmul %285, %206, %cst_93 {dimension_numbers = #tpu.dot_dimension_numbers<[1], [0], [0], [1], [0, 0, 1, 1], [], []>} : vector<8x128xf32>, vector<128x384xf32>, vector<8x384xf32> -> vector<8x384xf32>
    %288 = vector.extract_strided_slice %286 {offsets = [0, 0], sizes = [8, 256], strides = [1, 1]} : vector<8x384xf32> to vector<8x256xf32>
    %289 = vector.extract_strided_slice %287 {offsets = [0, 0], sizes = [8, 256], strides = [1, 1]} : vector<8x384xf32> to vector<8x256xf32>
    %290 = arith.addf %288, %289 : vector<8x256xf32>
    %291 = arith.negf %290 : vector<8x256xf32>
    %292 = math.exp %291 : vector<8x256xf32>
    %cst_94 = arith.constant 1.000000e+00 : f32
    %293 = vector.broadcast %cst_94 : f32 to vector<8x256xf32>
    %294 = arith.addf %293, %292 : vector<8x256xf32>
    %295 = arith.divf %293, %294 : vector<8x256xf32>
    %296 = vector.extract_strided_slice %295 {offsets = [0, 0], sizes = [8, 128], strides = [1, 1]} : vector<8x256xf32> to vector<8x128xf32>
    %297 = vector.extract_strided_slice %295 {offsets = [0, 128], sizes = [8, 128], strides = [1, 1]} : vector<8x256xf32> to vector<8x128xf32>
    %298 = vector.extract_strided_slice %286 {offsets = [0, 256], sizes = [8, 128], strides = [1, 1]} : vector<8x384xf32> to vector<8x128xf32>
    %299 = vector.extract_strided_slice %287 {offsets = [0, 256], sizes = [8, 128], strides = [1, 1]} : vector<8x384xf32> to vector<8x128xf32>
    %300 = arith.addf %299, %210 : vector<8x128xf32>
    %301 = arith.mulf %296, %300 : vector<8x128xf32>
    %302 = arith.addf %298, %301 : vector<8x128xf32>
    %303 = math.tanh %302 : vector<8x128xf32>
    %cst_95 = arith.constant 1.000000e+00 : f32
    %304 = vector.broadcast %cst_95 : f32 to vector<8x128xf32>
    %305 = arith.subf %304, %297 : vector<8x128xf32>
    %306 = arith.mulf %305, %303 : vector<8x128xf32>
    %307 = arith.mulf %297, %285 : vector<8x128xf32>
    %308 = arith.addf %306, %307 : vector<8x128xf32>
    %c32_96 = arith.constant 32 : index
    %c0_97 = arith.constant 0 : index
    %309 = vector.load %arg19[%c32_96, %c0_97] : memref<64x384xf32, #tpu.memory_space<vmem>>, vector<8x384xf32>
    %cst_98 = arith.constant dense<0.000000e+00> : vector<8x384xf32>
    %310 = tpu.matmul %308, %206, %cst_98 {dimension_numbers = #tpu.dot_dimension_numbers<[1], [0], [0], [1], [0, 0, 1, 1], [], []>} : vector<8x128xf32>, vector<128x384xf32>, vector<8x384xf32> -> vector<8x384xf32>
    %311 = vector.extract_strided_slice %309 {offsets = [0, 0], sizes = [8, 256], strides = [1, 1]} : vector<8x384xf32> to vector<8x256xf32>
    %312 = vector.extract_strided_slice %310 {offsets = [0, 0], sizes = [8, 256], strides = [1, 1]} : vector<8x384xf32> to vector<8x256xf32>
    %313 = arith.addf %311, %312 : vector<8x256xf32>
    %314 = arith.negf %313 : vector<8x256xf32>
    %315 = math.exp %314 : vector<8x256xf32>
    %cst_99 = arith.constant 1.000000e+00 : f32
    %316 = vector.broadcast %cst_99 : f32 to vector<8x256xf32>
    %317 = arith.addf %316, %315 : vector<8x256xf32>
    %318 = arith.divf %316, %317 : vector<8x256xf32>
    %319 = vector.extract_strided_slice %318 {offsets = [0, 0], sizes = [8, 128], strides = [1, 1]} : vector<8x256xf32> to vector<8x128xf32>
    %320 = vector.extract_strided_slice %318 {offsets = [0, 128], sizes = [8, 128], strides = [1, 1]} : vector<8x256xf32> to vector<8x128xf32>
    %321 = vector.extract_strided_slice %309 {offsets = [0, 256], sizes = [8, 128], strides = [1, 1]} : vector<8x384xf32> to vector<8x128xf32>
    %322 = vector.extract_strided_slice %310 {offsets = [0, 256], sizes = [8, 128], strides = [1, 1]} : vector<8x384xf32> to vector<8x128xf32>
    %323 = arith.addf %322, %210 : vector<8x128xf32>
    %324 = arith.mulf %319, %323 : vector<8x128xf32>
    %325 = arith.addf %321, %324 : vector<8x128xf32>
    %326 = math.tanh %325 : vector<8x128xf32>
    %cst_100 = arith.constant 1.000000e+00 : f32
    %327 = vector.broadcast %cst_100 : f32 to vector<8x128xf32>
    %328 = arith.subf %327, %320 : vector<8x128xf32>
    %329 = arith.mulf %328, %326 : vector<8x128xf32>
    %330 = arith.mulf %320, %308 : vector<8x128xf32>
    %331 = arith.addf %329, %330 : vector<8x128xf32>
    %c40_101 = arith.constant 40 : index
    %c0_102 = arith.constant 0 : index
    %332 = vector.load %arg19[%c40_101, %c0_102] : memref<64x384xf32, #tpu.memory_space<vmem>>, vector<8x384xf32>
    %cst_103 = arith.constant dense<0.000000e+00> : vector<8x384xf32>
    %333 = tpu.matmul %331, %206, %cst_103 {dimension_numbers = #tpu.dot_dimension_numbers<[1], [0], [0], [1], [0, 0, 1, 1], [], []>} : vector<8x128xf32>, vector<128x384xf32>, vector<8x384xf32> -> vector<8x384xf32>
    %334 = vector.extract_strided_slice %332 {offsets = [0, 0], sizes = [8, 256], strides = [1, 1]} : vector<8x384xf32> to vector<8x256xf32>
    %335 = vector.extract_strided_slice %333 {offsets = [0, 0], sizes = [8, 256], strides = [1, 1]} : vector<8x384xf32> to vector<8x256xf32>
    %336 = arith.addf %334, %335 : vector<8x256xf32>
    %337 = arith.negf %336 : vector<8x256xf32>
    %338 = math.exp %337 : vector<8x256xf32>
    %cst_104 = arith.constant 1.000000e+00 : f32
    %339 = vector.broadcast %cst_104 : f32 to vector<8x256xf32>
    %340 = arith.addf %339, %338 : vector<8x256xf32>
    %341 = arith.divf %339, %340 : vector<8x256xf32>
    %342 = vector.extract_strided_slice %341 {offsets = [0, 0], sizes = [8, 128], strides = [1, 1]} : vector<8x256xf32> to vector<8x128xf32>
    %343 = vector.extract_strided_slice %341 {offsets = [0, 128], sizes = [8, 128], strides = [1, 1]} : vector<8x256xf32> to vector<8x128xf32>
    %344 = vector.extract_strided_slice %332 {offsets = [0, 256], sizes = [8, 128], strides = [1, 1]} : vector<8x384xf32> to vector<8x128xf32>
    %345 = vector.extract_strided_slice %333 {offsets = [0, 256], sizes = [8, 128], strides = [1, 1]} : vector<8x384xf32> to vector<8x128xf32>
    %346 = arith.addf %345, %210 : vector<8x128xf32>
    %347 = arith.mulf %342, %346 : vector<8x128xf32>
    %348 = arith.addf %344, %347 : vector<8x128xf32>
    %349 = math.tanh %348 : vector<8x128xf32>
    %cst_105 = arith.constant 1.000000e+00 : f32
    %350 = vector.broadcast %cst_105 : f32 to vector<8x128xf32>
    %351 = arith.subf %350, %343 : vector<8x128xf32>
    %352 = arith.mulf %351, %349 : vector<8x128xf32>
    %353 = arith.mulf %343, %331 : vector<8x128xf32>
    %354 = arith.addf %352, %353 : vector<8x128xf32>
    %c48_106 = arith.constant 48 : index
    %c0_107 = arith.constant 0 : index
    %355 = vector.load %arg19[%c48_106, %c0_107] : memref<64x384xf32, #tpu.memory_space<vmem>>, vector<8x384xf32>
    %cst_108 = arith.constant dense<0.000000e+00> : vector<8x384xf32>
    %356 = tpu.matmul %354, %206, %cst_108 {dimension_numbers = #tpu.dot_dimension_numbers<[1], [0], [0], [1], [0, 0, 1, 1], [], []>} : vector<8x128xf32>, vector<128x384xf32>, vector<8x384xf32> -> vector<8x384xf32>
    %357 = vector.extract_strided_slice %355 {offsets = [0, 0], sizes = [8, 256], strides = [1, 1]} : vector<8x384xf32> to vector<8x256xf32>
    %358 = vector.extract_strided_slice %356 {offsets = [0, 0], sizes = [8, 256], strides = [1, 1]} : vector<8x384xf32> to vector<8x256xf32>
    %359 = arith.addf %357, %358 : vector<8x256xf32>
    %360 = arith.negf %359 : vector<8x256xf32>
    %361 = math.exp %360 : vector<8x256xf32>
    %cst_109 = arith.constant 1.000000e+00 : f32
    %362 = vector.broadcast %cst_109 : f32 to vector<8x256xf32>
    %363 = arith.addf %362, %361 : vector<8x256xf32>
    %364 = arith.divf %362, %363 : vector<8x256xf32>
    %365 = vector.extract_strided_slice %364 {offsets = [0, 0], sizes = [8, 128], strides = [1, 1]} : vector<8x256xf32> to vector<8x128xf32>
    %366 = vector.extract_strided_slice %364 {offsets = [0, 128], sizes = [8, 128], strides = [1, 1]} : vector<8x256xf32> to vector<8x128xf32>
    %367 = vector.extract_strided_slice %355 {offsets = [0, 256], sizes = [8, 128], strides = [1, 1]} : vector<8x384xf32> to vector<8x128xf32>
    %368 = vector.extract_strided_slice %356 {offsets = [0, 256], sizes = [8, 128], strides = [1, 1]} : vector<8x384xf32> to vector<8x128xf32>
    %369 = arith.addf %368, %210 : vector<8x128xf32>
    %370 = arith.mulf %365, %369 : vector<8x128xf32>
    %371 = arith.addf %367, %370 : vector<8x128xf32>
    %372 = math.tanh %371 : vector<8x128xf32>
    %cst_110 = arith.constant 1.000000e+00 : f32
    %373 = vector.broadcast %cst_110 : f32 to vector<8x128xf32>
    %374 = arith.subf %373, %366 : vector<8x128xf32>
    %375 = arith.mulf %374, %372 : vector<8x128xf32>
    %376 = arith.mulf %366, %354 : vector<8x128xf32>
    %377 = arith.addf %375, %376 : vector<8x128xf32>
    %c56_111 = arith.constant 56 : index
    %c0_112 = arith.constant 0 : index
    %378 = vector.load %arg19[%c56_111, %c0_112] : memref<64x384xf32, #tpu.memory_space<vmem>>, vector<8x384xf32>
    %cst_113 = arith.constant dense<0.000000e+00> : vector<8x384xf32>
    %379 = tpu.matmul %377, %206, %cst_113 {dimension_numbers = #tpu.dot_dimension_numbers<[1], [0], [0], [1], [0, 0, 1, 1], [], []>} : vector<8x128xf32>, vector<128x384xf32>, vector<8x384xf32> -> vector<8x384xf32>
    %380 = vector.extract_strided_slice %378 {offsets = [0, 0], sizes = [8, 256], strides = [1, 1]} : vector<8x384xf32> to vector<8x256xf32>
    %381 = vector.extract_strided_slice %379 {offsets = [0, 0], sizes = [8, 256], strides = [1, 1]} : vector<8x384xf32> to vector<8x256xf32>
    %382 = arith.addf %380, %381 : vector<8x256xf32>
    %383 = arith.negf %382 : vector<8x256xf32>
    %384 = math.exp %383 : vector<8x256xf32>
    %cst_114 = arith.constant 1.000000e+00 : f32
    %385 = vector.broadcast %cst_114 : f32 to vector<8x256xf32>
    %386 = arith.addf %385, %384 : vector<8x256xf32>
    %387 = arith.divf %385, %386 : vector<8x256xf32>
    %388 = vector.extract_strided_slice %387 {offsets = [0, 0], sizes = [8, 128], strides = [1, 1]} : vector<8x256xf32> to vector<8x128xf32>
    %389 = vector.extract_strided_slice %387 {offsets = [0, 128], sizes = [8, 128], strides = [1, 1]} : vector<8x256xf32> to vector<8x128xf32>
    %390 = vector.extract_strided_slice %378 {offsets = [0, 256], sizes = [8, 128], strides = [1, 1]} : vector<8x384xf32> to vector<8x128xf32>
    %391 = vector.extract_strided_slice %379 {offsets = [0, 256], sizes = [8, 128], strides = [1, 1]} : vector<8x384xf32> to vector<8x128xf32>
    %392 = arith.addf %391, %210 : vector<8x128xf32>
    %393 = arith.mulf %388, %392 : vector<8x128xf32>
    %394 = arith.addf %390, %393 : vector<8x128xf32>
    %395 = math.tanh %394 : vector<8x128xf32>
    %cst_115 = arith.constant 1.000000e+00 : f32
    %396 = vector.broadcast %cst_115 : f32 to vector<8x128xf32>
    %397 = arith.subf %396, %389 : vector<8x128xf32>
    %398 = arith.mulf %397, %395 : vector<8x128xf32>
    %399 = arith.mulf %389, %377 : vector<8x128xf32>
    %400 = arith.addf %398, %399 : vector<8x128xf32>
    %c0_116 = arith.constant 0 : index
    %c0_117 = arith.constant 0 : index
    %401 = vector.load %arg10[%c0_116, %c0_117] : memref<128x128xf32, #tpu.memory_space<vmem>>, vector<128x128xf32>
    %cst_118 = arith.constant dense<0.000000e+00> : vector<8x128xf32>
    %402 = tpu.matmul %400, %401, %cst_118 {dimension_numbers = #tpu.dot_dimension_numbers<[1], [0], [0], [1], [0, 0, 1, 1], [], []>} : vector<8x128xf32>, vector<128x128xf32>, vector<8x128xf32> -> vector<8x128xf32>
    %c0_119 = arith.constant 0 : index
    %c0_120 = arith.constant 0 : index
    %403 = vector.load %arg11[%c0_119, %c0_120] : memref<1x128xf32, #tpu.memory_space<vmem>>, vector<1x128xf32>
    %404 = vector.broadcast %403 : vector<1x128xf32> to vector<8x128xf32>
    %405 = arith.addf %402, %404 : vector<8x128xf32>
    %406 = arith.mulf %405, %405 : vector<8x128xf32>
    %cst_121 = arith.constant dense<0.000000e+00> : vector<8xf32>
    %407 = vector.multi_reduction <add>, %406, %cst_121 [1] : vector<8x128xf32> to vector<8xf32>
    %408 = vector.shape_cast %407 : vector<8xf32> to vector<8x1xf32>
    %cst_122 = arith.constant 1.000000e-24 : f32
    %409 = vector.broadcast %cst_122 : f32 to vector<8x1xf32>
    %410 = arith.maximumf %408, %409 : vector<8x1xf32>
    %411 = math.rsqrt %410 : vector<8x1xf32>
    %412 = vector.broadcast %411 : vector<8x1xf32> to vector<8x128xf32>
    %413 = arith.mulf %405, %412 : vector<8x128xf32>
    %c0_123 = arith.constant 0 : index
    %c0_124 = arith.constant 0 : index
    %414 = vector.load %arg16[%c0_123, %c0_124] : memref<8x128xf32, #tpu.memory_space<vmem>>, vector<8x128xf32>
    tpu.vector_store %arg16[%c0_123, %c0_124], %413 {strides = array<i32>} : memref<8x128xf32, #tpu.memory_space<vmem>>, vector<8x128xf32>,
    %cst_125 = arith.constant 0.000000e+00 : f32
    %415 = vector.broadcast %cst_125 : f32 to vector<8x128xf32>
    %416 = arith.maximumf %413, %415 : vector<8x128xf32>
    %c0_126 = arith.constant 0 : index
    %c0_127 = arith.constant 0 : index
    %417 = vector.load %arg12[%c0_126, %c0_127] : memref<1x128xf32, #tpu.memory_space<vmem>>, vector<1x128xf32>
    %418 = vector.broadcast %417 : vector<1x128xf32> to vector<8x128xf32>
    %419 = arith.mulf %416, %418 : vector<8x128xf32>
    %c0_128 = arith.constant 0 : index
    %c0_129 = arith.constant 0 : index
    %420 = vector.load %arg13[%c0_128, %c0_129] : memref<1x128xf32, #tpu.memory_space<vmem>>, vector<1x128xf32>
    %421 = vector.broadcast %420 : vector<1x128xf32> to vector<8x128xf32>
    %422 = arith.addf %419, %421 : vector<8x128xf32>
    %c0_130 = arith.constant 0 : index
    %c0_131 = arith.constant 0 : index
    %423 = vector.load %arg14[%c0_130, %c0_131] : memref<128x128xf32, #tpu.memory_space<vmem>>, vector<128x128xf32>
    %cst_132 = arith.constant dense<0.000000e+00> : vector<8x128xf32>
    %424 = tpu.matmul %422, %423, %cst_132 {dimension_numbers = #tpu.dot_dimension_numbers<[1], [0], [0], [1], [0, 0, 1, 1], [], []>} : vector<8x128xf32>, vector<128x128xf32>, vector<8x128xf32> -> vector<8x128xf32>
    %c0_133 = arith.constant 0 : index
    %c0_134 = arith.constant 0 : index
    %425 = vector.load %arg15[%c0_133, %c0_134] : memref<1x128xf32, #tpu.memory_space<vmem>>, vector<1x128xf32>
    %426 = vector.broadcast %425 : vector<1x128xf32> to vector<8x128xf32>
    %427 = arith.addf %424, %426 : vector<8x128xf32>
    %c0_135 = arith.constant 0 : index
    %c0_136 = arith.constant 0 : index
    %428 = vector.load %arg17[%c0_135, %c0_136] : memref<8x128xf32, #tpu.memory_space<vmem>>, vector<8x128xf32>
    tpu.vector_store %arg17[%c0_135, %c0_136], %427 {strides = array<i32>} : memref<8x128xf32, #tpu.memory_space<vmem>>, vector<8x128xf32>,
    return
  }
  func.func @transform_0(%arg0: i32) -> (i32, i32, i32) {
    %c0_i32 = arith.constant 0 : i32
    %c0_i32_0 = arith.constant 0 : i32
    %c0_i32_1 = arith.constant 0 : i32
    return %arg0, %c0_i32, %c0_i32_0 : i32, i32, i32
  }
  func.func @transform_1(%arg0: i32) -> (i32, i32) {
    %c0_i32 = arith.constant 0 : i32
    %c0_i32_0 = arith.constant 0 : i32
    %c0_i32_1 = arith.constant 0 : i32
    return %c0_i32, %c0_i32_0 : i32, i32
  }
  func.func @transform_2(%arg0: i32) -> (i32, i32) {
    %c0_i32 = arith.constant 0 : i32
    %c0_i32_0 = arith.constant 0 : i32
    %c0_i32_1 = arith.constant 0 : i32
    return %c0_i32, %c0_i32_0 : i32, i32
  }
  func.func @transform_3(%arg0: i32) -> (i32, i32) {
    %c0_i32 = arith.constant 0 : i32
    %c0_i32_0 = arith.constant 0 : i32
    %c0_i32_1 = arith.constant 0 : i32
    return %c0_i32, %c0_i32_0 : i32, i32
  }
  func.func @transform_4(%arg0: i32) -> (i32, i32) {
    %c0_i32 = arith.constant 0 : i32
    %c0_i32_0 = arith.constant 0 : i32
    %c0_i32_1 = arith.constant 0 : i32
    return %c0_i32, %c0_i32_0 : i32, i32
  }
  func.func @transform_5(%arg0: i32) -> (i32, i32) {
    %c0_i32 = arith.constant 0 : i32
    %c0_i32_0 = arith.constant 0 : i32
    %c0_i32_1 = arith.constant 0 : i32
    return %c0_i32, %c0_i32_0 : i32, i32
  }
  func.func @transform_6(%arg0: i32) -> (i32, i32) {
    %c0_i32 = arith.constant 0 : i32
    %c0_i32_0 = arith.constant 0 : i32
    %c0_i32_1 = arith.constant 0 : i32
    return %c0_i32, %c0_i32_0 : i32, i32
  }
  func.func @transform_7(%arg0: i32) -> (i32, i32) {
    %c0_i32 = arith.constant 0 : i32
    %c0_i32_0 = arith.constant 0 : i32
    %c0_i32_1 = arith.constant 0 : i32
    return %c0_i32, %c0_i32_0 : i32, i32
  }
  func.func @transform_8(%arg0: i32) -> (i32, i32) {
    %c0_i32 = arith.constant 0 : i32
    %c0_i32_0 = arith.constant 0 : i32
    %c0_i32_1 = arith.constant 0 : i32
    return %c0_i32, %c0_i32_0 : i32, i32
  }
  func.func @transform_9(%arg0: i32) -> (i32, i32) {
    %c0_i32 = arith.constant 0 : i32
    %c0_i32_0 = arith.constant 0 : i32
    %c0_i32_1 = arith.constant 0 : i32
    return %c0_i32, %c0_i32_0 : i32, i32
  }
  func.func @transform_10(%arg0: i32) -> (i32, i32) {
    %c0_i32 = arith.constant 0 : i32
    %c0_i32_0 = arith.constant 0 : i32
    %c0_i32_1 = arith.constant 0 : i32
    return %c0_i32, %c0_i32_0 : i32, i32
  }
  func.func @transform_11(%arg0: i32) -> (i32, i32) {
    %c0_i32 = arith.constant 0 : i32
    %c0_i32_0 = arith.constant 0 : i32
    %c0_i32_1 = arith.constant 0 : i32
    return %c0_i32, %c0_i32_0 : i32, i32
  }
  func.func @transform_12(%arg0: i32) -> (i32, i32) {
    %c0_i32 = arith.constant 0 : i32
    %c0_i32_0 = arith.constant 0 : i32
    %c0_i32_1 = arith.constant 0 : i32
    return %c0_i32, %c0_i32_0 : i32, i32
  }
  func.func @transform_13(%arg0: i32) -> (i32, i32) {
    %c0_i32 = arith.constant 0 : i32
    %c0_i32_0 = arith.constant 0 : i32
    %c0_i32_1 = arith.constant 0 : i32
    return %c0_i32, %c0_i32_0 : i32, i32
  }
  func.func @transform_14(%arg0: i32) -> (i32, i32) {
    %c0_i32 = arith.constant 0 : i32
    %c0_i32_0 = arith.constant 0 : i32
    %c0_i32_1 = arith.constant 0 : i32
    return %c0_i32, %c0_i32_0 : i32, i32
  }
  func.func @transform_15(%arg0: i32) -> (i32, i32) {
    %c0_i32 = arith.constant 0 : i32
    %c0_i32_0 = arith.constant 0 : i32
    return %arg0, %c0_i32 : i32, i32
  }
  func.func @transform_16(%arg0: i32) -> (i32, i32) {
    %c0_i32 = arith.constant 0 : i32
    %c0_i32_0 = arith.constant 0 : i32
    return %arg0, %c0_i32 : i32, i32
  }
}

</mosaic_0001>

<llo_original>
// kernel: classifier_forward.1
$region0: #{classifier_forward.1}
  #allocation0 [shape = 'u32[]', space=smem, size = 0x4, offset = 0x4, fixed_abs, tag = 'smem constant byte address 0x4 - core index']
  #allocation1 [shape = 'u32[72,128]{1,0:T(1,128)}', space=vmem, size = 0x9000, scoped, tag = 'internal scratch']
  #allocation2 [shape = 'f32[64,128]{1,0:T(8,128)}', space=vmem, size = 0x8000, scoped, tag = 'scratch operand']
  #allocation3 [shape = 'f32[64,384]{1,0:T(8,128)}', space=vmem, size = 0x18000, scoped, tag = 'scratch operand']
  %s0 = inlined_call_operand.vmem [shape: f32[1,64,4], index: 0, kind: input, shape index: {}]
  %s1 = inlined_call_operand.vmem [shape: f32[4,384], index: 1, kind: input, shape index: {}]
  %s2 = inlined_call_operand.vmem [shape: f32[128,384], index: 2, kind: input, shape index: {}]
  %s3 = inlined_call_operand.vmem [shape: f32[1,384], index: 3, kind: input, shape index: {}]
  %s4 = inlined_call_operand.vmem [shape: f32[1,128], index: 4, kind: input, shape index: {}]
  %s5 = inlined_call_operand.vmem [shape: f32[128,384], index: 5, kind: input, shape index: {}]
  %s6 = inlined_call_operand.vmem [shape: f32[128,384], index: 6, kind: input, shape index: {}]
  %s7 = inlined_call_operand.vmem [shape: f32[1,384], index: 7, kind: input, shape index: {}]
  %s8 = inlined_call_operand.vmem [shape: f32[1,128], index: 8, kind: input, shape index: {}]
  %s9 = inlined_call_operand.vmem [shape: f32[128,128], index: 9, kind: input, shape index: {}]
  %s10 = inlined_call_operand.vmem [shape: f32[1,128], index: 10, kind: input, shape index: {}]
  %s11 = inlined_call_operand.vmem [shape: f32[1,128], index: 11, kind: input, shape index: {}]
  %s12 = inlined_call_operand.vmem [shape: f32[1,128], index: 12, kind: input, shape index: {}]
  %s13 = inlined_call_operand.vmem [shape: f32[128,128], index: 13, kind: input, shape index: {}]
  %s14 = inlined_call_operand.vmem [shape: f32[1,128], index: 14, kind: input, shape index: {}]
  %s15 = inlined_call_operand.vmem [shape: f32[8,128], index: 15, kind: output, shape index: {0}]
  %s16 = inlined_call_operand.vmem [shape: f32[8,128], index: 16, kind: output, shape index: {1}]
  %17 = xla_tuple %s15, %s16
  %s18 = sld [smem:[#allocation0]]
  $region78: #{classifier_forward.1} parent=0
    _
  %s20 = ssub.s32 1, %s18
  %s21 = scalar_select 0, %s20, %s18
  // Predicated region
  $region2: #{classifier_forward.1} parent=0 // pred_check
    _
  $region3: #{classifier_forward.1} parent=0 // pred_check_branch
    %23 = sbr.rel (0) target = $region5
  $region4: #{classifier_forward.1} parent=0 // pred_region
    _
  $region5: #{classifier_forward.1} parent=0 // pred_fallthru
    _
  // Predicated region
  $region6: #{classifier_forward.1} parent=0 // pred_check
    _
  $region7: #{classifier_forward.1} parent=0 // pred_check_branch
    %25 = sbr.rel (0) target = $region9
  $region8: #{classifier_forward.1} parent=0 // pred_region
    _
  $region9: #{classifier_forward.1} parent=0 // pred_fallthru
    _
  // Predicated region
  $region10: #{classifier_forward.1} parent=0 // pred_check
    _
  $region11: #{classifier_forward.1} parent=0 // pred_check_branch
    %27 = sbr.rel (0) target = $region13
  $region12: #{classifier_forward.1} parent=0 // pred_region
    _
  $region13: #{classifier_forward.1} parent=0 // pred_fallthru
    _
  // Predicated region
  $region14: #{classifier_forward.1} parent=0 // pred_check
    _
  $region15: #{classifier_forward.1} parent=0 // pred_check_branch
    %29 = sbr.rel (0) target = $region17
  $region16: #{classifier_forward.1} parent=0 // pred_region
    _
  $region17: #{classifier_forward.1} parent=0 // pred_fallthru
    _
  // Predicated region
  $region18: #{classifier_forward.1} parent=0 // pred_check
    _
  $region19: #{classifier_forward.1} parent=0 // pred_check_branch
    %31 = sbr.rel (0) target = $region21
  $region20: #{classifier_forward.1} parent=0 // pred_region
    _
  $region21: #{classifier_forward.1} parent=0 // pred_fallthru
    _
  // Predicated region
  $region22: #{classifier_forward.1} parent=0 // pred_check
    _
  $region23: #{classifier_forward.1} parent=0 // pred_check_branch
    %33 = sbr.rel (0) target = $region25
  $region24: #{classifier_forward.1} parent=0 // pred_region
    _
  $region25: #{classifier_forward.1} parent=0 // pred_fallthru
    _
  // Predicated region
  $region26: #{classifier_forward.1} parent=0 // pred_check
    _
  $region27: #{classifier_forward.1} parent=0 // pred_check_branch
    %35 = sbr.rel (0) target = $region29
  $region28: #{classifier_forward.1} parent=0 // pred_region
    _
  $region29: #{classifier_forward.1} parent=0 // pred_fallthru
    _
  // Predicated region
  $region30: #{classifier_forward.1} parent=0 // pred_check
    _
  $region31: #{classifier_forward.1} parent=0 // pred_check_branch
    %37 = sbr.rel (0) target = $region33
  $region32: #{classifier_forward.1} parent=0 // pred_region
    _
  $region33: #{classifier_forward.1} parent=0 // pred_fallthru
    _
  // Predicated region
  $region34: #{classifier_forward.1} parent=0 // pred_check
    _
  $region35: #{classifier_forward.1} parent=0 // pred_check_branch
    %39 = sbr.rel (0) target = $region37
  $region36: #{classifier_forward.1} parent=0 // pred_region
    _
  $region37: #{classifier_forward.1} parent=0 // pred_fallthru
    _
  // Predicated region
  $region38: #{classifier_forward.1} parent=0 // pred_check
    _
  $region39: #{classifier_forward.1} parent=0 // pred_check_branch
    %41 = sbr.rel (0) target = $region41
  $region40: #{classifier_forward.1} parent=0 // pred_region
    _
  $region41: #{classifier_forward.1} parent=0 // pred_fallthru
    _
  // Predicated region
  $region42: #{classifier_forward.1} parent=0 // pred_check
    _
  $region43: #{classifier_forward.1} parent=0 // pred_check_branch
    %43 = sbr.rel (0) target = $region45
  $region44: #{classifier_forward.1} parent=0 // pred_region
    _
  $region45: #{classifier_forward.1} parent=0 // pred_fallthru
    _
  // Predicated region
  $region46: #{classifier_forward.1} parent=0 // pred_check
    _
  $region47: #{classifier_forward.1} parent=0 // pred_check_branch
    %45 = sbr.rel (0) target = $region49
  $region48: #{classifier_forward.1} parent=0 // pred_region
    _
  $region49: #{classifier_forward.1} parent=0 // pred_fallthru
    _
  // Predicated region
  $region50: #{classifier_forward.1} parent=0 // pred_check
    _
  $region51: #{classifier_forward.1} parent=0 // pred_check_branch
    %47 = sbr.rel (0) target = $region53
  $region52: #{classifier_forward.1} parent=0 // pred_region
    _
  $region53: #{classifier_forward.1} parent=0 // pred_fallthru
    _
  // Predicated region
  $region54: #{classifier_forward.1} parent=0 // pred_check
    _
  $region55: #{classifier_forward.1} parent=0 // pred_check_branch
    %49 = sbr.rel (0) target = $region57
  $region56: #{classifier_forward.1} parent=0 // pred_region
    _
  $region57: #{classifier_forward.1} parent=0 // pred_fallthru
    _
  // Predicated region
  $region58: #{classifier_forward.1} parent=0 // pred_check
    _
  $region59: #{classifier_forward.1} parent=0 // pred_check_branch
    %51 = sbr.rel (0) target = $region61
  $region60: #{classifier_forward.1} parent=0 // pred_region
    _
  $region61: #{classifier_forward.1} parent=0 // pred_fallthru
    _
  %v52 = vld [vmem:[%s1] sm:$0xff]
  %v53 = vld [vmem:[%s1 + $0x8] sm:$0xf]
  %v54 = vld [vmem:[%s2] sm:$0xff]
  %v55 = vld [vmem:[%s2 + $0x8] sm:$0xff]
  %v56 = vld [vmem:[%s2 + $0x10] sm:$0xff]
  %v57 = vld [vmem:[%s2 + $0x18] sm:$0xff]
  %v58 = vld [vmem:[%s2 + $0x20] sm:$0xff]
  %v59 = vld [vmem:[%s2 + $0x28] sm:$0xff]
  %v60 = vld [vmem:[%s2 + $0x30] sm:$0xff]
  %v61 = vld [vmem:[%s2 + $0x38] sm:$0xff]
  %v62 = vld [vmem:[%s2 + $0x40] sm:$0xff]
  %v63 = vld [vmem:[%s2 + $0x48] sm:$0xff]
  %v64 = vld [vmem:[%s2 + $0x50] sm:$0xff]
  %v65 = vld [vmem:[%s2 + $0x58] sm:$0xff]
  %v66 = vld [vmem:[%s2 + $0x60] sm:$0xff]
  %v67 = vld [vmem:[%s2 + $0x68] sm:$0xff]
  %v68 = vld [vmem:[%s2 + $0x70] sm:$0xff]
  %v69 = vld [vmem:[%s2 + $0x78] sm:$0xff]
  %v70 = vld [vmem:[%s2 + $0x80] sm:$0xff]
  %v71 = vld [vmem:[%s2 + $0x88] sm:$0xff]
  %v72 = vld [vmem:[%s2 + $0x90] sm:$0xff]
  %v73 = vld [vmem:[%s2 + $0x98] sm:$0xff]
  %v74 = vld [vmem:[%s2 + $0xa0] sm:$0xff]
  %v75 = vld [vmem:[%s2 + $0xa8] sm:$0xff]
  %v76 = vld [vmem:[%s2 + $0xb0] sm:$0xff]
  %v77 = vld [vmem:[%s2 + $0xb8] sm:$0xff]
  %v78 = vld [vmem:[%s2 + $0xc0] sm:$0xff]
  %v79 = vld [vmem:[%s2 + $0xc8] sm:$0xff]
  %v80 = vld [vmem:[%s2 + $0xd0] sm:$0xff]
  %v81 = vld [vmem:[%s2 + $0xd8] sm:$0xff]
  %v82 = vld [vmem:[%s2 + $0xe0] sm:$0xff]
  %v83 = vld [vmem:[%s2 + $0xe8] sm:$0xff]
  %v84 = vld [vmem:[%s2 + $0xf0] sm:$0xff]
  %v85 = vld [vmem:[%s2 + $0xf8] sm:$0xff]
  %v86 = vld [vmem:[%s2 + $0x100] sm:$0xff]
  %v87 = vld [vmem:[%s2 + $0x108] sm:$0xff]
  %v88 = vld [vmem:[%s2 + $0x110] sm:$0xff]
  %v89 = vld [vmem:[%s2 + $0x118] sm:$0xff]
  %v90 = vld [vmem:[%s2 + $0x120] sm:$0xff]
  %v91 = vld [vmem:[%s2 + $0x128] sm:$0xff]
  %v92 = vld [vmem:[%s2 + $0x130] sm:$0xff]
  %v93 = vld [vmem:[%s2 + $0x138] sm:$0xff]
  %v94 = vld [vmem:[%s2 + $0x140] sm:$0xff]
  %v95 = vld [vmem:[%s2 + $0x148] sm:$0xff]
  %v96 = vld [vmem:[%s2 + $0x150] sm:$0xff]
  %v97 = vld [vmem:[%s2 + $0x158] sm:$0xff]
  %v98 = vld [vmem:[%s2 + $0x160] sm:$0xff]
  %v99 = vld [vmem:[%s2 + $0x168] sm:$0xff]
  %v100 = vld [vmem:[%s2 + $0x170] sm:$0xff]
  %v101 = vld [vmem:[%s2 + $0x178] sm:$0xff]
  %v102 = vld [vmem:[%s3] sm:$0x7]
  %v103 = vld [vmem:[%s4] sm:$0x1]
  %v105 = vperm.slane %v103, 0
  %v107 = vld [vmem:[%s0] sm:$0xff]
  %v108 = vld [vmem:[%s0 + $0x8] sm:$0xff]
  %v109 = vld [vmem:[%s0 + $0x10] sm:$0xff]
  %v110 = vld [vmem:[%s0 + $0x18] sm:$0xff]
  %v111 = vld [vmem:[%s0 + $0x20] sm:$0xff]
  %v112 = vld [vmem:[%s0 + $0x28] sm:$0xff]
  %v113 = vld [vmem:[%s0 + $0x30] sm:$0xff]
  %v114 = vld [vmem:[%s0 + $0x38] sm:$0xff]
  %v116 = vperm.slane %v102, 0
  %v117 = vperm.slane %v102, 1
  %v118 = vperm.slane %v102, 2
  %124 = vst [vmem:[#allocation1] ss:$2 sm:$0xff] %v52
  %s125 = scalar_lea.vmem [#allocation1], 16
  %126 = vst [vmem:[%s125] ss:$2 sm:$0xff] %v53
  %v127 = vld.sshfl [vmem:[#allocation1] sm:$0xff pattern:$0x75316420]
  %v128 = vld.sshfl [vmem:[#allocation1 + $0x8] sm:$0xff pattern:$0x75316420]
  %v129 = vld.sshfl [vmem:[#allocation1 + $0x10] sm:$0xff pattern:$0x75316420]
  %vm130 = vcmask 31744
  %v132 = vsel %vm130, %v107, 0
  %v135 = vsel %vm130, %v108, 0
  %v138 = vsel %vm130, %v109, 0
  %v141 = vsel %vm130, %v110, 0
  %v144 = vsel %vm130, %v111, 0
  %v147 = vsel %vm130, %v112, 0
  %v150 = vsel %vm130, %v113, 0
  %v153 = vsel %vm130, %v114, 0
  %vm155 = vcmask 1043456
  %v156 = vsel %vm155, %v127, 0
  %v158 = vsel %vm155, %v128, 0
  %v160 = vsel %vm155, %v129, 0
  %162 = vmatpush.msra.mxu0 0.0
  %163 = vmatpush.msra.mxu0 0.0
  %164 = vmatpush.msra.mxu0 0.0
  %165 = vmatpush.msra.mxu0 0.0
  %166 = vmatpush.msra.mxu0 0.0
  %167 = vmatpush.msra.mxu0 0.0
  %168 = vmatpush.msra.mxu0 0.0
  %169 = vmatpush.msra.mxu0 0.0
  %170 = vmatpush.msra.mxu0 0.0
  %171 = vmatpush.msra.mxu0 0.0
  %172 = vmatpush.msra.mxu0 0.0
  %173 = vmatpush.msra.mxu0 0.0
  %174 = vmatpush.msra.mxu0 0.0
  %175 = vmatpush.msra.mxu0 0.0
  %176 = vmatpush.msra.mxu0 0.0
  %177 = vmatpush.msra.mxu0 %v156
  %178 = vmatmul.f32.gmra.mxu0 %v132
  %v179 = vpop.f32.mrf.mxu0
  %v180 = vadd.f32 %v116, %v179
  %181 = vmatmul.f32.gmra.mxu0 %v135
  %v182 = vpop.f32.mrf.mxu0
  %v183 = vadd.f32 %v116, %v182
  %184 = vmatmul.f32.gmra.mxu0 %v138
  %v185 = vpop.f32.mrf.mxu0
  %v186 = vadd.f32 %v116, %v185
  %187 = vmatmul.f32.gmra.mxu0 %v141
  %v188 = vpop.f32.mrf.mxu0
  %v189 = vadd.f32 %v116, %v188
  %190 = vmatmul.f32.gmra.mxu0 %v144
  %v191 = vpop.f32.mrf.mxu0
  %v192 = vadd.f32 %v116, %v191
  %193 = vmatmul.f32.gmra.mxu0 %v147
  %v194 = vpop.f32.mrf.mxu0
  %v195 = vadd.f32 %v116, %v194
  %196 = vmatmul.f32.gmra.mxu0 %v150
  %v197 = vpop.f32.mrf.mxu0
  %v198 = vadd.f32 %v116, %v197
  %199 = vmatmul.f32.gmra.mxu0 %v153
  %v200 = vpop.f32.mrf.mxu0
  %v201 = vadd.f32 %v116, %v200
  %202 = vdwg.mxu0
  %203 = vmatpush.msra.mxu0 0.0
  %204 = vmatpush.msra.mxu0 0.0
  %205 = vmatpush.msra.mxu0 0.0
  %206 = vmatpush.msra.mxu0 0.0
  %207 = vmatpush.msra.mxu0 0.0
  %208 = vmatpush.msra.mxu0 0.0
  %209 = vmatpush.msra.mxu0 0.0
  %210 = vmatpush.msra.mxu0 0.0
  %211 = vmatpush.msra.mxu0 0.0
  %212 = vmatpush.msra.mxu0 0.0
  %213 = vmatpush.msra.mxu0 0.0
  %214 = vmatpush.msra.mxu0 0.0
  %215 = vmatpush.msra.mxu0 0.0
  %216 = vmatpush.msra.mxu0 0.0
  %217 = vmatpush.msra.mxu0 0.0
  %218 = vmatpush.msra.mxu0 %v158
  %219 = vmatmul.f32.gmra.mxu0 %v132
  %v220 = vpop.f32.mrf.mxu0
  %v221 = vadd.f32 %v117, %v220
  %222 = vmatmul.f32.gmra.mxu0 %v135
  %v223 = vpop.f32.mrf.mxu0
  %v224 = vadd.f32 %v117, %v223
  %225 = vmatmul.f32.gmra.mxu0 %v138
  %v226 = vpop.f32.mrf.mxu0
  %v227 = vadd.f32 %v117, %v226
  %228 = vmatmul.f32.gmra.mxu0 %v141
  %v229 = vpop.f32.mrf.mxu0
  %v230 = vadd.f32 %v117, %v229
  %231 = vmatmul.f32.gmra.mxu0 %v144
  %v232 = vpop.f32.mrf.mxu0
  %v233 = vadd.f32 %v117, %v232
  %234 = vmatmul.f32.gmra.mxu0 %v147
  %v235 = vpop.f32.mrf.mxu0
  %v236 = vadd.f32 %v117, %v235
  %237 = vmatmul.f32.gmra.mxu0 %v150
  %v238 = vpop.f32.mrf.mxu0
  %v239 = vadd.f32 %v117, %v238
  %240 = vmatmul.f32.gmra.mxu0 %v153
  %v241 = vpop.f32.mrf.mxu0
  %v242 = vadd.f32 %v117, %v241
  %243 = vdwg.mxu0
  %244 = vmatpush.msra.mxu0 0.0
  %245 = vmatpush.msra.mxu0 0.0
  %246 = vmatpush.msra.mxu0 0.0
  %247 = vmatpush.msra.mxu0 0.0
  %248 = vmatpush.msra.mxu0 0.0
  %249 = vmatpush.msra.mxu0 0.0
  %250 = vmatpush.msra.mxu0 0.0
  %251 = vmatpush.msra.mxu0 0.0
  %252 = vmatpush.msra.mxu0 0.0
  %253 = vmatpush.msra.mxu0 0.0
  %254 = vmatpush.msra.mxu0 0.0
  %255 = vmatpush.msra.mxu0 0.0
  %256 = vmatpush.msra.mxu0 0.0
  %257 = vmatpush.msra.mxu0 0.0
  %258 = vmatpush.msra.mxu0 0.0
  %259 = vmatpush.msra.mxu0 %v160
  %260 = vmatmul.f32.gmra.mxu0 %v132
  %v261 = vpop.f32.mrf.mxu0
  %v262 = vadd.f32 %v118, %v261
  %263 = vmatmul.f32.gmra.mxu0 %v135
  %v264 = vpop.f32.mrf.mxu0
  %v265 = vadd.f32 %v118, %v264
  %266 = vmatmul.f32.gmra.mxu0 %v138
  %v267 = vpop.f32.mrf.mxu0
  %v268 = vadd.f32 %v118, %v267
  %269 = vmatmul.f32.gmra.mxu0 %v141
  %v270 = vpop.f32.mrf.mxu0
  %v271 = vadd.f32 %v118, %v270
  %272 = vmatmul.f32.gmra.mxu0 %v144
  %v273 = vpop.f32.mrf.mxu0
  %v274 = vadd.f32 %v118, %v273
  %275 = vmatmul.f32.gmra.mxu0 %v147
  %v276 = vpop.f32.mrf.mxu0
  %v277 = vadd.f32 %v118, %v276
  %278 = vmatmul.f32.gmra.mxu0 %v150
  %v279 = vpop.f32.mrf.mxu0
  %v280 = vadd.f32 %v118, %v279
  %281 = vmatmul.f32.gmra.mxu0 %v153
  %v282 = vpop.f32.mrf.mxu0
  %v283 = vadd.f32 %v118, %v282
  %284 = vdwg.mxu0
  %285 = vst [vmem:[#allocation3] sm:$0xff] %v180
  %286 = vst [vmem:[#allocation3 + $0x8] sm:$0xff] %v221
  %287 = vst [vmem:[#allocation3 + $0x10] sm:$0xff] %v262
  %288 = vst [vmem:[#allocation3 + $0x18] sm:$0xff] %v183
  %289 = vst [vmem:[#allocation3 + $0x20] sm:$0xff] %v224
  %290 = vst [vmem:[#allocation3 + $0x28] sm:$0xff] %v265
  %291 = vst [vmem:[#allocation3 + $0x30] sm:$0xff] %v186
  %292 = vst [vmem:[#allocation3 + $0x38] sm:$0xff] %v227
  %293 = vst [vmem:[#allocation3 + $0x40] sm:$0xff] %v268
  %294 = vst [vmem:[#allocation3 + $0x48] sm:$0xff] %v189
  %295 = vst [vmem:[#allocation3 + $0x50] sm:$0xff] %v230
  %296 = vst [vmem:[#allocation3 + $0x58] sm:$0xff] %v271
  %297 = vst [vmem:[#allocation3 + $0x60] sm:$0xff] %v192
  %298 = vst [vmem:[#allocation3 + $0x68] sm:$0xff] %v233
  %299 = vst [vmem:[#allocation3 + $0x70] sm:$0xff] %v274
  %300 = vst [vmem:[#allocation3 + $0x78] sm:$0xff] %v195
  %301 = vst [vmem:[#allocation3 + $0x80] sm:$0xff] %v236
  %302 = vst [vmem:[#allocation3 + $0x88] sm:$0xff] %v277
  %303 = vst [vmem:[#allocation3 + $0x90] sm:$0xff] %v198
  %304 = vst [vmem:[#allocation3 + $0x98] sm:$0xff] %v239
  %305 = vst [vmem:[#allocation3 + $0xa0] sm:$0xff] %v280
  %306 = vst [vmem:[#allocation3 + $0xa8] sm:$0xff] %v201
  %307 = vst [vmem:[#allocation3 + $0xb0] sm:$0xff] %v242
  %308 = vst [vmem:[#allocation3 + $0xb8] sm:$0xff] %v283
  %v309 = vld [vmem:[#allocation3] sm:$0xff]
  %v310 = vld [vmem:[#allocation3 + $0x8] sm:$0xff]
  %v311 = vld [vmem:[#allocation3 + $0x10] sm:$0xff]
  %312 = vmatpush.msra.mxu0 %v99
  %313 = vmatpush.msra.mxu0 %v96
  %314 = vmatpush.msra.mxu0 %v93
  %315 = vmatpush.msra.mxu0 %v90
  %316 = vmatpush.msra.mxu0 %v87
  %317 = vmatpush.msra.mxu0 %v84
  %318 = vmatpush.msra.mxu0 %v81
  %319 = vmatpush.msra.mxu0 %v78
  %320 = vmatpush.msra.mxu0 %v75
  %321 = vmatpush.msra.mxu0 %v72
  %322 = vmatpush.msra.mxu0 %v69
  %323 = vmatpush.msra.mxu0 %v66
  %324 = vmatpush.msra.mxu0 %v63
  %325 = vmatpush.msra.mxu0 %v60
  %326 = vmatpush.msra.mxu0 %v57
  %327 = vmatpush.msra.mxu0 %v54
  %328 = vmatmul.f32.gmra.mxu0 0.0
  %v329 = vpop.f32.mrf.mxu0
  %v330 = vadd.f32 0.0, %v329
  %331 = vdwg.mxu0
  %332 = vmatpush.msra.mxu0 %v100
  %333 = vmatpush.msra.mxu0 %v97
  %334 = vmatpush.msra.mxu0 %v94
  %335 = vmatpush.msra.mxu0 %v91
  %336 = vmatpush.msra.mxu0 %v88
  %337 = vmatpush.msra.mxu0 %v85
  %338 = vmatpush.msra.mxu0 %v82
  %339 = vmatpush.msra.mxu0 %v79
  %340 = vmatpush.msra.mxu0 %v76
  %341 = vmatpush.msra.mxu0 %v73
  %342 = vmatpush.msra.mxu0 %v70
  %343 = vmatpush.msra.mxu0 %v67
  %344 = vmatpush.msra.mxu0 %v64
  %345 = vmatpush.msra.mxu0 %v61
  %346 = vmatpush.msra.mxu0 %v58
  %347 = vmatpush.msra.mxu0 %v55
  %348 = vmatmul.f32.gmra.mxu0 0.0
  %v349 = vpop.f32.mrf.mxu0
  %v350 = vadd.f32 0.0, %v349
  %351 = vdwg.mxu0
  %352 = vmatpush.msra.mxu0 %v101
  %353 = vmatpush.msra.mxu0 %v98
  %354 = vmatpush.msra.mxu0 %v95
  %355 = vmatpush.msra.mxu0 %v92
  %356 = vmatpush.msra.mxu0 %v89
  %357 = vmatpush.msra.mxu0 %v86
  %358 = vmatpush.msra.mxu0 %v83
  %359 = vmatpush.msra.mxu0 %v80
  %360 = vmatpush.msra.mxu0 %v77
  %361 = vmatpush.msra.mxu0 %v74
  %362 = vmatpush.msra.mxu0 %v71
  %363 = vmatpush.msra.mxu0 %v68
  %364 = vmatpush.msra.mxu0 %v65
  %365 = vmatpush.msra.mxu0 %v62
  %366 = vmatpush.msra.mxu0 %v59
  %367 = vmatpush.msra.mxu0 %v56
  %368 = vmatmul.f32.gmra.mxu0 0.0
  %v369 = vpop.f32.mrf.mxu0
  %v370 = vadd.f32 0.0, %v369
  %371 = vdwg.mxu0
  %v372 = vadd.f32 %v309, %v330
  %v373 = vadd.f32 %v310, %v350
  %v374 = vxor.u32 %v372, 2147483648
  %v375 = vxor.u32 %v373, 2147483648
  %v376 = vmul.f32 %v374, 1.442695
  %v377 = vpow.pop %v376
  %v378 = vmul.f32 %v375, 1.442695
  %v379 = vpow.pop %v378
  %v380 = vadd.f32 %v377, 1.0
  %v381 = vadd.f32 %v379, 1.0
  %v382 = vrcp.pop %v380
  %v383 = vmul.f32 %v380, %v382
  %v384 = vsub.f32 1.0, %v383
  %v385 = vmul.f32 %v382, %v384
  %v386 = vadd.f32 %v382, %v385
  %vm387 = vweird.f32 %v380
  %vm388 = vweird.f32 %v382
  %vm389 = vmor %vm387, %vm388
  %v390 = vsel %vm389, %v382, %v386
  %v391 = vand.u32 2147483647, %v380
  %vm392 = vcmp.eq.f32.partialorder %v391, 8.507059e+37
  %v393 = vand.u32 %v380, 2147483648
  %v394 = vor.u32 1.1754944e-38, %v393
  %v395 = vsel %vm392, %v394, %v390
  %v396 = vmul.f32 1.0, %v395
  %v397 = vrcp.pop %v381
  %v398 = vmul.f32 %v381, %v397
  %v399 = vsub.f32 1.0, %v398
  %v400 = vmul.f32 %v397, %v399
  %v401 = vadd.f32 %v397, %v400
  %vm402 = vweird.f32 %v381
  %vm403 = vweird.f32 %v397
  %vm404 = vmor %vm402, %vm403
  %v405 = vsel %vm404, %v397, %v401
  %v406 = vand.u32 2147483647, %v381
  %vm407 = vcmp.eq.f32.partialorder %v406, 8.507059e+37
  %v408 = vand.u32 %v381, 2147483648
  %v409 = vor.u32 1.1754944e-38, %v408
  %v410 = vsel %vm407, %v409, %v405
  %v411 = vmul.f32 1.0, %v410
  %v412 = vadd.f32 %v370, %v105
  %v413 = vmul.f32 %v396, %v412
  %v414 = vadd.f32 %v311, %v413
  %v415 = vtanh.pop %v414
  %v416 = vsub.f32 1.0, %v411
  %v417 = vmul.f32 %v416, %v415
  %v418 = vmul.f32 %v411, 0.0
  %v419 = vadd.f32 %v417, %v418
  %420 = vst [vmem:[#allocation2] sm:$0xff] %v419
  %v421 = vld [vmem:[#allocation3 + $0x18] sm:$0xff]
  %v422 = vld [vmem:[#allocation3 + $0x20] sm:$0xff]
  %v423 = vld [vmem:[#allocation3 + $0x28] sm:$0xff]
  %424 = vmatpush.msra.mxu0 %v99
  %425 = vmatpush.msra.mxu0 %v96
  %426 = vmatpush.msra.mxu0 %v93
  %427 = vmatpush.msra.mxu0 %v90
  %428 = vmatpush.msra.mxu0 %v87
  %429 = vmatpush.msra.mxu0 %v84
  %430 = vmatpush.msra.mxu0 %v81
  %431 = vmatpush.msra.mxu0 %v78
  %432 = vmatpush.msra.mxu0 %v75
  %433 = vmatpush.msra.mxu0 %v72
  %434 = vmatpush.msra.mxu0 %v69
  %435 = vmatpush.msra.mxu0 %v66
  %436 = vmatpush.msra.mxu0 %v63
  %437 = vmatpush.msra.mxu0 %v60
  %438 = vmatpush.msra.mxu0 %v57
  %439 = vmatpush.msra.mxu0 %v54
  %440 = vmatmul.f32.gmra.mxu0 %v419
  %v441 = vpop.f32.mrf.mxu0
  %v442 = vadd.f32 0.0, %v441
  %443 = vdwg.mxu0
  %444 = vmatpush.msra.mxu0 %v100
  %445 = vmatpush.msra.mxu0 %v97
  %446 = vmatpush.msra.mxu0 %v94
  %447 = vmatpush.msra.mxu0 %v91
  %448 = vmatpush.msra.mxu0 %v88
  %449 = vmatpush.msra.mxu0 %v85
  %450 = vmatpush.msra.mxu0 %v82
  %451 = vmatpush.msra.mxu0 %v79
  %452 = vmatpush.msra.mxu0 %v76
  %453 = vmatpush.msra.mxu0 %v73
  %454 = vmatpush.msra.mxu0 %v70
  %455 = vmatpush.msra.mxu0 %v67
  %456 = vmatpush.msra.mxu0 %v64
  %457 = vmatpush.msra.mxu0 %v61
  %458 = vmatpush.msra.mxu0 %v58
  %459 = vmatpush.msra.mxu0 %v55
  %460 = vmatmul.f32.gmra.mxu0 %v419
  %v461 = vpop.f32.mrf.mxu0
  %v462 = vadd.f32 0.0, %v461
  %463 = vdwg.mxu0
  %464 = vmatpush.msra.mxu0 %v101
  %465 = vmatpush.msra.mxu0 %v98
  %466 = vmatpush.msra.mxu0 %v95
  %467 = vmatpush.msra.mxu0 %v92
  %468 = vmatpush.msra.mxu0 %v89
  %469 = vmatpush.msra.mxu0 %v86
  %470 = vmatpush.msra.mxu0 %v83
  %471 = vmatpush.msra.mxu0 %v80
  %472 = vmatpush.msra.mxu0 %v77
  %473 = vmatpush.msra.mxu0 %v74
  %474 = vmatpush.msra.mxu0 %v71
  %475 = vmatpush.msra.mxu0 %v68
  %476 = vmatpush.msra.mxu0 %v65
  %477 = vmatpush.msra.mxu0 %v62
  %478 = vmatpush.msra.mxu0 %v59
  %479 = vmatpush.msra.mxu0 %v56
  %480 = vmatmul.f32.gmra.mxu0 %v419
  %v481 = vpop.f32.mrf.mxu0
  %v482 = vadd.f32 0.0, %v481
  %483 = vdwg.mxu0
  %v484 = vadd.f32 %v421, %v442
  %v485 = vadd.f32 %v422, %v462
  %v486 = vxor.u32 %v484, 2147483648
  %v487 = vxor.u32 %v485, 2147483648
  %v488 = vmul.f32 %v486, 1.442695
  %v489 = vpow.pop %v488
  %v490 = vmul.f32 %v487, 1.442695
  %v491 = vpow.pop %v490
  %v492 = vadd.f32 %v489, 1.0
  %v493 = vadd.f32 %v491, 1.0
  %v494 = vrcp.pop %v492
  %v495 = vmul.f32 %v492, %v494
  %v496 = vsub.f32 1.0, %v495
  %v497 = vmul.f32 %v494, %v496
  %v498 = vadd.f32 %v494, %v497
  %vm499 = vweird.f32 %v492
  %vm500 = vweird.f32 %v494
  %vm501 = vmor %vm499, %vm500
  %v502 = vsel %vm501, %v494, %v498
  %v503 = vand.u32 2147483647, %v492
  %vm504 = vcmp.eq.f32.partialorder %v503, 8.507059e+37
  %v505 = vand.u32 %v492, 2147483648
  %v506 = vor.u32 1.1754944e-38, %v505
  %v507 = vsel %vm504, %v506, %v502
  %v508 = vmul.f32 1.0, %v507
  %v509 = vrcp.pop %v493
  %v510 = vmul.f32 %v493, %v509
  %v511 = vsub.f32 1.0, %v510
  %v512 = vmul.f32 %v509, %v511
  %v513 = vadd.f32 %v509, %v512
  %vm514 = vweird.f32 %v493
  %vm515 = vweird.f32 %v509
  %vm516 = vmor %vm514, %vm515
  %v517 = vsel %vm516, %v509, %v513
  %v518 = vand.u32 2147483647, %v493
  %vm519 = vcmp.eq.f32.partialorder %v518, 8.507059e+37
  %v520 = vand.u32 %v493, 2147483648
  %v521 = vor.u32 1.1754944e-38, %v520
  %v522 = vsel %vm519, %v521, %v517
  %v523 = vmul.f32 1.0, %v522
  %v524 = vadd.f32 %v482, %v105
  %v525 = vmul.f32 %v508, %v524
  %v526 = vadd.f32 %v423, %v525
  %v527 = vtanh.pop %v526
  %v528 = vsub.f32 1.0, %v523
  %v529 = vmul.f32 %v528, %v527
  %v530 = vmul.f32 %v523, %v419
  %v531 = vadd.f32 %v529, %v530
  %532 = vst [vmem:[#allocation2 + $0x8] sm:$0xff] %v531
  %v533 = vld [vmem:[#allocation3 + $0x30] sm:$0xff]
  %v534 = vld [vmem:[#allocation3 + $0x38] sm:$0xff]
  %v535 = vld [vmem:[#allocation3 + $0x40] sm:$0xff]
  %536 = vmatpush.msra.mxu0 %v99
  %537 = vmatpush.msra.mxu0 %v96
  %538 = vmatpush.msra.mxu0 %v93
  %539 = vmatpush.msra.mxu0 %v90
  %540 = vmatpush.msra.mxu0 %v87
  %541 = vmatpush.msra.mxu0 %v84
  %542 = vmatpush.msra.mxu0 %v81
  %543 = vmatpush.msra.mxu0 %v78
  %544 = vmatpush.msra.mxu0 %v75
  %545 = vmatpush.msra.mxu0 %v72
  %546 = vmatpush.msra.mxu0 %v69
  %547 = vmatpush.msra.mxu0 %v66
  %548 = vmatpush.msra.mxu0 %v63
  %549 = vmatpush.msra.mxu0 %v60
  %550 = vmatpush.msra.mxu0 %v57
  %551 = vmatpush.msra.mxu0 %v54
  %552 = vmatmul.f32.gmra.mxu0 %v531
  %v553 = vpop.f32.mrf.mxu0
  %v554 = vadd.f32 0.0, %v553
  %555 = vdwg.mxu0
  %556 = vmatpush.msra.mxu0 %v100
  %557 = vmatpush.msra.mxu0 %v97
  %558 = vmatpush.msra.mxu0 %v94
  %559 = vmatpush.msra.mxu0 %v91
  %560 = vmatpush.msra.mxu0 %v88
  %561 = vmatpush.msra.mxu0 %v85
  %562 = vmatpush.msra.mxu0 %v82
  %563 = vmatpush.msra.mxu0 %v79
  %564 = vmatpush.msra.mxu0 %v76
  %565 = vmatpush.msra.mxu0 %v73
  %566 = vmatpush.msra.mxu0 %v70
  %567 = vmatpush.msra.mxu0 %v67
  %568 = vmatpush.msra.mxu0 %v64
  %569 = vmatpush.msra.mxu0 %v61
  %570 = vmatpush.msra.mxu0 %v58
  %571 = vmatpush.msra.mxu0 %v55
  %572 = vmatmul.f32.gmra.mxu0 %v531
  %v573 = vpop.f32.mrf.mxu0
  %v574 = vadd.f32 0.0, %v573
  %575 = vdwg.mxu0
  %576 = vmatpush.msra.mxu0 %v101
  %577 = vmatpush.msra.mxu0 %v98
  %578 = vmatpush.msra.mxu0 %v95
  %579 = vmatpush.msra.mxu0 %v92
  %580 = vmatpush.msra.mxu0 %v89
  %581 = vmatpush.msra.mxu0 %v86
  %582 = vmatpush.msra.mxu0 %v83
  %583 = vmatpush.msra.mxu0 %v80
  %584 = vmatpush.msra.mxu0 %v77
  %585 = vmatpush.msra.mxu0 %v74
  %586 = vmatpush.msra.mxu0 %v71
  %587 = vmatpush.msra.mxu0 %v68
  %588 = vmatpush.msra.mxu0 %v65
  %589 = vmatpush.msra.mxu0 %v62
  %590 = vmatpush.msra.mxu0 %v59
  %591 = vmatpush.msra.mxu0 %v56
  %592 = vmatmul.f32.gmra.mxu0 %v531
  %v593 = vpop.f32.mrf.mxu0
  %v594 = vadd.f32 0.0, %v593
  %595 = vdwg.mxu0
  %v596 = vadd.f32 %v533, %v554
  %v597 = vadd.f32 %v534, %v574
  %v598 = vxor.u32 %v596, 2147483648
  %v599 = vxor.u32 %v597, 2147483648
  %v600 = vmul.f32 %v598, 1.442695
  %v601 = vpow.pop %v600
  %v602 = vmul.f32 %v599, 1.442695
  %v603 = vpow.pop %v602
  %v604 = vadd.f32 %v601, 1.0
  %v605 = vadd.f32 %v603, 1.0
  %v606 = vrcp.pop %v604
  %v607 = vmul.f32 %v604, %v606
  %v608 = vsub.f32 1.0, %v607
  %v609 = vmul.f32 %v606, %v608
  %v610 = vadd.f32 %v606, %v609
  %vm611 = vweird.f32 %v604
  %vm612 = vweird.f32 %v606
  %vm613 = vmor %vm611, %vm612
  %v614 = vsel %vm613, %v606, %v610
  %v615 = vand.u32 2147483647, %v604
  %vm616 = vcmp.eq.f32.partialorder %v615, 8.507059e+37
  %v617 = vand.u32 %v604, 2147483648
  %v618 = vor.u32 1.1754944e-38, %v617
  %v619 = vsel %vm616, %v618, %v614
  %v620 = vmul.f32 1.0, %v619
  %v621 = vrcp.pop %v605
  %v622 = vmul.f32 %v605, %v621
  %v623 = vsub.f32 1.0, %v622
  %v624 = vmul.f32 %v621, %v623
  %v625 = vadd.f32 %v621, %v624
  %vm626 = vweird.f32 %v605
  %vm627 = vweird.f32 %v621
  %vm628 = vmor %vm626, %vm627
  %v629 = vsel %vm628, %v621, %v625
  %v630 = vand.u32 2147483647, %v605
  %vm631 = vcmp.eq.f32.partialorder %v630, 8.507059e+37
  %v632 = vand.u32 %v605, 2147483648
  %v633 = vor.u32 1.1754944e-38, %v632
  %v634 = vsel %vm631, %v633, %v629
  %v635 = vmul.f32 1.0, %v634
  %v636 = vadd.f32 %v594, %v105
  %v637 = vmul.f32 %v620, %v636
  %v638 = vadd.f32 %v535, %v637
  %v639 = vtanh.pop %v638
  %v640 = vsub.f32 1.0, %v635
  %v641 = vmul.f32 %v640, %v639
  %v642 = vmul.f32 %v635, %v531
  %v643 = vadd.f32 %v641, %v642
  %644 = vst [vmem:[#allocation2 + $0x10] sm:$0xff] %v643
  %v645 = vld [vmem:[#allocation3 + $0x48] sm:$0xff]
  %v646 = vld [vmem:[#allocation3 + $0x50] sm:$0xff]
  %v647 = vld [vmem:[#allocation3 + $0x58] sm:$0xff]
  %648 = vmatpush.msra.mxu0 %v99
  %649 = vmatpush.msra.mxu0 %v96
  %650 = vmatpush.msra.mxu0 %v93
  %651 = vmatpush.msra.mxu0 %v90
  %652 = vmatpush.msra.mxu0 %v87
  %653 = vmatpush.msra.mxu0 %v84
  %654 = vmatpush.msra.mxu0 %v81
  %655 = vmatpush.msra.mxu0 %v78
  %656 = vmatpush.msra.mxu0 %v75
  %657 = vmatpush.msra.mxu0 %v72
  %658 = vmatpush.msra.mxu0 %v69
  %659 = vmatpush.msra.mxu0 %v66
  %660 = vmatpush.msra.mxu0 %v63
  %661 = vmatpush.msra.mxu0 %v60
  %662 = vmatpush.msra.mxu0 %v57
  %663 = vmatpush.msra.mxu0 %v54
  %664 = vmatmul.f32.gmra.mxu0 %v643
  %v665 = vpop.f32.mrf.mxu0
  %v666 = vadd.f32 0.0, %v665
  %667 = vdwg.mxu0
  %668 = vmatpush.msra.mxu0 %v100
  %669 = vmatpush.msra.mxu0 %v97
  %670 = vmatpush.msra.mxu0 %v94
  %671 = vmatpush.msra.mxu0 %v91
  %672 = vmatpush.msra.mxu0 %v88
  %673 = vmatpush.msra.mxu0 %v85
  %674 = vmatpush.msra.mxu0 %v82
  %675 = vmatpush.msra.mxu0 %v79
  %676 = vmatpush.msra.mxu0 %v76
  %677 = vmatpush.msra.mxu0 %v73
  %678 = vmatpush.msra.mxu0 %v70
  %679 = vmatpush.msra.mxu0 %v67
  %680 = vmatpush.msra.mxu0 %v64
  %681 = vmatpush.msra.mxu0 %v61
  %682 = vmatpush.msra.mxu0 %v58
  %683 = vmatpush.msra.mxu0 %v55
  %684 = vmatmul.f32.gmra.mxu0 %v643
  %v685 = vpop.f32.mrf.mxu0
  %v686 = vadd.f32 0.0, %v685
  %687 = vdwg.mxu0
  %688 = vmatpush.msra.mxu0 %v101
  %689 = vmatpush.msra.mxu0 %v98
  %690 = vmatpush.msra.mxu0 %v95
  %691 = vmatpush.msra.mxu0 %v92
  %692 = vmatpush.msra.mxu0 %v89
  %693 = vmatpush.msra.mxu0 %v86
  %694 = vmatpush.msra.mxu0 %v83
  %695 = vmatpush.msra.mxu0 %v80
  %696 = vmatpush.msra.mxu0 %v77
  %697 = vmatpush.msra.mxu0 %v74
  %698 = vmatpush.msra.mxu0 %v71
  %699 = vmatpush.msra.mxu0 %v68
  %700 = vmatpush.msra.mxu0 %v65
  %701 = vmatpush.msra.mxu0 %v62
  %702 = vmatpush.msra.mxu0 %v59
  %703 = vmatpush.msra.mxu0 %v56
  %704 = vmatmul.f32.gmra.mxu0 %v643
  %v705 = vpop.f32.mrf.mxu0
  %v706 = vadd.f32 0.0, %v705
  %707 = vdwg.mxu0
  %v708 = vadd.f32 %v645, %v666
  %v709 = vadd.f32 %v646, %v686
  %v710 = vxor.u32 %v708, 2147483648
  %v711 = vxor.u32 %v709, 2147483648
  %v712 = vmul.f32 %v710, 1.442695
  %v713 = vpow.pop %v712
  %v714 = vmul.f32 %v711, 1.442695
  %v715 = vpow.pop %v714
  %v716 = vadd.f32 %v713, 1.0
  %v717 = vadd.f32 %v715, 1.0
  %v718 = vrcp.pop %v716
  %v719 = vmul.f32 %v716, %v718
  %v720 = vsub.f32 1.0, %v719
  %v721 = vmul.f32 %v718, %v720
  %v722 = vadd.f32 %v718, %v721
  %vm723 = vweird.f32 %v716
  %vm724 = vweird.f32 %v718
  %vm725 = vmor %vm723, %vm724
  %v726 = vsel %vm725, %v718, %v722
  %v727 = vand.u32 2147483647, %v716
  %vm728 = vcmp.eq.f32.partialorder %v727, 8.507059e+37
  %v729 = vand.u32 %v716, 2147483648
  %v730 = vor.u32 1.1754944e-38, %v729
  %v731 = vsel %vm728, %v730, %v726
  %v732 = vmul.f32 1.0, %v731
  %v733 = vrcp.pop %v717
  %v734 = vmul.f32 %v717, %v733
  %v735 = vsub.f32 1.0, %v734
  %v736 = vmul.f32 %v733, %v735
  %v737 = vadd.f32 %v733, %v736
  %vm738 = vweird.f32 %v717
  %vm739 = vweird.f32 %v733
  %vm740 = vmor %vm738, %vm739
  %v741 = vsel %vm740, %v733, %v737
  %v742 = vand.u32 2147483647, %v717
  %vm743 = vcmp.eq.f32.partialorder %v742, 8.507059e+37
  %v744 = vand.u32 %v717, 2147483648
  %v745 = vor.u32 1.1754944e-38, %v744
  %v746 = vsel %vm743, %v745, %v741
  %v747 = vmul.f32 1.0, %v746
  %v748 = vadd.f32 %v706, %v105
  %v749 = vmul.f32 %v732, %v748
  %v750 = vadd.f32 %v647, %v749
  %v751 = vtanh.pop %v750
  %v752 = vsub.f32 1.0, %v747
  %v753 = vmul.f32 %v752, %v751
  %v754 = vmul.f32 %v747, %v643
  %v755 = vadd.f32 %v753, %v754
  %756 = vst [vmem:[#allocation2 + $0x18] sm:$0xff] %v755
  %v757 = vld [vmem:[#allocation3 + $0x60] sm:$0xff]
  %v758 = vld [vmem:[#allocation3 + $0x68] sm:$0xff]
  %v759 = vld [vmem:[#allocation3 + $0x70] sm:$0xff]
  %760 = vmatpush.msra.mxu0 %v99
  %761 = vmatpush.msra.mxu0 %v96
  %762 = vmatpush.msra.mxu0 %v93
  %763 = vmatpush.msra.mxu0 %v90
  %764 = vmatpush.msra.mxu0 %v87
  %765 = vmatpush.msra.mxu0 %v84
  %766 = vmatpush.msra.mxu0 %v81
  %767 = vmatpush.msra.mxu0 %v78
  %768 = vmatpush.msra.mxu0 %v75
  %769 = vmatpush.msra.mxu0 %v72
  %770 = vmatpush.msra.mxu0 %v69
  %771 = vmatpush.msra.mxu0 %v66
  %772 = vmatpush.msra.mxu0 %v63
  %773 = vmatpush.msra.mxu0 %v60
  %774 = vmatpush.msra.mxu0 %v57
  %775 = vmatpush.msra.mxu0 %v54
  %776 = vmatmul.f32.gmra.mxu0 %v755
  %v777 = vpop.f32.mrf.mxu0
  %v778 = vadd.f32 0.0, %v777
  %779 = vdwg.mxu0
  %780 = vmatpush.msra.mxu0 %v100
  %781 = vmatpush.msra.mxu0 %v97
  %782 = vmatpush.msra.mxu0 %v94
  %783 = vmatpush.msra.mxu0 %v91
  %784 = vmatpush.msra.mxu0 %v88
  %785 = vmatpush.msra.mxu0 %v85
  %786 = vmatpush.msra.mxu0 %v82
  %787 = vmatpush.msra.mxu0 %v79
  %788 = vmatpush.msra.mxu0 %v76
  %789 = vmatpush.msra.mxu0 %v73
  %790 = vmatpush.msra.mxu0 %v70
  %791 = vmatpush.msra.mxu0 %v67
  %792 = vmatpush.msra.mxu0 %v64
  %793 = vmatpush.msra.mxu0 %v61
  %794 = vmatpush.msra.mxu0 %v58
  %795 = vmatpush.msra.mxu0 %v55
  %796 = vmatmul.f32.gmra.mxu0 %v755
  %v797 = vpop.f32.mrf.mxu0
  %v798 = vadd.f32 0.0, %v797
  %799 = vdwg.mxu0
  %800 = vmatpush.msra.mxu0 %v101
  %801 = vmatpush.msra.mxu0 %v98
  %802 = vmatpush.msra.mxu0 %v95
  %803 = vmatpush.msra.mxu0 %v92
  %804 = vmatpush.msra.mxu0 %v89
  %805 = vmatpush.msra.mxu0 %v86
  %806 = vmatpush.msra.mxu0 %v83
  %807 = vmatpush.msra.mxu0 %v80
  %808 = vmatpush.msra.mxu0 %v77
  %809 = vmatpush.msra.mxu0 %v74
  %810 = vmatpush.msra.mxu0 %v71
  %811 = vmatpush.msra.mxu0 %v68
  %812 = vmatpush.msra.mxu0 %v65
  %813 = vmatpush.msra.mxu0 %v62
  %814 = vmatpush.msra.mxu0 %v59
  %815 = vmatpush.msra.mxu0 %v56
  %816 = vmatmul.f32.gmra.mxu0 %v755
  %v817 = vpop.f32.mrf.mxu0
  %v818 = vadd.f32 0.0, %v817
  %819 = vdwg.mxu0
  %v820 = vadd.f32 %v757, %v778
  %v821 = vadd.f32 %v758, %v798
  %v822 = vxor.u32 %v820, 2147483648
  %v823 = vxor.u32 %v821, 2147483648
  %v824 = vmul.f32 %v822, 1.442695
  %v825 = vpow.pop %v824
  %v826 = vmul.f32 %v823, 1.442695
  %v827 = vpow.pop %v826
  %v828 = vadd.f32 %v825, 1.0
  %v829 = vadd.f32 %v827, 1.0
  %v830 = vrcp.pop %v828
  %v831 = vmul.f32 %v828, %v830
  %v832 = vsub.f32 1.0, %v831
  %v833 = vmul.f32 %v830, %v832
  %v834 = vadd.f32 %v830, %v833
  %vm835 = vweird.f32 %v828
  %vm836 = vweird.f32 %v830
  %vm837 = vmor %vm835, %vm836
  %v838 = vsel %vm837, %v830, %v834
  %v839 = vand.u32 2147483647, %v828
  %vm840 = vcmp.eq.f32.partialorder %v839, 8.507059e+37
  %v841 = vand.u32 %v828, 2147483648
  %v842 = vor.u32 1.1754944e-38, %v841
  %v843 = vsel %vm840, %v842, %v838
  %v844 = vmul.f32 1.0, %v843
  %v845 = vrcp.pop %v829
  %v846 = vmul.f32 %v829, %v845
  %v847 = vsub.f32 1.0, %v846
  %v848 = vmul.f32 %v845, %v847
  %v849 = vadd.f32 %v845, %v848
  %vm850 = vweird.f32 %v829
  %vm851 = vweird.f32 %v845
  %vm852 = vmor %vm850, %vm851
  %v853 = vsel %vm852, %v845, %v849
  %v854 = vand.u32 2147483647, %v829
  %vm855 = vcmp.eq.f32.partialorder %v854, 8.507059e+37
  %v856 = vand.u32 %v829, 2147483648
  %v857 = vor.u32 1.1754944e-38, %v856
  %v858 = vsel %vm855, %v857, %v853
  %v859 = vmul.f32 1.0, %v858
  %v860 = vadd.f32 %v818, %v105
  %v861 = vmul.f32 %v844, %v860
  %v862 = vadd.f32 %v759, %v861
  %v863 = vtanh.pop %v862
  %v864 = vsub.f32 1.0, %v859
  %v865 = vmul.f32 %v864, %v863
  %v866 = vmul.f32 %v859, %v755
  %v867 = vadd.f32 %v865, %v866
  %868 = vst [vmem:[#allocation2 + $0x20] sm:$0xff] %v867
  %v869 = vld [vmem:[#allocation3 + $0x78] sm:$0xff]
  %v870 = vld [vmem:[#allocation3 + $0x80] sm:$0xff]
  %v871 = vld [vmem:[#allocation3 + $0x88] sm:$0xff]
  %872 = vmatpush.msra.mxu0 %v99
  %873 = vmatpush.msra.mxu0 %v96
  %874 = vmatpush.msra.mxu0 %v93
  %875 = vmatpush.msra.mxu0 %v90
  %876 = vmatpush.msra.mxu0 %v87
  %877 = vmatpush.msra.mxu0 %v84
  %878 = vmatpush.msra.mxu0 %v81
  %879 = vmatpush.msra.mxu0 %v78
  %880 = vmatpush.msra.mxu0 %v75
  %881 = vmatpush.msra.mxu0 %v72
  %882 = vmatpush.msra.mxu0 %v69
  %883 = vmatpush.msra.mxu0 %v66
  %884 = vmatpush.msra.mxu0 %v63
  %885 = vmatpush.msra.mxu0 %v60
  %886 = vmatpush.msra.mxu0 %v57
  %887 = vmatpush.msra.mxu0 %v54
  %888 = vmatmul.f32.gmra.mxu0 %v867
  %v889 = vpop.f32.mrf.mxu0
  %v890 = vadd.f32 0.0, %v889
  %891 = vdwg.mxu0
  %892 = vmatpush.msra.mxu0 %v100
  %893 = vmatpush.msra.mxu0 %v97
  %894 = vmatpush.msra.mxu0 %v94
  %895 = vmatpush.msra.mxu0 %v91
  %896 = vmatpush.msra.mxu0 %v88
  %897 = vmatpush.msra.mxu0 %v85
  %898 = vmatpush.msra.mxu0 %v82
  %899 = vmatpush.msra.mxu0 %v79
  %900 = vmatpush.msra.mxu0 %v76
  %901 = vmatpush.msra.mxu0 %v73
  %902 = vmatpush.msra.mxu0 %v70
  %903 = vmatpush.msra.mxu0 %v67
  %904 = vmatpush.msra.mxu0 %v64
  %905 = vmatpush.msra.mxu0 %v61
  %906 = vmatpush.msra.mxu0 %v58
  %907 = vmatpush.msra.mxu0 %v55
  %908 = vmatmul.f32.gmra.mxu0 %v867
  %v909 = vpop.f32.mrf.mxu0
  %v910 = vadd.f32 0.0, %v909
  %911 = vdwg.mxu0
  %912 = vmatpush.msra.mxu0 %v101
  %913 = vmatpush.msra.mxu0 %v98
  %914 = vmatpush.msra.mxu0 %v95
  %915 = vmatpush.msra.mxu0 %v92
  %916 = vmatpush.msra.mxu0 %v89
  %917 = vmatpush.msra.mxu0 %v86
  %918 = vmatpush.msra.mxu0 %v83
  %919 = vmatpush.msra.mxu0 %v80
  %920 = vmatpush.msra.mxu0 %v77
  %921 = vmatpush.msra.mxu0 %v74
  %922 = vmatpush.msra.mxu0 %v71
  %923 = vmatpush.msra.mxu0 %v68
  %924 = vmatpush.msra.mxu0 %v65
  %925 = vmatpush.msra.mxu0 %v62
  %926 = vmatpush.msra.mxu0 %v59
  %927 = vmatpush.msra.mxu0 %v56
  %928 = vmatmul.f32.gmra.mxu0 %v867
  %v929 = vpop.f32.mrf.mxu0
  %v930 = vadd.f32 0.0, %v929
  %931 = vdwg.mxu0
  %v932 = vadd.f32 %v869, %v890
  %v933 = vadd.f32 %v870, %v910
  %v934 = vxor.u32 %v932, 2147483648
  %v935 = vxor.u32 %v933, 2147483648
  %v936 = vmul.f32 %v934, 1.442695
  %v937 = vpow.pop %v936
  %v938 = vmul.f32 %v935, 1.442695
  %v939 = vpow.pop %v938
  %v940 = vadd.f32 %v937, 1.0
  %v941 = vadd.f32 %v939, 1.0
  %v942 = vrcp.pop %v940
  %v943 = vmul.f32 %v940, %v942
  %v944 = vsub.f32 1.0, %v943
  %v945 = vmul.f32 %v942, %v944
  %v946 = vadd.f32 %v942, %v945
  %vm947 = vweird.f32 %v940
  %vm948 = vweird.f32 %v942
  %vm949 = vmor %vm947, %vm948
  %v950 = vsel %vm949, %v942, %v946
  %v951 = vand.u32 2147483647, %v940
  %vm952 = vcmp.eq.f32.partialorder %v951, 8.507059e+37
  %v953 = vand.u32 %v940, 2147483648
  %v954 = vor.u32 1.1754944e-38, %v953
  %v955 = vsel %vm952, %v954, %v950
  %v956 = vmul.f32 1.0, %v955
  %v957 = vrcp.pop %v941
  %v958 = vmul.f32 %v941, %v957
  %v959 = vsub.f32 1.0, %v958
  %v960 = vmul.f32 %v957, %v959
  %v961 = vadd.f32 %v957, %v960
  %vm962 = vweird.f32 %v941
  %vm963 = vweird.f32 %v957
  %vm964 = vmor %vm962, %vm963
  %v965 = vsel %vm964, %v957, %v961
  %v966 = vand.u32 2147483647, %v941
  %vm967 = vcmp.eq.f32.partialorder %v966, 8.507059e+37
  %v968 = vand.u32 %v941, 2147483648
  %v969 = vor.u32 1.1754944e-38, %v968
  %v970 = vsel %vm967, %v969, %v965
  %v971 = vmul.f32 1.0, %v970
  %v972 = vadd.f32 %v930, %v105
  %v973 = vmul.f32 %v956, %v972
  %v974 = vadd.f32 %v871, %v973
  %v975 = vtanh.pop %v974
  %v976 = vsub.f32 1.0, %v971
  %v977 = vmul.f32 %v976, %v975
  %v978 = vmul.f32 %v971, %v867
  %v979 = vadd.f32 %v977, %v978
  %980 = vst [vmem:[#allocation2 + $0x28] sm:$0xff] %v979
  %v981 = vld [vmem:[#allocation3 + $0x90] sm:$0xff]
  %v982 = vld [vmem:[#allocation3 + $0x98] sm:$0xff]
  %v983 = vld [vmem:[#allocation3 + $0xa0] sm:$0xff]
  %984 = vmatpush.msra.mxu0 %v99
  %985 = vmatpush.msra.mxu0 %v96
  %986 = vmatpush.msra.mxu0 %v93
  %987 = vmatpush.msra.mxu0 %v90
  %988 = vmatpush.msra.mxu0 %v87
  %989 = vmatpush.msra.mxu0 %v84
  %990 = vmatpush.msra.mxu0 %v81
  %991 = vmatpush.msra.mxu0 %v78
  %992 = vmatpush.msra.mxu0 %v75
  %993 = vmatpush.msra.mxu0 %v72
  %994 = vmatpush.msra.mxu0 %v69
  %995 = vmatpush.msra.mxu0 %v66
  %996 = vmatpush.msra.mxu0 %v63
  %997 = vmatpush.msra.mxu0 %v60
  %998 = vmatpush.msra.mxu0 %v57
  %999 = vmatpush.msra.mxu0 %v54
  %1000 = vmatmul.f32.gmra.mxu0 %v979
  %v1001 = vpop.f32.mrf.mxu0
  %v1002 = vadd.f32 0.0, %v1001
  %1003 = vdwg.mxu0
  %1004 = vmatpush.msra.mxu0 %v100
  %1005 = vmatpush.msra.mxu0 %v97
  %1006 = vmatpush.msra.mxu0 %v94
  %1007 = vmatpush.msra.mxu0 %v91
  %1008 = vmatpush.msra.mxu0 %v88
  %1009 = vmatpush.msra.mxu0 %v85
  %1010 = vmatpush.msra.mxu0 %v82
  %1011 = vmatpush.msra.mxu0 %v79
  %1012 = vmatpush.msra.mxu0 %v76
  %1013 = vmatpush.msra.mxu0 %v73
  %1014 = vmatpush.msra.mxu0 %v70
  %1015 = vmatpush.msra.mxu0 %v67
  %1016 = vmatpush.msra.mxu0 %v64
  %1017 = vmatpush.msra.mxu0 %v61
  %1018 = vmatpush.msra.mxu0 %v58
  %1019 = vmatpush.msra.mxu0 %v55
  %1020 = vmatmul.f32.gmra.mxu0 %v979
  %v1021 = vpop.f32.mrf.mxu0
  %v1022 = vadd.f32 0.0, %v1021
  %1023 = vdwg.mxu0
  %1024 = vmatpush.msra.mxu0 %v101
  %1025 = vmatpush.msra.mxu0 %v98
  %1026 = vmatpush.msra.mxu0 %v95
  %1027 = vmatpush.msra.mxu0 %v92
  %1028 = vmatpush.msra.mxu0 %v89
  %1029 = vmatpush.msra.mxu0 %v86
  %1030 = vmatpush.msra.mxu0 %v83
  %1031 = vmatpush.msra.mxu0 %v80
  %1032 = vmatpush.msra.mxu0 %v77
  %1033 = vmatpush.msra.mxu0 %v74
  %1034 = vmatpush.msra.mxu0 %v71
  %1035 = vmatpush.msra.mxu0 %v68
  %1036 = vmatpush.msra.mxu0 %v65
  %1037 = vmatpush.msra.mxu0 %v62
  %1038 = vmatpush.msra.mxu0 %v59
  %1039 = vmatpush.msra.mxu0 %v56
  %1040 = vmatmul.f32.gmra.mxu0 %v979
  %v1041 = vpop.f32.mrf.mxu0
  %v1042 = vadd.f32 0.0, %v1041
  %1043 = vdwg.mxu0
  %v1044 = vadd.f32 %v981, %v1002
  %v1045 = vadd.f32 %v982, %v1022
  %v1046 = vxor.u32 %v1044, 2147483648
  %v1047 = vxor.u32 %v1045, 2147483648
  %v1048 = vmul.f32 %v1046, 1.442695
  %v1049 = vpow.pop %v1048
  %v1050 = vmul.f32 %v1047, 1.442695
  %v1051 = vpow.pop %v1050
  %v1052 = vadd.f32 %v1049, 1.0
  %v1053 = vadd.f32 %v1051, 1.0
  %v1054 = vrcp.pop %v1052
  %v1055 = vmul.f32 %v1052, %v1054
  %v1056 = vsub.f32 1.0, %v1055
  %v1057 = vmul.f32 %v1054, %v1056
  %v1058 = vadd.f32 %v1054, %v1057
  %vm1059 = vweird.f32 %v1052
  %vm1060 = vweird.f32 %v1054
  %vm1061 = vmor %vm1059, %vm1060
  %v1062 = vsel %vm1061, %v1054, %v1058
  %v1063 = vand.u32 2147483647, %v1052
  %vm1064 = vcmp.eq.f32.partialorder %v1063, 8.507059e+37
  %v1065 = vand.u32 %v1052, 2147483648
  %v1066 = vor.u32 1.1754944e-38, %v1065
  %v1067 = vsel %vm1064, %v1066, %v1062
  %v1068 = vmul.f32 1.0, %v1067
  %v1069 = vrcp.pop %v1053
  %v1070 = vmul.f32 %v1053, %v1069
  %v1071 = vsub.f32 1.0, %v1070
  %v1072 = vmul.f32 %v1069, %v1071
  %v1073 = vadd.f32 %v1069, %v1072
  %vm1074 = vweird.f32 %v1053
  %vm1075 = vweird.f32 %v1069
  %vm1076 = vmor %vm1074, %vm1075
  %v1077 = vsel %vm1076, %v1069, %v1073
  %v1078 = vand.u32 2147483647, %v1053
  %vm1079 = vcmp.eq.f32.partialorder %v1078, 8.507059e+37
  %v1080 = vand.u32 %v1053, 2147483648
  %v1081 = vor.u32 1.1754944e-38, %v1080
  %v1082 = vsel %vm1079, %v1081, %v1077
  %v1083 = vmul.f32 1.0, %v1082
  %v1084 = vadd.f32 %v1042, %v105
  %v1085 = vmul.f32 %v1068, %v1084
  %v1086 = vadd.f32 %v983, %v1085
  %v1087 = vtanh.pop %v1086
  %v1088 = vsub.f32 1.0, %v1083
  %v1089 = vmul.f32 %v1088, %v1087
  %v1090 = vmul.f32 %v1083, %v979
  %v1091 = vadd.f32 %v1089, %v1090
  %1092 = vst [vmem:[#allocation2 + $0x30] sm:$0xff] %v1091
  %v1093 = vld [vmem:[#allocation3 + $0xa8] sm:$0xff]
  %v1094 = vld [vmem:[#allocation3 + $0xb0] sm:$0xff]
  %v1095 = vld [vmem:[#allocation3 + $0xb8] sm:$0xff]
  %1096 = vmatpush.msra.mxu0 %v99
  %1097 = vmatpush.msra.mxu0 %v96
  %1098 = vmatpush.msra.mxu0 %v93
  %1099 = vmatpush.msra.mxu0 %v90
  %1100 = vmatpush.msra.mxu0 %v87
  %1101 = vmatpush.msra.mxu0 %v84
  %1102 = vmatpush.msra.mxu0 %v81
  %1103 = vmatpush.msra.mxu0 %v78
  %1104 = vmatpush.msra.mxu0 %v75
  %1105 = vmatpush.msra.mxu0 %v72
  %1106 = vmatpush.msra.mxu0 %v69
  %1107 = vmatpush.msra.mxu0 %v66
  %1108 = vmatpush.msra.mxu0 %v63
  %1109 = vmatpush.msra.mxu0 %v60
  %1110 = vmatpush.msra.mxu0 %v57
  %1111 = vmatpush.msra.mxu0 %v54
  %1112 = vmatmul.f32.gmra.mxu0 %v1091
  %v1113 = vpop.f32.mrf.mxu0
  %v1114 = vadd.f32 0.0, %v1113
  %1115 = vdwg.mxu0
  %1116 = vmatpush.msra.mxu0 %v100
  %1117 = vmatpush.msra.mxu0 %v97
  %1118 = vmatpush.msra.mxu0 %v94
  %1119 = vmatpush.msra.mxu0 %v91
  %1120 = vmatpush.msra.mxu0 %v88
  %1121 = vmatpush.msra.mxu0 %v85
  %1122 = vmatpush.msra.mxu0 %v82
  %1123 = vmatpush.msra.mxu0 %v79
  %1124 = vmatpush.msra.mxu0 %v76
  %1125 = vmatpush.msra.mxu0 %v73
  %1126 = vmatpush.msra.mxu0 %v70
  %1127 = vmatpush.msra.mxu0 %v67
  %1128 = vmatpush.msra.mxu0 %v64
  %1129 = vmatpush.msra.mxu0 %v61
  %1130 = vmatpush.msra.mxu0 %v58
  %1131 = vmatpush.msra.mxu0 %v55
  %1132 = vmatmul.f32.gmra.mxu0 %v1091
  %v1133 = vpop.f32.mrf.mxu0
  %v1134 = vadd.f32 0.0, %v1133
  %1135 = vdwg.mxu0
  %1136 = vmatpush.msra.mxu0 %v101
  %1137 = vmatpush.msra.mxu0 %v98
  %1138 = vmatpush.msra.mxu0 %v95
  %1139 = vmatpush.msra.mxu0 %v92
  %1140 = vmatpush.msra.mxu0 %v89
  %1141 = vmatpush.msra.mxu0 %v86
  %1142 = vmatpush.msra.mxu0 %v83
  %1143 = vmatpush.msra.mxu0 %v80
  %1144 = vmatpush.msra.mxu0 %v77
  %1145 = vmatpush.msra.mxu0 %v74
  %1146 = vmatpush.msra.mxu0 %v71
  %1147 = vmatpush.msra.mxu0 %v68
  %1148 = vmatpush.msra.mxu0 %v65
  %1149 = vmatpush.msra.mxu0 %v62
  %1150 = vmatpush.msra.mxu0 %v59
  %1151 = vmatpush.msra.mxu0 %v56
  %1152 = vmatmul.f32.gmra.mxu0 %v1091
  %v1153 = vpop.f32.mrf.mxu0
  %v1154 = vadd.f32 0.0, %v1153
  %1155 = vdwg.mxu0
  %v1156 = vadd.f32 %v1093, %v1114
  %v1157 = vadd.f32 %v1094, %v1134
  %v1158 = vxor.u32 %v1156, 2147483648
  %v1159 = vxor.u32 %v1157, 2147483648
  %v1160 = vmul.f32 %v1158, 1.442695
  %v1161 = vpow.pop %v1160
  %v1162 = vmul.f32 %v1159, 1.442695
  %v1163 = vpow.pop %v1162
  %v1164 = vadd.f32 %v1161, 1.0
  %v1165 = vadd.f32 %v1163, 1.0
  %v1166 = vrcp.pop %v1164
  %v1167 = vmul.f32 %v1164, %v1166
  %v1168 = vsub.f32 1.0, %v1167
  %v1169 = vmul.f32 %v1166, %v1168
  %v1170 = vadd.f32 %v1166, %v1169
  %vm1171 = vweird.f32 %v1164
  %vm1172 = vweird.f32 %v1166
  %vm1173 = vmor %vm1171, %vm1172
  %v1174 = vsel %vm1173, %v1166, %v1170
  %v1175 = vand.u32 2147483647, %v1164
  %vm1176 = vcmp.eq.f32.partialorder %v1175, 8.507059e+37
  %v1177 = vand.u32 %v1164, 2147483648
  %v1178 = vor.u32 1.1754944e-38, %v1177
  %v1179 = vsel %vm1176, %v1178, %v1174
  %v1180 = vmul.f32 1.0, %v1179
  %v1181 = vrcp.pop %v1165
  %v1182 = vmul.f32 %v1165, %v1181
  %v1183 = vsub.f32 1.0, %v1182
  %v1184 = vmul.f32 %v1181, %v1183
  %v1185 = vadd.f32 %v1181, %v1184
  %vm1186 = vweird.f32 %v1165
  %vm1187 = vweird.f32 %v1181
  %vm1188 = vmor %vm1186, %vm1187
  %v1189 = vsel %vm1188, %v1181, %v1185
  %v1190 = vand.u32 2147483647, %v1165
  %vm1191 = vcmp.eq.f32.partialorder %v1190, 8.507059e+37
  %v1192 = vand.u32 %v1165, 2147483648
  %v1193 = vor.u32 1.1754944e-38, %v1192
  %v1194 = vsel %vm1191, %v1193, %v1189
  %v1195 = vmul.f32 1.0, %v1194
  %v1196 = vadd.f32 %v1154, %v105
  %v1197 = vmul.f32 %v1180, %v1196
  %v1198 = vadd.f32 %v1095, %v1197
  %v1199 = vtanh.pop %v1198
  %v1200 = vsub.f32 1.0, %v1195
  %v1201 = vmul.f32 %v1200, %v1199
  %v1202 = vmul.f32 %v1195, %v1091
  %v1203 = vadd.f32 %v1201, %v1202
  %1204 = vst [vmem:[#allocation2 + $0x38] sm:$0xff] %v1203
  %v1205 = vld [vmem:[%s5] sm:$0xff]
  %v1206 = vld [vmem:[%s5 + $0x8] sm:$0xff]
  %v1207 = vld [vmem:[%s5 + $0x10] sm:$0xff]
  %v1208 = vld [vmem:[%s5 + $0x18] sm:$0xff]
  %v1209 = vld [vmem:[%s5 + $0x20] sm:$0xff]
  %v1210 = vld [vmem:[%s5 + $0x28] sm:$0xff]
  %v1211 = vld [vmem:[%s5 + $0x30] sm:$0xff]
  %v1212 = vld [vmem:[%s5 + $0x38] sm:$0xff]
  %v1213 = vld [vmem:[%s5 + $0x40] sm:$0xff]
  %v1214 = vld [vmem:[%s5 + $0x48] sm:$0xff]
  %v1215 = vld [vmem:[%s5 + $0x50] sm:$0xff]
  %v1216 = vld [vmem:[%s5 + $0x58] sm:$0xff]
  %v1217 = vld [vmem:[%s5 + $0x60] sm:$0xff]
  %v1218 = vld [vmem:[%s5 + $0x68] sm:$0xff]
  %v1219 = vld [vmem:[%s5 + $0x70] sm:$0xff]
  %v1220 = vld [vmem:[%s5 + $0x78] sm:$0xff]
  %v1221 = vld [vmem:[%s5 + $0x80] sm:$0xff]
  %v1222 = vld [vmem:[%s5 + $0x88] sm:$0xff]
  %v1223 = vld [vmem:[%s5 + $0x90] sm:$0xff]
  %v1224 = vld [vmem:[%s5 + $0x98] sm:$0xff]
  %v1225 = vld [vmem:[%s5 + $0xa0] sm:$0xff]
  %v1226 = vld [vmem:[%s5 + $0xa8] sm:$0xff]
  %v1227 = vld [vmem:[%s5 + $0xb0] sm:$0xff]
  %v1228 = vld [vmem:[%s5 + $0xb8] sm:$0xff]
  %v1229 = vld [vmem:[%s5 + $0xc0] sm:$0xff]
  %v1230 = vld [vmem:[%s5 + $0xc8] sm:$0xff]
  %v1231 = vld [vmem:[%s5 + $0xd0] sm:$0xff]
  %v1232 = vld [vmem:[%s5 + $0xd8] sm:$0xff]
  %v1233 = vld [vmem:[%s5 + $0xe0] sm:$0xff]
  %v1234 = vld [vmem:[%s5 + $0xe8] sm:$0xff]
  %v1235 = vld [vmem:[%s5 + $0xf0] sm:$0xff]
  %v1236 = vld [vmem:[%s5 + $0xf8] sm:$0xff]
  %v1237 = vld [vmem:[%s5 + $0x100] sm:$0xff]
  %v1238 = vld [vmem:[%s5 + $0x108] sm:$0xff]
  %v1239 = vld [vmem:[%s5 + $0x110] sm:$0xff]
  %v1240 = vld [vmem:[%s5 + $0x118] sm:$0xff]
  %v1241 = vld [vmem:[%s5 + $0x120] sm:$0xff]
  %v1242 = vld [vmem:[%s5 + $0x128] sm:$0xff]
  %v1243 = vld [vmem:[%s5 + $0x130] sm:$0xff]
  %v1244 = vld [vmem:[%s5 + $0x138] sm:$0xff]
  %v1245 = vld [vmem:[%s5 + $0x140] sm:$0xff]
  %v1246 = vld [vmem:[%s5 + $0x148] sm:$0xff]
  %v1247 = vld [vmem:[%s5 + $0x150] sm:$0xff]
  %v1248 = vld [vmem:[%s5 + $0x158] sm:$0xff]
  %v1249 = vld [vmem:[%s5 + $0x160] sm:$0xff]
  %v1250 = vld [vmem:[%s5 + $0x168] sm:$0xff]
  %v1251 = vld [vmem:[%s5 + $0x170] sm:$0xff]
  %v1252 = vld [vmem:[%s5 + $0x178] sm:$0xff]
  %v1253 = vld [vmem:[%s6] sm:$0xff]
  %v1254 = vld [vmem:[%s6 + $0x8] sm:$0xff]
  %v1255 = vld [vmem:[%s6 + $0x10] sm:$0xff]
  %v1256 = vld [vmem:[%s6 + $0x18] sm:$0xff]
  %v1257 = vld [vmem:[%s6 + $0x20] sm:$0xff]
  %v1258 = vld [vmem:[%s6 + $0x28] sm:$0xff]
  %v1259 = vld [vmem:[%s6 + $0x30] sm:$0xff]
  %v1260 = vld [vmem:[%s6 + $0x38] sm:$0xff]
  %v1261 = vld [vmem:[%s6 + $0x40] sm:$0xff]
  %v1262 = vld [vmem:[%s6 + $0x48] sm:$0xff]
  %v1263 = vld [vmem:[%s6 + $0x50] sm:$0xff]
  %v1264 = vld [vmem:[%s6 + $0x58] sm:$0xff]
  %v1265 = vld [vmem:[%s6 + $0x60] sm:$0xff]
  %v1266 = vld [vmem:[%s6 + $0x68] sm:$0xff]
  %v1267 = vld [vmem:[%s6 + $0x70] sm:$0xff]
  %v1268 = vld [vmem:[%s6 + $0x78] sm:$0xff]
  %v1269 = vld [vmem:[%s6 + $0x80] sm:$0xff]
  %v1270 = vld [vmem:[%s6 + $0x88] sm:$0xff]
  %v1271 = vld [vmem:[%s6 + $0x90] sm:$0xff]
  %v1272 = vld [vmem:[%s6 + $0x98] sm:$0xff]
  %v1273 = vld [vmem:[%s6 + $0xa0] sm:$0xff]
  %v1274 = vld [vmem:[%s6 + $0xa8] sm:$0xff]
  %v1275 = vld [vmem:[%s6 + $0xb0] sm:$0xff]
  %v1276 = vld [vmem:[%s6 + $0xb8] sm:$0xff]
  %v1277 = vld [vmem:[%s6 + $0xc0] sm:$0xff]
  %v1278 = vld [vmem:[%s6 + $0xc8] sm:$0xff]
  %v1279 = vld [vmem:[%s6 + $0xd0] sm:$0xff]
  %v1280 = vld [vmem:[%s6 + $0xd8] sm:$0xff]
  %v1281 = vld [vmem:[%s6 + $0xe0] sm:$0xff]
  %v1282 = vld [vmem:[%s6 + $0xe8] sm:$0xff]
  %v1283 = vld [vmem:[%s6 + $0xf0] sm:$0xff]
  %v1284 = vld [vmem:[%s6 + $0xf8] sm:$0xff]
  %v1285 = vld [vmem:[%s6 + $0x100] sm:$0xff]
  %v1286 = vld [vmem:[%s6 + $0x108] sm:$0xff]
  %v1287 = vld [vmem:[%s6 + $0x110] sm:$0xff]
  %v1288 = vld [vmem:[%s6 + $0x118] sm:$0xff]
  %v1289 = vld [vmem:[%s6 + $0x120] sm:$0xff]
  %v1290 = vld [vmem:[%s6 + $0x128] sm:$0xff]
  %v1291 = vld [vmem:[%s6 + $0x130] sm:$0xff]
  %v1292 = vld [vmem:[%s6 + $0x138] sm:$0xff]
  %v1293 = vld [vmem:[%s6 + $0x140] sm:$0xff]
  %v1294 = vld [vmem:[%s6 + $0x148] sm:$0xff]
  %v1295 = vld [vmem:[%s6 + $0x150] sm:$0xff]
  %v1296 = vld [vmem:[%s6 + $0x158] sm:$0xff]
  %v1297 = vld [vmem:[%s6 + $0x160] sm:$0xff]
  %v1298 = vld [vmem:[%s6 + $0x168] sm:$0xff]
  %v1299 = vld [vmem:[%s6 + $0x170] sm:$0xff]
  %v1300 = vld [vmem:[%s6 + $0x178] sm:$0xff]
  %v1301 = vld [vmem:[%s7] sm:$0x7]
  %v1302 = vld [vmem:[%s8] sm:$0x1]
  %v1304 = vperm.slane %v1302, 0
  %v1306 = vld [vmem:[#allocation2] sm:$0xff]
  %v1307 = vld [vmem:[#allocation2 + $0x8] sm:$0xff]
  %v1308 = vld [vmem:[#allocation2 + $0x10] sm:$0xff]
  %v1309 = vld [vmem:[#allocation2 + $0x18] sm:$0xff]
  %v1310 = vld [vmem:[#allocation2 + $0x20] sm:$0xff]
  %v1311 = vld [vmem:[#allocation2 + $0x28] sm:$0xff]
  %v1312 = vld [vmem:[#allocation2 + $0x30] sm:$0xff]
  %v1313 = vld [vmem:[#allocation2 + $0x38] sm:$0xff]
  %v1315 = vperm.slane %v1301, 0
  %v1316 = vperm.slane %v1301, 1
  %v1317 = vperm.slane %v1301, 2
  %1321 = vmatpush.msra.mxu0 %v1250
  %1322 = vmatpush.msra.mxu0 %v1247
  %1323 = vmatpush.msra.mxu0 %v1244
  %1324 = vmatpush.msra.mxu0 %v1241
  %1325 = vmatpush.msra.mxu0 %v1238
  %1326 = vmatpush.msra.mxu0 %v1235
  %1327 = vmatpush.msra.mxu0 %v1232
  %1328 = vmatpush.msra.mxu0 %v1229
  %1329 = vmatpush.msra.mxu0 %v1226
  %1330 = vmatpush.msra.mxu0 %v1223
  %1331 = vmatpush.msra.mxu0 %v1220
  %1332 = vmatpush.msra.mxu0 %v1217
  %1333 = vmatpush.msra.mxu0 %v1214
  %1334 = vmatpush.msra.mxu0 %v1211
  %1335 = vmatpush.msra.mxu0 %v1208
  %1336 = vmatpush.msra.mxu0 %v1205
  %1337 = vmatmul.f32.gmra.mxu0 %v1306
  %v1338 = vpop.f32.mrf.mxu0
  %v1339 = vadd.f32 %v1315, %v1338
  %1340 = vmatmul.f32.gmra.mxu0 %v1307
  %v1341 = vpop.f32.mrf.mxu0
  %v1342 = vadd.f32 %v1315, %v1341
  %1343 = vmatmul.f32.gmra.mxu0 %v1308
  %v1344 = vpop.f32.mrf.mxu0
  %v1345 = vadd.f32 %v1315, %v1344
  %1346 = vmatmul.f32.gmra.mxu0 %v1309
  %v1347 = vpop.f32.mrf.mxu0
  %v1348 = vadd.f32 %v1315, %v1347
  %1349 = vmatmul.f32.gmra.mxu0 %v1310
  %v1350 = vpop.f32.mrf.mxu0
  %v1351 = vadd.f32 %v1315, %v1350
  %1352 = vmatmul.f32.gmra.mxu0 %v1311
  %v1353 = vpop.f32.mrf.mxu0
  %v1354 = vadd.f32 %v1315, %v1353
  %1355 = vmatmul.f32.gmra.mxu0 %v1312
  %v1356 = vpop.f32.mrf.mxu0
  %v1357 = vadd.f32 %v1315, %v1356
  %1358 = vmatmul.f32.gmra.mxu0 %v1313
  %v1359 = vpop.f32.mrf.mxu0
  %v1360 = vadd.f32 %v1315, %v1359
  %1361 = vdwg.mxu0
  %1362 = vmatpush.msra.mxu0 %v1251
  %1363 = vmatpush.msra.mxu0 %v1248
  %1364 = vmatpush.msra.mxu0 %v1245
  %1365 = vmatpush.msra.mxu0 %v1242
  %1366 = vmatpush.msra.mxu0 %v1239
  %1367 = vmatpush.msra.mxu0 %v1236
  %1368 = vmatpush.msra.mxu0 %v1233
  %1369 = vmatpush.msra.mxu0 %v1230
  %1370 = vmatpush.msra.mxu0 %v1227
  %1371 = vmatpush.msra.mxu0 %v1224
  %1372 = vmatpush.msra.mxu0 %v1221
  %1373 = vmatpush.msra.mxu0 %v1218
  %1374 = vmatpush.msra.mxu0 %v1215
  %1375 = vmatpush.msra.mxu0 %v1212
  %1376 = vmatpush.msra.mxu0 %v1209
  %1377 = vmatpush.msra.mxu0 %v1206
  %1378 = vmatmul.f32.gmra.mxu0 %v1306
  %v1379 = vpop.f32.mrf.mxu0
  %v1380 = vadd.f32 %v1316, %v1379
  %1381 = vmatmul.f32.gmra.mxu0 %v1307
  %v1382 = vpop.f32.mrf.mxu0
  %v1383 = vadd.f32 %v1316, %v1382
  %1384 = vmatmul.f32.gmra.mxu0 %v1308
  %v1385 = vpop.f32.mrf.mxu0
  %v1386 = vadd.f32 %v1316, %v1385
  %1387 = vmatmul.f32.gmra.mxu0 %v1309
  %v1388 = vpop.f32.mrf.mxu0
  %v1389 = vadd.f32 %v1316, %v1388
  %1390 = vmatmul.f32.gmra.mxu0 %v1310
  %v1391 = vpop.f32.mrf.mxu0
  %v1392 = vadd.f32 %v1316, %v1391
  %1393 = vmatmul.f32.gmra.mxu0 %v1311
  %v1394 = vpop.f32.mrf.mxu0
  %v1395 = vadd.f32 %v1316, %v1394
  %1396 = vmatmul.f32.gmra.mxu0 %v1312
  %v1397 = vpop.f32.mrf.mxu0
  %v1398 = vadd.f32 %v1316, %v1397
  %1399 = vmatmul.f32.gmra.mxu0 %v1313
  %v1400 = vpop.f32.mrf.mxu0
  %v1401 = vadd.f32 %v1316, %v1400
  %1402 = vdwg.mxu0
  %1403 = vmatpush.msra.mxu0 %v1252
  %1404 = vmatpush.msra.mxu0 %v1249
  %1405 = vmatpush.msra.mxu0 %v1246
  %1406 = vmatpush.msra.mxu0 %v1243
  %1407 = vmatpush.msra.mxu0 %v1240
  %1408 = vmatpush.msra.mxu0 %v1237
  %1409 = vmatpush.msra.mxu0 %v1234
  %1410 = vmatpush.msra.mxu0 %v1231
  %1411 = vmatpush.msra.mxu0 %v1228
  %1412 = vmatpush.msra.mxu0 %v1225
  %1413 = vmatpush.msra.mxu0 %v1222
  %1414 = vmatpush.msra.mxu0 %v1219
  %1415 = vmatpush.msra.mxu0 %v1216
  %1416 = vmatpush.msra.mxu0 %v1213
  %1417 = vmatpush.msra.mxu0 %v1210
  %1418 = vmatpush.msra.mxu0 %v1207
  %1419 = vmatmul.f32.gmra.mxu0 %v1306
  %v1420 = vpop.f32.mrf.mxu0
  %v1421 = vadd.f32 %v1317, %v1420
  %1422 = vmatmul.f32.gmra.mxu0 %v1307
  %v1423 = vpop.f32.mrf.mxu0
  %v1424 = vadd.f32 %v1317, %v1423
  %1425 = vmatmul.f32.gmra.mxu0 %v1308
  %v1426 = vpop.f32.mrf.mxu0
  %v1427 = vadd.f32 %v1317, %v1426
  %1428 = vmatmul.f32.gmra.mxu0 %v1309
  %v1429 = vpop.f32.mrf.mxu0
  %v1430 = vadd.f32 %v1317, %v1429
  %1431 = vmatmul.f32.gmra.mxu0 %v1310
  %v1432 = vpop.f32.mrf.mxu0
  %v1433 = vadd.f32 %v1317, %v1432
  %1434 = vmatmul.f32.gmra.mxu0 %v1311
  %v1435 = vpop.f32.mrf.mxu0
  %v1436 = vadd.f32 %v1317, %v1435
  %1437 = vmatmul.f32.gmra.mxu0 %v1312
  %v1438 = vpop.f32.mrf.mxu0
  %v1439 = vadd.f32 %v1317, %v1438
  %1440 = vmatmul.f32.gmra.mxu0 %v1313
  %v1441 = vpop.f32.mrf.mxu0
  %v1442 = vadd.f32 %v1317, %v1441
  %1443 = vdwg.mxu0
  %1444 = vst [vmem:[#allocation3] sm:$0xff] %v1339
  %1445 = vst [vmem:[#allocation3 + $0x8] sm:$0xff] %v1380
  %1446 = vst [vmem:[#allocation3 + $0x10] sm:$0xff] %v1421
  %1447 = vst [vmem:[#allocation3 + $0x18] sm:$0xff] %v1342
  %1448 = vst [vmem:[#allocation3 + $0x20] sm:$0xff] %v1383
  %1449 = vst [vmem:[#allocation3 + $0x28] sm:$0xff] %v1424
  %1450 = vst [vmem:[#allocation3 + $0x30] sm:$0xff] %v1345
  %1451 = vst [vmem:[#allocation3 + $0x38] sm:$0xff] %v1386
  %1452 = vst [vmem:[#allocation3 + $0x40] sm:$0xff] %v1427
  %1453 = vst [vmem:[#allocation3 + $0x48] sm:$0xff] %v1348
  %1454 = vst [vmem:[#allocation3 + $0x50] sm:$0xff] %v1389
  %1455 = vst [vmem:[#allocation3 + $0x58] sm:$0xff] %v1430
  %1456 = vst [vmem:[#allocation3 + $0x60] sm:$0xff] %v1351
  %1457 = vst [vmem:[#allocation3 + $0x68] sm:$0xff] %v1392
  %1458 = vst [vmem:[#allocation3 + $0x70] sm:$0xff] %v1433
  %1459 = vst [vmem:[#allocation3 + $0x78] sm:$0xff] %v1354
  %1460 = vst [vmem:[#allocation3 + $0x80] sm:$0xff] %v1395
  %1461 = vst [vmem:[#allocation3 + $0x88] sm:$0xff] %v1436
  %1462 = vst [vmem:[#allocation3 + $0x90] sm:$0xff] %v1357
  %1463 = vst [vmem:[#allocation3 + $0x98] sm:$0xff] %v1398
  %1464 = vst [vmem:[#allocation3 + $0xa0] sm:$0xff] %v1439
  %1465 = vst [vmem:[#allocation3 + $0xa8] sm:$0xff] %v1360
  %1466 = vst [vmem:[#allocation3 + $0xb0] sm:$0xff] %v1401
  %1467 = vst [vmem:[#allocation3 + $0xb8] sm:$0xff] %v1442
  %v1468 = vld [vmem:[#allocation3] sm:$0xff]
  %v1469 = vld [vmem:[#allocation3 + $0x8] sm:$0xff]
  %v1470 = vld [vmem:[#allocation3 + $0x10] sm:$0xff]
  %1471 = vmatpush.msra.mxu0 %v1298
  %1472 = vmatpush.msra.mxu0 %v1295
  %1473 = vmatpush.msra.mxu0 %v1292
  %1474 = vmatpush.msra.mxu0 %v1289
  %1475 = vmatpush.msra.mxu0 %v1286
  %1476 = vmatpush.msra.mxu0 %v1283
  %1477 = vmatpush.msra.mxu0 %v1280
  %1478 = vmatpush.msra.mxu0 %v1277
  %1479 = vmatpush.msra.mxu0 %v1274
  %1480 = vmatpush.msra.mxu0 %v1271
  %1481 = vmatpush.msra.mxu0 %v1268
  %1482 = vmatpush.msra.mxu0 %v1265
  %1483 = vmatpush.msra.mxu0 %v1262
  %1484 = vmatpush.msra.mxu0 %v1259
  %1485 = vmatpush.msra.mxu0 %v1256
  %1486 = vmatpush.msra.mxu0 %v1253
  %1487 = vmatmul.f32.gmra.mxu0 0.0
  %v1488 = vpop.f32.mrf.mxu0
  %v1489 = vadd.f32 0.0, %v1488
  %1490 = vdwg.mxu0
  %1491 = vmatpush.msra.mxu0 %v1299
  %1492 = vmatpush.msra.mxu0 %v1296
  %1493 = vmatpush.msra.mxu0 %v1293
  %1494 = vmatpush.msra.mxu0 %v1290
  %1495 = vmatpush.msra.mxu0 %v1287
  %1496 = vmatpush.msra.mxu0 %v1284
  %1497 = vmatpush.msra.mxu0 %v1281
  %1498 = vmatpush.msra.mxu0 %v1278
  %1499 = vmatpush.msra.mxu0 %v1275
  %1500 = vmatpush.msra.mxu0 %v1272
  %1501 = vmatpush.msra.mxu0 %v1269
  %1502 = vmatpush.msra.mxu0 %v1266
  %1503 = vmatpush.msra.mxu0 %v1263
  %1504 = vmatpush.msra.mxu0 %v1260
  %1505 = vmatpush.msra.mxu0 %v1257
  %1506 = vmatpush.msra.mxu0 %v1254
  %1507 = vmatmul.f32.gmra.mxu0 0.0
  %v1508 = vpop.f32.mrf.mxu0
  %v1509 = vadd.f32 0.0, %v1508
  %1510 = vdwg.mxu0
  %1511 = vmatpush.msra.mxu0 %v1300
  %1512 = vmatpush.msra.mxu0 %v1297
  %1513 = vmatpush.msra.mxu0 %v1294
  %1514 = vmatpush.msra.mxu0 %v1291
  %1515 = vmatpush.msra.mxu0 %v1288
  %1516 = vmatpush.msra.mxu0 %v1285
  %1517 = vmatpush.msra.mxu0 %v1282
  %1518 = vmatpush.msra.mxu0 %v1279
  %1519 = vmatpush.msra.mxu0 %v1276
  %1520 = vmatpush.msra.mxu0 %v1273
  %1521 = vmatpush.msra.mxu0 %v1270
  %1522 = vmatpush.msra.mxu0 %v1267
  %1523 = vmatpush.msra.mxu0 %v1264
  %1524 = vmatpush.msra.mxu0 %v1261
  %1525 = vmatpush.msra.mxu0 %v1258
  %1526 = vmatpush.msra.mxu0 %v1255
  %1527 = vmatmul.f32.gmra.mxu0 0.0
  %v1528 = vpop.f32.mrf.mxu0
  %v1529 = vadd.f32 0.0, %v1528
  %1530 = vdwg.mxu0
  %v1531 = vadd.f32 %v1468, %v1489
  %v1532 = vadd.f32 %v1469, %v1509
  %v1533 = vxor.u32 %v1531, 2147483648
  %v1534 = vxor.u32 %v1532, 2147483648
  %v1535 = vmul.f32 %v1533, 1.442695
  %v1536 = vpow.pop %v1535
  %v1537 = vmul.f32 %v1534, 1.442695
  %v1538 = vpow.pop %v1537
  %v1539 = vadd.f32 %v1536, 1.0
  %v1540 = vadd.f32 %v1538, 1.0
  %v1541 = vrcp.pop %v1539
  %v1542 = vmul.f32 %v1539, %v1541
  %v1543 = vsub.f32 1.0, %v1542
  %v1544 = vmul.f32 %v1541, %v1543
  %v1545 = vadd.f32 %v1541, %v1544
  %vm1546 = vweird.f32 %v1539
  %vm1547 = vweird.f32 %v1541
  %vm1548 = vmor %vm1546, %vm1547
  %v1549 = vsel %vm1548, %v1541, %v1545
  %v1550 = vand.u32 2147483647, %v1539
  %vm1551 = vcmp.eq.f32.partialorder %v1550, 8.507059e+37
  %v1552 = vand.u32 %v1539, 2147483648
  %v1553 = vor.u32 1.1754944e-38, %v1552
  %v1554 = vsel %vm1551, %v1553, %v1549
  %v1555 = vmul.f32 1.0, %v1554
  %v1556 = vrcp.pop %v1540
  %v1557 = vmul.f32 %v1540, %v1556
  %v1558 = vsub.f32 1.0, %v1557
  %v1559 = vmul.f32 %v1556, %v1558
  %v1560 = vadd.f32 %v1556, %v1559
  %vm1561 = vweird.f32 %v1540
  %vm1562 = vweird.f32 %v1556
  %vm1563 = vmor %vm1561, %vm1562
  %v1564 = vsel %vm1563, %v1556, %v1560
  %v1565 = vand.u32 2147483647, %v1540
  %vm1566 = vcmp.eq.f32.partialorder %v1565, 8.507059e+37
  %v1567 = vand.u32 %v1540, 2147483648
  %v1568 = vor.u32 1.1754944e-38, %v1567
  %v1569 = vsel %vm1566, %v1568, %v1564
  %v1570 = vmul.f32 1.0, %v1569
  %v1571 = vadd.f32 %v1529, %v1304
  %v1572 = vmul.f32 %v1555, %v1571
  %v1573 = vadd.f32 %v1470, %v1572
  %v1574 = vtanh.pop %v1573
  %v1575 = vsub.f32 1.0, %v1570
  %v1576 = vmul.f32 %v1575, %v1574
  %v1577 = vmul.f32 %v1570, 0.0
  %v1578 = vadd.f32 %v1576, %v1577
  %v1579 = vld [vmem:[#allocation3 + $0x18] sm:$0xff]
  %v1580 = vld [vmem:[#allocation3 + $0x20] sm:$0xff]
  %v1581 = vld [vmem:[#allocation3 + $0x28] sm:$0xff]
  %1582 = vmatpush.msra.mxu0 %v1298
  %1583 = vmatpush.msra.mxu0 %v1295
  %1584 = vmatpush.msra.mxu0 %v1292
  %1585 = vmatpush.msra.mxu0 %v1289
  %1586 = vmatpush.msra.mxu0 %v1286
  %1587 = vmatpush.msra.mxu0 %v1283
  %1588 = vmatpush.msra.mxu0 %v1280
  %1589 = vmatpush.msra.mxu0 %v1277
  %1590 = vmatpush.msra.mxu0 %v1274
  %1591 = vmatpush.msra.mxu0 %v1271
  %1592 = vmatpush.msra.mxu0 %v1268
  %1593 = vmatpush.msra.mxu0 %v1265
  %1594 = vmatpush.msra.mxu0 %v1262
  %1595 = vmatpush.msra.mxu0 %v1259
  %1596 = vmatpush.msra.mxu0 %v1256
  %1597 = vmatpush.msra.mxu0 %v1253
  %1598 = vmatmul.f32.gmra.mxu0 %v1578
  %v1599 = vpop.f32.mrf.mxu0
  %v1600 = vadd.f32 0.0, %v1599
  %1601 = vdwg.mxu0
  %1602 = vmatpush.msra.mxu0 %v1299
  %1603 = vmatpush.msra.mxu0 %v1296
  %1604 = vmatpush.msra.mxu0 %v1293
  %1605 = vmatpush.msra.mxu0 %v1290
  %1606 = vmatpush.msra.mxu0 %v1287
  %1607 = vmatpush.msra.mxu0 %v1284
  %1608 = vmatpush.msra.mxu0 %v1281
  %1609 = vmatpush.msra.mxu0 %v1278
  %1610 = vmatpush.msra.mxu0 %v1275
  %1611 = vmatpush.msra.mxu0 %v1272
  %1612 = vmatpush.msra.mxu0 %v1269
  %1613 = vmatpush.msra.mxu0 %v1266
  %1614 = vmatpush.msra.mxu0 %v1263
  %1615 = vmatpush.msra.mxu0 %v1260
  %1616 = vmatpush.msra.mxu0 %v1257
  %1617 = vmatpush.msra.mxu0 %v1254
  %1618 = vmatmul.f32.gmra.mxu0 %v1578
  %v1619 = vpop.f32.mrf.mxu0
  %v1620 = vadd.f32 0.0, %v1619
  %1621 = vdwg.mxu0
  %1622 = vmatpush.msra.mxu0 %v1300
  %1623 = vmatpush.msra.mxu0 %v1297
  %1624 = vmatpush.msra.mxu0 %v1294
  %1625 = vmatpush.msra.mxu0 %v1291
  %1626 = vmatpush.msra.mxu0 %v1288
  %1627 = vmatpush.msra.mxu0 %v1285
  %1628 = vmatpush.msra.mxu0 %v1282
  %1629 = vmatpush.msra.mxu0 %v1279
  %1630 = vmatpush.msra.mxu0 %v1276
  %1631 = vmatpush.msra.mxu0 %v1273
  %1632 = vmatpush.msra.mxu0 %v1270
  %1633 = vmatpush.msra.mxu0 %v1267
  %1634 = vmatpush.msra.mxu0 %v1264
  %1635 = vmatpush.msra.mxu0 %v1261
  %1636 = vmatpush.msra.mxu0 %v1258
  %1637 = vmatpush.msra.mxu0 %v1255
  %1638 = vmatmul.f32.gmra.mxu0 %v1578
  %v1639 = vpop.f32.mrf.mxu0
  %v1640 = vadd.f32 0.0, %v1639
  %1641 = vdwg.mxu0
  %v1642 = vadd.f32 %v1579, %v1600
  %v1643 = vadd.f32 %v1580, %v1620
  %v1644 = vxor.u32 %v1642, 2147483648
  %v1645 = vxor.u32 %v1643, 2147483648
  %v1646 = vmul.f32 %v1644, 1.442695
  %v1647 = vpow.pop %v1646
  %v1648 = vmul.f32 %v1645, 1.442695
  %v1649 = vpow.pop %v1648
  %v1650 = vadd.f32 %v1647, 1.0
  %v1651 = vadd.f32 %v1649, 1.0
  %v1652 = vrcp.pop %v1650
  %v1653 = vmul.f32 %v1650, %v1652
  %v1654 = vsub.f32 1.0, %v1653
  %v1655 = vmul.f32 %v1652, %v1654
  %v1656 = vadd.f32 %v1652, %v1655
  %vm1657 = vweird.f32 %v1650
  %vm1658 = vweird.f32 %v1652
  %vm1659 = vmor %vm1657, %vm1658
  %v1660 = vsel %vm1659, %v1652, %v1656
  %v1661 = vand.u32 2147483647, %v1650
  %vm1662 = vcmp.eq.f32.partialorder %v1661, 8.507059e+37
  %v1663 = vand.u32 %v1650, 2147483648
  %v1664 = vor.u32 1.1754944e-38, %v1663
  %v1665 = vsel %vm1662, %v1664, %v1660
  %v1666 = vmul.f32 1.0, %v1665
  %v1667 = vrcp.pop %v1651
  %v1668 = vmul.f32 %v1651, %v1667
  %v1669 = vsub.f32 1.0, %v1668
  %v1670 = vmul.f32 %v1667, %v1669
  %v1671 = vadd.f32 %v1667, %v1670
  %vm1672 = vweird.f32 %v1651
  %vm1673 = vweird.f32 %v1667
  %vm1674 = vmor %vm1672, %vm1673
  %v1675 = vsel %vm1674, %v1667, %v1671
  %v1676 = vand.u32 2147483647, %v1651
  %vm1677 = vcmp.eq.f32.partialorder %v1676, 8.507059e+37
  %v1678 = vand.u32 %v1651, 2147483648
  %v1679 = vor.u32 1.1754944e-38, %v1678
  %v1680 = vsel %vm1677, %v1679, %v1675
  %v1681 = vmul.f32 1.0, %v1680
  %v1682 = vadd.f32 %v1640, %v1304
  %v1683 = vmul.f32 %v1666, %v1682
  %v1684 = vadd.f32 %v1581, %v1683
  %v1685 = vtanh.pop %v1684
  %v1686 = vsub.f32 1.0, %v1681
  %v1687 = vmul.f32 %v1686, %v1685
  %v1688 = vmul.f32 %v1681, %v1578
  %v1689 = vadd.f32 %v1687, %v1688
  %v1690 = vld [vmem:[#allocation3 + $0x30] sm:$0xff]
  %v1691 = vld [vmem:[#allocation3 + $0x38] sm:$0xff]
  %v1692 = vld [vmem:[#allocation3 + $0x40] sm:$0xff]
  %1693 = vmatpush.msra.mxu0 %v1298
  %1694 = vmatpush.msra.mxu0 %v1295
  %1695 = vmatpush.msra.mxu0 %v1292
  %1696 = vmatpush.msra.mxu0 %v1289
  %1697 = vmatpush.msra.mxu0 %v1286
  %1698 = vmatpush.msra.mxu0 %v1283
  %1699 = vmatpush.msra.mxu0 %v1280
  %1700 = vmatpush.msra.mxu0 %v1277
  %1701 = vmatpush.msra.mxu0 %v1274
  %1702 = vmatpush.msra.mxu0 %v1271
  %1703 = vmatpush.msra.mxu0 %v1268
  %1704 = vmatpush.msra.mxu0 %v1265
  %1705 = vmatpush.msra.mxu0 %v1262
  %1706 = vmatpush.msra.mxu0 %v1259
  %1707 = vmatpush.msra.mxu0 %v1256
  %1708 = vmatpush.msra.mxu0 %v1253
  %1709 = vmatmul.f32.gmra.mxu0 %v1689
  %v1710 = vpop.f32.mrf.mxu0
  %v1711 = vadd.f32 0.0, %v1710
  %1712 = vdwg.mxu0
  %1713 = vmatpush.msra.mxu0 %v1299
  %1714 = vmatpush.msra.mxu0 %v1296
  %1715 = vmatpush.msra.mxu0 %v1293
  %1716 = vmatpush.msra.mxu0 %v1290
  %1717 = vmatpush.msra.mxu0 %v1287
  %1718 = vmatpush.msra.mxu0 %v1284
  %1719 = vmatpush.msra.mxu0 %v1281
  %1720 = vmatpush.msra.mxu0 %v1278
  %1721 = vmatpush.msra.mxu0 %v1275
  %1722 = vmatpush.msra.mxu0 %v1272
  %1723 = vmatpush.msra.mxu0 %v1269
  %1724 = vmatpush.msra.mxu0 %v1266
  %1725 = vmatpush.msra.mxu0 %v1263
  %1726 = vmatpush.msra.mxu0 %v1260
  %1727 = vmatpush.msra.mxu0 %v1257
  %1728 = vmatpush.msra.mxu0 %v1254
  %1729 = vmatmul.f32.gmra.mxu0 %v1689
  %v1730 = vpop.f32.mrf.mxu0
  %v1731 = vadd.f32 0.0, %v1730
  %1732 = vdwg.mxu0
  %1733 = vmatpush.msra.mxu0 %v1300
  %1734 = vmatpush.msra.mxu0 %v1297
  %1735 = vmatpush.msra.mxu0 %v1294
  %1736 = vmatpush.msra.mxu0 %v1291
  %1737 = vmatpush.msra.mxu0 %v1288
  %1738 = vmatpush.msra.mxu0 %v1285
  %1739 = vmatpush.msra.mxu0 %v1282
  %1740 = vmatpush.msra.mxu0 %v1279
  %1741 = vmatpush.msra.mxu0 %v1276
  %1742 = vmatpush.msra.mxu0 %v1273
  %1743 = vmatpush.msra.mxu0 %v1270
  %1744 = vmatpush.msra.mxu0 %v1267
  %1745 = vmatpush.msra.mxu0 %v1264
  %1746 = vmatpush.msra.mxu0 %v1261
  %1747 = vmatpush.msra.mxu0 %v1258
  %1748 = vmatpush.msra.mxu0 %v1255
  %1749 = vmatmul.f32.gmra.mxu0 %v1689
  %v1750 = vpop.f32.mrf.mxu0
  %v1751 = vadd.f32 0.0, %v1750
  %1752 = vdwg.mxu0
  %v1753 = vadd.f32 %v1690, %v1711
  %v1754 = vadd.f32 %v1691, %v1731
  %v1755 = vxor.u32 %v1753, 2147483648
  %v1756 = vxor.u32 %v1754, 2147483648
  %v1757 = vmul.f32 %v1755, 1.442695
  %v1758 = vpow.pop %v1757
  %v1759 = vmul.f32 %v1756, 1.442695
  %v1760 = vpow.pop %v1759
  %v1761 = vadd.f32 %v1758, 1.0
  %v1762 = vadd.f32 %v1760, 1.0
  %v1763 = vrcp.pop %v1761
  %v1764 = vmul.f32 %v1761, %v1763
  %v1765 = vsub.f32 1.0, %v1764
  %v1766 = vmul.f32 %v1763, %v1765
  %v1767 = vadd.f32 %v1763, %v1766
  %vm1768 = vweird.f32 %v1761
  %vm1769 = vweird.f32 %v1763
  %vm1770 = vmor %vm1768, %vm1769
  %v1771 = vsel %vm1770, %v1763, %v1767
  %v1772 = vand.u32 2147483647, %v1761
  %vm1773 = vcmp.eq.f32.partialorder %v1772, 8.507059e+37
  %v1774 = vand.u32 %v1761, 2147483648
  %v1775 = vor.u32 1.1754944e-38, %v1774
  %v1776 = vsel %vm1773, %v1775, %v1771
  %v1777 = vmul.f32 1.0, %v1776
  %v1778 = vrcp.pop %v1762
  %v1779 = vmul.f32 %v1762, %v1778
  %v1780 = vsub.f32 1.0, %v1779
  %v1781 = vmul.f32 %v1778, %v1780
  %v1782 = vadd.f32 %v1778, %v1781
  %vm1783 = vweird.f32 %v1762
  %vm1784 = vweird.f32 %v1778
  %vm1785 = vmor %vm1783, %vm1784
  %v1786 = vsel %vm1785, %v1778, %v1782
  %v1787 = vand.u32 2147483647, %v1762
  %vm1788 = vcmp.eq.f32.partialorder %v1787, 8.507059e+37
  %v1789 = vand.u32 %v1762, 2147483648
  %v1790 = vor.u32 1.1754944e-38, %v1789
  %v1791 = vsel %vm1788, %v1790, %v1786
  %v1792 = vmul.f32 1.0, %v1791
  %v1793 = vadd.f32 %v1751, %v1304
  %v1794 = vmul.f32 %v1777, %v1793
  %v1795 = vadd.f32 %v1692, %v1794
  %v1796 = vtanh.pop %v1795
  %v1797 = vsub.f32 1.0, %v1792
  %v1798 = vmul.f32 %v1797, %v1796
  %v1799 = vmul.f32 %v1792, %v1689
  %v1800 = vadd.f32 %v1798, %v1799
  %v1801 = vld [vmem:[#allocation3 + $0x48] sm:$0xff]
  %v1802 = vld [vmem:[#allocation3 + $0x50] sm:$0xff]
  %v1803 = vld [vmem:[#allocation3 + $0x58] sm:$0xff]
  %1804 = vmatpush.msra.mxu0 %v1298
  %1805 = vmatpush.msra.mxu0 %v1295
  %1806 = vmatpush.msra.mxu0 %v1292
  %1807 = vmatpush.msra.mxu0 %v1289
  %1808 = vmatpush.msra.mxu0 %v1286
  %1809 = vmatpush.msra.mxu0 %v1283
  %1810 = vmatpush.msra.mxu0 %v1280
  %1811 = vmatpush.msra.mxu0 %v1277
  %1812 = vmatpush.msra.mxu0 %v1274
  %1813 = vmatpush.msra.mxu0 %v1271
  %1814 = vmatpush.msra.mxu0 %v1268
  %1815 = vmatpush.msra.mxu0 %v1265
  %1816 = vmatpush.msra.mxu0 %v1262
  %1817 = vmatpush.msra.mxu0 %v1259
  %1818 = vmatpush.msra.mxu0 %v1256
  %1819 = vmatpush.msra.mxu0 %v1253
  %1820 = vmatmul.f32.gmra.mxu0 %v1800
  %v1821 = vpop.f32.mrf.mxu0
  %v1822 = vadd.f32 0.0, %v1821
  %1823 = vdwg.mxu0
  %1824 = vmatpush.msra.mxu0 %v1299
  %1825 = vmatpush.msra.mxu0 %v1296
  %1826 = vmatpush.msra.mxu0 %v1293
  %1827 = vmatpush.msra.mxu0 %v1290
  %1828 = vmatpush.msra.mxu0 %v1287
  %1829 = vmatpush.msra.mxu0 %v1284
  %1830 = vmatpush.msra.mxu0 %v1281
  %1831 = vmatpush.msra.mxu0 %v1278
  %1832 = vmatpush.msra.mxu0 %v1275
  %1833 = vmatpush.msra.mxu0 %v1272
  %1834 = vmatpush.msra.mxu0 %v1269
  %1835 = vmatpush.msra.mxu0 %v1266
  %1836 = vmatpush.msra.mxu0 %v1263
  %1837 = vmatpush.msra.mxu0 %v1260
  %1838 = vmatpush.msra.mxu0 %v1257
  %1839 = vmatpush.msra.mxu0 %v1254
  %1840 = vmatmul.f32.gmra.mxu0 %v1800
  %v1841 = vpop.f32.mrf.mxu0
  %v1842 = vadd.f32 0.0, %v1841
  %1843 = vdwg.mxu0
  %1844 = vmatpush.msra.mxu0 %v1300
  %1845 = vmatpush.msra.mxu0 %v1297
  %1846 = vmatpush.msra.mxu0 %v1294
  %1847 = vmatpush.msra.mxu0 %v1291
  %1848 = vmatpush.msra.mxu0 %v1288
  %1849 = vmatpush.msra.mxu0 %v1285
  %1850 = vmatpush.msra.mxu0 %v1282
  %1851 = vmatpush.msra.mxu0 %v1279
  %1852 = vmatpush.msra.mxu0 %v1276
  %1853 = vmatpush.msra.mxu0 %v1273
  %1854 = vmatpush.msra.mxu0 %v1270
  %1855 = vmatpush.msra.mxu0 %v1267
  %1856 = vmatpush.msra.mxu0 %v1264
  %1857 = vmatpush.msra.mxu0 %v1261
  %1858 = vmatpush.msra.mxu0 %v1258
  %1859 = vmatpush.msra.mxu0 %v1255
  %1860 = vmatmul.f32.gmra.mxu0 %v1800
  %v1861 = vpop.f32.mrf.mxu0
  %v1862 = vadd.f32 0.0, %v1861
  %1863 = vdwg.mxu0
  %v1864 = vadd.f32 %v1801, %v1822
  %v1865 = vadd.f32 %v1802, %v1842
  %v1866 = vxor.u32 %v1864, 2147483648
  %v1867 = vxor.u32 %v1865, 2147483648
  %v1868 = vmul.f32 %v1866, 1.442695
  %v1869 = vpow.pop %v1868
  %v1870 = vmul.f32 %v1867, 1.442695
  %v1871 = vpow.pop %v1870
  %v1872 = vadd.f32 %v1869, 1.0
  %v1873 = vadd.f32 %v1871, 1.0
  %v1874 = vrcp.pop %v1872
  %v1875 = vmul.f32 %v1872, %v1874
  %v1876 = vsub.f32 1.0, %v1875
  %v1877 = vmul.f32 %v1874, %v1876
  %v1878 = vadd.f32 %v1874, %v1877
  %vm1879 = vweird.f32 %v1872
  %vm1880 = vweird.f32 %v1874
  %vm1881 = vmor %vm1879, %vm1880
  %v1882 = vsel %vm1881, %v1874, %v1878
  %v1883 = vand.u32 2147483647, %v1872
  %vm1884 = vcmp.eq.f32.partialorder %v1883, 8.507059e+37
  %v1885 = vand.u32 %v1872, 2147483648
  %v1886 = vor.u32 1.1754944e-38, %v1885
  %v1887 = vsel %vm1884, %v1886, %v1882
  %v1888 = vmul.f32 1.0, %v1887
  %v1889 = vrcp.pop %v1873
  %v1890 = vmul.f32 %v1873, %v1889
  %v1891 = vsub.f32 1.0, %v1890
  %v1892 = vmul.f32 %v1889, %v1891
  %v1893 = vadd.f32 %v1889, %v1892
  %vm1894 = vweird.f32 %v1873
  %vm1895 = vweird.f32 %v1889
  %vm1896 = vmor %vm1894, %vm1895
  %v1897 = vsel %vm1896, %v1889, %v1893
  %v1898 = vand.u32 2147483647, %v1873
  %vm1899 = vcmp.eq.f32.partialorder %v1898, 8.507059e+37
  %v1900 = vand.u32 %v1873, 2147483648
  %v1901 = vor.u32 1.1754944e-38, %v1900
  %v1902 = vsel %vm1899, %v1901, %v1897
  %v1903 = vmul.f32 1.0, %v1902
  %v1904 = vadd.f32 %v1862, %v1304
  %v1905 = vmul.f32 %v1888, %v1904
  %v1906 = vadd.f32 %v1803, %v1905
  %v1907 = vtanh.pop %v1906
  %v1908 = vsub.f32 1.0, %v1903
  %v1909 = vmul.f32 %v1908, %v1907
  %v1910 = vmul.f32 %v1903, %v1800
  %v1911 = vadd.f32 %v1909, %v1910
  %v1912 = vld [vmem:[#allocation3 + $0x60] sm:$0xff]
  %v1913 = vld [vmem:[#allocation3 + $0x68] sm:$0xff]
  %v1914 = vld [vmem:[#allocation3 + $0x70] sm:$0xff]
  %1915 = vmatpush.msra.mxu0 %v1298
  %1916 = vmatpush.msra.mxu0 %v1295
  %1917 = vmatpush.msra.mxu0 %v1292
  %1918 = vmatpush.msra.mxu0 %v1289
  %1919 = vmatpush.msra.mxu0 %v1286
  %1920 = vmatpush.msra.mxu0 %v1283
  %1921 = vmatpush.msra.mxu0 %v1280
  %1922 = vmatpush.msra.mxu0 %v1277
  %1923 = vmatpush.msra.mxu0 %v1274
  %1924 = vmatpush.msra.mxu0 %v1271
  %1925 = vmatpush.msra.mxu0 %v1268
  %1926 = vmatpush.msra.mxu0 %v1265
  %1927 = vmatpush.msra.mxu0 %v1262
  %1928 = vmatpush.msra.mxu0 %v1259
  %1929 = vmatpush.msra.mxu0 %v1256
  %1930 = vmatpush.msra.mxu0 %v1253
  %1931 = vmatmul.f32.gmra.mxu0 %v1911
  %v1932 = vpop.f32.mrf.mxu0
  %v1933 = vadd.f32 0.0, %v1932
  %1934 = vdwg.mxu0
  %1935 = vmatpush.msra.mxu0 %v1299
  %1936 = vmatpush.msra.mxu0 %v1296
  %1937 = vmatpush.msra.mxu0 %v1293
  %1938 = vmatpush.msra.mxu0 %v1290
  %1939 = vmatpush.msra.mxu0 %v1287
  %1940 = vmatpush.msra.mxu0 %v1284
  %1941 = vmatpush.msra.mxu0 %v1281
  %1942 = vmatpush.msra.mxu0 %v1278
  %1943 = vmatpush.msra.mxu0 %v1275
  %1944 = vmatpush.msra.mxu0 %v1272
  %1945 = vmatpush.msra.mxu0 %v1269
  %1946 = vmatpush.msra.mxu0 %v1266
  %1947 = vmatpush.msra.mxu0 %v1263
  %1948 = vmatpush.msra.mxu0 %v1260
  %1949 = vmatpush.msra.mxu0 %v1257
  %1950 = vmatpush.msra.mxu0 %v1254
  %1951 = vmatmul.f32.gmra.mxu0 %v1911
  %v1952 = vpop.f32.mrf.mxu0
  %v1953 = vadd.f32 0.0, %v1952
  %1954 = vdwg.mxu0
  %1955 = vmatpush.msra.mxu0 %v1300
  %1956 = vmatpush.msra.mxu0 %v1297
  %1957 = vmatpush.msra.mxu0 %v1294
  %1958 = vmatpush.msra.mxu0 %v1291
  %1959 = vmatpush.msra.mxu0 %v1288
  %1960 = vmatpush.msra.mxu0 %v1285
  %1961 = vmatpush.msra.mxu0 %v1282
  %1962 = vmatpush.msra.mxu0 %v1279
  %1963 = vmatpush.msra.mxu0 %v1276
  %1964 = vmatpush.msra.mxu0 %v1273
  %1965 = vmatpush.msra.mxu0 %v1270
  %1966 = vmatpush.msra.mxu0 %v1267
  %1967 = vmatpush.msra.mxu0 %v1264
  %1968 = vmatpush.msra.mxu0 %v1261
  %1969 = vmatpush.msra.mxu0 %v1258
  %1970 = vmatpush.msra.mxu0 %v1255
  %1971 = vmatmul.f32.gmra.mxu0 %v1911
  %v1972 = vpop.f32.mrf.mxu0
  %v1973 = vadd.f32 0.0, %v1972
  %1974 = vdwg.mxu0
  %v1975 = vadd.f32 %v1912, %v1933
  %v1976 = vadd.f32 %v1913, %v1953
  %v1977 = vxor.u32 %v1975, 2147483648
  %v1978 = vxor.u32 %v1976, 2147483648
  %v1979 = vmul.f32 %v1977, 1.442695
  %v1980 = vpow.pop %v1979
  %v1981 = vmul.f32 %v1978, 1.442695
  %v1982 = vpow.pop %v1981
  %v1983 = vadd.f32 %v1980, 1.0
  %v1984 = vadd.f32 %v1982, 1.0
  %v1985 = vrcp.pop %v1983
  %v1986 = vmul.f32 %v1983, %v1985
  %v1987 = vsub.f32 1.0, %v1986
  %v1988 = vmul.f32 %v1985, %v1987
  %v1989 = vadd.f32 %v1985, %v1988
  %vm1990 = vweird.f32 %v1983
  %vm1991 = vweird.f32 %v1985
  %vm1992 = vmor %vm1990, %vm1991
  %v1993 = vsel %vm1992, %v1985, %v1989
  %v1994 = vand.u32 2147483647, %v1983
  %vm1995 = vcmp.eq.f32.partialorder %v1994, 8.507059e+37
  %v1996 = vand.u32 %v1983, 2147483648
  %v1997 = vor.u32 1.1754944e-38, %v1996
  %v1998 = vsel %vm1995, %v1997, %v1993
  %v1999 = vmul.f32 1.0, %v1998
  %v2000 = vrcp.pop %v1984
  %v2001 = vmul.f32 %v1984, %v2000
  %v2002 = vsub.f32 1.0, %v2001
  %v2003 = vmul.f32 %v2000, %v2002
  %v2004 = vadd.f32 %v2000, %v2003
  %vm2005 = vweird.f32 %v1984
  %vm2006 = vweird.f32 %v2000
  %vm2007 = vmor %vm2005, %vm2006
  %v2008 = vsel %vm2007, %v2000, %v2004
  %v2009 = vand.u32 2147483647, %v1984
  %vm2010 = vcmp.eq.f32.partialorder %v2009, 8.507059e+37
  %v2011 = vand.u32 %v1984, 2147483648
  %v2012 = vor.u32 1.1754944e-38, %v2011
  %v2013 = vsel %vm2010, %v2012, %v2008
  %v2014 = vmul.f32 1.0, %v2013
  %v2015 = vadd.f32 %v1973, %v1304
  %v2016 = vmul.f32 %v1999, %v2015
  %v2017 = vadd.f32 %v1914, %v2016
  %v2018 = vtanh.pop %v2017
  %v2019 = vsub.f32 1.0, %v2014
  %v2020 = vmul.f32 %v2019, %v2018
  %v2021 = vmul.f32 %v2014, %v1911
  %v2022 = vadd.f32 %v2020, %v2021
  %v2023 = vld [vmem:[#allocation3 + $0x78] sm:$0xff]
  %v2024 = vld [vmem:[#allocation3 + $0x80] sm:$0xff]
  %v2025 = vld [vmem:[#allocation3 + $0x88] sm:$0xff]
  %2026 = vmatpush.msra.mxu0 %v1298
  %2027 = vmatpush.msra.mxu0 %v1295
  %2028 = vmatpush.msra.mxu0 %v1292
  %2029 = vmatpush.msra.mxu0 %v1289
  %2030 = vmatpush.msra.mxu0 %v1286
  %2031 = vmatpush.msra.mxu0 %v1283
  %2032 = vmatpush.msra.mxu0 %v1280
  %2033 = vmatpush.msra.mxu0 %v1277
  %2034 = vmatpush.msra.mxu0 %v1274
  %2035 = vmatpush.msra.mxu0 %v1271
  %2036 = vmatpush.msra.mxu0 %v1268
  %2037 = vmatpush.msra.mxu0 %v1265
  %2038 = vmatpush.msra.mxu0 %v1262
  %2039 = vmatpush.msra.mxu0 %v1259
  %2040 = vmatpush.msra.mxu0 %v1256
  %2041 = vmatpush.msra.mxu0 %v1253
  %2042 = vmatmul.f32.gmra.mxu0 %v2022
  %v2043 = vpop.f32.mrf.mxu0
  %v2044 = vadd.f32 0.0, %v2043
  %2045 = vdwg.mxu0
  %2046 = vmatpush.msra.mxu0 %v1299
  %2047 = vmatpush.msra.mxu0 %v1296
  %2048 = vmatpush.msra.mxu0 %v1293
  %2049 = vmatpush.msra.mxu0 %v1290
  %2050 = vmatpush.msra.mxu0 %v1287
  %2051 = vmatpush.msra.mxu0 %v1284
  %2052 = vmatpush.msra.mxu0 %v1281
  %2053 = vmatpush.msra.mxu0 %v1278
  %2054 = vmatpush.msra.mxu0 %v1275
  %2055 = vmatpush.msra.mxu0 %v1272
  %2056 = vmatpush.msra.mxu0 %v1269
  %2057 = vmatpush.msra.mxu0 %v1266
  %2058 = vmatpush.msra.mxu0 %v1263
  %2059 = vmatpush.msra.mxu0 %v1260
  %2060 = vmatpush.msra.mxu0 %v1257
  %2061 = vmatpush.msra.mxu0 %v1254
  %2062 = vmatmul.f32.gmra.mxu0 %v2022
  %v2063 = vpop.f32.mrf.mxu0
  %v2064 = vadd.f32 0.0, %v2063
  %2065 = vdwg.mxu0
  %2066 = vmatpush.msra.mxu0 %v1300
  %2067 = vmatpush.msra.mxu0 %v1297
  %2068 = vmatpush.msra.mxu0 %v1294
  %2069 = vmatpush.msra.mxu0 %v1291
  %2070 = vmatpush.msra.mxu0 %v1288
  %2071 = vmatpush.msra.mxu0 %v1285
  %2072 = vmatpush.msra.mxu0 %v1282
  %2073 = vmatpush.msra.mxu0 %v1279
  %2074 = vmatpush.msra.mxu0 %v1276
  %2075 = vmatpush.msra.mxu0 %v1273
  %2076 = vmatpush.msra.mxu0 %v1270
  %2077 = vmatpush.msra.mxu0 %v1267
  %2078 = vmatpush.msra.mxu0 %v1264
  %2079 = vmatpush.msra.mxu0 %v1261
  %2080 = vmatpush.msra.mxu0 %v1258
  %2081 = vmatpush.msra.mxu0 %v1255
  %2082 = vmatmul.f32.gmra.mxu0 %v2022
  %v2083 = vpop.f32.mrf.mxu0
  %v2084 = vadd.f32 0.0, %v2083
  %2085 = vdwg.mxu0
  %v2086 = vadd.f32 %v2023, %v2044
  %v2087 = vadd.f32 %v2024, %v2064
  %v2088 = vxor.u32 %v2086, 2147483648
  %v2089 = vxor.u32 %v2087, 2147483648
  %v2090 = vmul.f32 %v2088, 1.442695
  %v2091 = vpow.pop %v2090
  %v2092 = vmul.f32 %v2089, 1.442695
  %v2093 = vpow.pop %v2092
  %v2094 = vadd.f32 %v2091, 1.0
  %v2095 = vadd.f32 %v2093, 1.0
  %v2096 = vrcp.pop %v2094
  %v2097 = vmul.f32 %v2094, %v2096
  %v2098 = vsub.f32 1.0, %v2097
  %v2099 = vmul.f32 %v2096, %v2098
  %v2100 = vadd.f32 %v2096, %v2099
  %vm2101 = vweird.f32 %v2094
  %vm2102 = vweird.f32 %v2096
  %vm2103 = vmor %vm2101, %vm2102
  %v2104 = vsel %vm2103, %v2096, %v2100
  %v2105 = vand.u32 2147483647, %v2094
  %vm2106 = vcmp.eq.f32.partialorder %v2105, 8.507059e+37
  %v2107 = vand.u32 %v2094, 2147483648
  %v2108 = vor.u32 1.1754944e-38, %v2107
  %v2109 = vsel %vm2106, %v2108, %v2104
  %v2110 = vmul.f32 1.0, %v2109
  %v2111 = vrcp.pop %v2095
  %v2112 = vmul.f32 %v2095, %v2111
  %v2113 = vsub.f32 1.0, %v2112
  %v2114 = vmul.f32 %v2111, %v2113
  %v2115 = vadd.f32 %v2111, %v2114
  %vm2116 = vweird.f32 %v2095
  %vm2117 = vweird.f32 %v2111
  %vm2118 = vmor %vm2116, %vm2117
  %v2119 = vsel %vm2118, %v2111, %v2115
  %v2120 = vand.u32 2147483647, %v2095
  %vm2121 = vcmp.eq.f32.partialorder %v2120, 8.507059e+37
  %v2122 = vand.u32 %v2095, 2147483648
  %v2123 = vor.u32 1.1754944e-38, %v2122
  %v2124 = vsel %vm2121, %v2123, %v2119
  %v2125 = vmul.f32 1.0, %v2124
  %v2126 = vadd.f32 %v2084, %v1304
  %v2127 = vmul.f32 %v2110, %v2126
  %v2128 = vadd.f32 %v2025, %v2127
  %v2129 = vtanh.pop %v2128
  %v2130 = vsub.f32 1.0, %v2125
  %v2131 = vmul.f32 %v2130, %v2129
  %v2132 = vmul.f32 %v2125, %v2022
  %v2133 = vadd.f32 %v2131, %v2132
  %v2134 = vld [vmem:[#allocation3 + $0x90] sm:$0xff]
  %v2135 = vld [vmem:[#allocation3 + $0x98] sm:$0xff]
  %v2136 = vld [vmem:[#allocation3 + $0xa0] sm:$0xff]
  %2137 = vmatpush.msra.mxu0 %v1298
  %2138 = vmatpush.msra.mxu0 %v1295
  %2139 = vmatpush.msra.mxu0 %v1292
  %2140 = vmatpush.msra.mxu0 %v1289
  %2141 = vmatpush.msra.mxu0 %v1286
  %2142 = vmatpush.msra.mxu0 %v1283
  %2143 = vmatpush.msra.mxu0 %v1280
  %2144 = vmatpush.msra.mxu0 %v1277
  %2145 = vmatpush.msra.mxu0 %v1274
  %2146 = vmatpush.msra.mxu0 %v1271
  %2147 = vmatpush.msra.mxu0 %v1268
  %2148 = vmatpush.msra.mxu0 %v1265
  %2149 = vmatpush.msra.mxu0 %v1262
  %2150 = vmatpush.msra.mxu0 %v1259
  %2151 = vmatpush.msra.mxu0 %v1256
  %2152 = vmatpush.msra.mxu0 %v1253
  %2153 = vmatmul.f32.gmra.mxu0 %v2133
  %v2154 = vpop.f32.mrf.mxu0
  %v2155 = vadd.f32 0.0, %v2154
  %2156 = vdwg.mxu0
  %2157 = vmatpush.msra.mxu0 %v1299
  %2158 = vmatpush.msra.mxu0 %v1296
  %2159 = vmatpush.msra.mxu0 %v1293
  %2160 = vmatpush.msra.mxu0 %v1290
  %2161 = vmatpush.msra.mxu0 %v1287
  %2162 = vmatpush.msra.mxu0 %v1284
  %2163 = vmatpush.msra.mxu0 %v1281
  %2164 = vmatpush.msra.mxu0 %v1278
  %2165 = vmatpush.msra.mxu0 %v1275
  %2166 = vmatpush.msra.mxu0 %v1272
  %2167 = vmatpush.msra.mxu0 %v1269
  %2168 = vmatpush.msra.mxu0 %v1266
  %2169 = vmatpush.msra.mxu0 %v1263
  %2170 = vmatpush.msra.mxu0 %v1260
  %2171 = vmatpush.msra.mxu0 %v1257
  %2172 = vmatpush.msra.mxu0 %v1254
  %2173 = vmatmul.f32.gmra.mxu0 %v2133
  %v2174 = vpop.f32.mrf.mxu0
  %v2175 = vadd.f32 0.0, %v2174
  %2176 = vdwg.mxu0
  %2177 = vmatpush.msra.mxu0 %v1300
  %2178 = vmatpush.msra.mxu0 %v1297
  %2179 = vmatpush.msra.mxu0 %v1294
  %2180 = vmatpush.msra.mxu0 %v1291
  %2181 = vmatpush.msra.mxu0 %v1288
  %2182 = vmatpush.msra.mxu0 %v1285
  %2183 = vmatpush.msra.mxu0 %v1282
  %2184 = vmatpush.msra.mxu0 %v1279
  %2185 = vmatpush.msra.mxu0 %v1276
  %2186 = vmatpush.msra.mxu0 %v1273
  %2187 = vmatpush.msra.mxu0 %v1270
  %2188 = vmatpush.msra.mxu0 %v1267
  %2189 = vmatpush.msra.mxu0 %v1264
  %2190 = vmatpush.msra.mxu0 %v1261
  %2191 = vmatpush.msra.mxu0 %v1258
  %2192 = vmatpush.msra.mxu0 %v1255
  %2193 = vmatmul.f32.gmra.mxu0 %v2133
  %v2194 = vpop.f32.mrf.mxu0
  %v2195 = vadd.f32 0.0, %v2194
  %2196 = vdwg.mxu0
  %v2197 = vadd.f32 %v2134, %v2155
  %v2198 = vadd.f32 %v2135, %v2175
  %v2199 = vxor.u32 %v2197, 2147483648
  %v2200 = vxor.u32 %v2198, 2147483648
  %v2201 = vmul.f32 %v2199, 1.442695
  %v2202 = vpow.pop %v2201
  %v2203 = vmul.f32 %v2200, 1.442695
  %v2204 = vpow.pop %v2203
  %v2205 = vadd.f32 %v2202, 1.0
  %v2206 = vadd.f32 %v2204, 1.0
  %v2207 = vrcp.pop %v2205
  %v2208 = vmul.f32 %v2205, %v2207
  %v2209 = vsub.f32 1.0, %v2208
  %v2210 = vmul.f32 %v2207, %v2209
  %v2211 = vadd.f32 %v2207, %v2210
  %vm2212 = vweird.f32 %v2205
  %vm2213 = vweird.f32 %v2207
  %vm2214 = vmor %vm2212, %vm2213
  %v2215 = vsel %vm2214, %v2207, %v2211
  %v2216 = vand.u32 2147483647, %v2205
  %vm2217 = vcmp.eq.f32.partialorder %v2216, 8.507059e+37
  %v2218 = vand.u32 %v2205, 2147483648
  %v2219 = vor.u32 1.1754944e-38, %v2218
  %v2220 = vsel %vm2217, %v2219, %v2215
  %v2221 = vmul.f32 1.0, %v2220
  %v2222 = vrcp.pop %v2206
  %v2223 = vmul.f32 %v2206, %v2222
  %v2224 = vsub.f32 1.0, %v2223
  %v2225 = vmul.f32 %v2222, %v2224
  %v2226 = vadd.f32 %v2222, %v2225
  %vm2227 = vweird.f32 %v2206
  %vm2228 = vweird.f32 %v2222
  %vm2229 = vmor %vm2227, %vm2228
  %v2230 = vsel %vm2229, %v2222, %v2226
  %v2231 = vand.u32 2147483647, %v2206
  %vm2232 = vcmp.eq.f32.partialorder %v2231, 8.507059e+37
  %v2233 = vand.u32 %v2206, 2147483648
  %v2234 = vor.u32 1.1754944e-38, %v2233
  %v2235 = vsel %vm2232, %v2234, %v2230
  %v2236 = vmul.f32 1.0, %v2235
  %v2237 = vadd.f32 %v2195, %v1304
  %v2238 = vmul.f32 %v2221, %v2237
  %v2239 = vadd.f32 %v2136, %v2238
  %v2240 = vtanh.pop %v2239
  %v2241 = vsub.f32 1.0, %v2236
  %v2242 = vmul.f32 %v2241, %v2240
  %v2243 = vmul.f32 %v2236, %v2133
  %v2244 = vadd.f32 %v2242, %v2243
  %v2245 = vld [vmem:[#allocation3 + $0xa8] sm:$0xff]
  %v2246 = vld [vmem:[#allocation3 + $0xb0] sm:$0xff]
  %v2247 = vld [vmem:[#allocation3 + $0xb8] sm:$0xff]
  %2248 = vmatpush.msra.mxu0 %v1298
  %2249 = vmatpush.msra.mxu0 %v1295
  %2250 = vmatpush.msra.mxu0 %v1292
  %2251 = vmatpush.msra.mxu0 %v1289
  %2252 = vmatpush.msra.mxu0 %v1286
  %2253 = vmatpush.msra.mxu0 %v1283
  %2254 = vmatpush.msra.mxu0 %v1280
  %2255 = vmatpush.msra.mxu0 %v1277
  %2256 = vmatpush.msra.mxu0 %v1274
  %2257 = vmatpush.msra.mxu0 %v1271
  %2258 = vmatpush.msra.mxu0 %v1268
  %2259 = vmatpush.msra.mxu0 %v1265
  %2260 = vmatpush.msra.mxu0 %v1262
  %2261 = vmatpush.msra.mxu0 %v1259
  %2262 = vmatpush.msra.mxu0 %v1256
  %2263 = vmatpush.msra.mxu0 %v1253
  %2264 = vmatmul.f32.gmra.mxu0 %v2244
  %v2265 = vpop.f32.mrf.mxu0
  %v2266 = vadd.f32 0.0, %v2265
  %2267 = vdwg.mxu0
  %2268 = vmatpush.msra.mxu0 %v1299
  %2269 = vmatpush.msra.mxu0 %v1296
  %2270 = vmatpush.msra.mxu0 %v1293
  %2271 = vmatpush.msra.mxu0 %v1290
  %2272 = vmatpush.msra.mxu0 %v1287
  %2273 = vmatpush.msra.mxu0 %v1284
  %2274 = vmatpush.msra.mxu0 %v1281
  %2275 = vmatpush.msra.mxu0 %v1278
  %2276 = vmatpush.msra.mxu0 %v1275
  %2277 = vmatpush.msra.mxu0 %v1272
  %2278 = vmatpush.msra.mxu0 %v1269
  %2279 = vmatpush.msra.mxu0 %v1266
  %2280 = vmatpush.msra.mxu0 %v1263
  %2281 = vmatpush.msra.mxu0 %v1260
  %2282 = vmatpush.msra.mxu0 %v1257
  %2283 = vmatpush.msra.mxu0 %v1254
  %2284 = vmatmul.f32.gmra.mxu0 %v2244
  %v2285 = vpop.f32.mrf.mxu0
  %v2286 = vadd.f32 0.0, %v2285
  %2287 = vdwg.mxu0
  %2288 = vmatpush.msra.mxu0 %v1300
  %2289 = vmatpush.msra.mxu0 %v1297
  %2290 = vmatpush.msra.mxu0 %v1294
  %2291 = vmatpush.msra.mxu0 %v1291
  %2292 = vmatpush.msra.mxu0 %v1288
  %2293 = vmatpush.msra.mxu0 %v1285
  %2294 = vmatpush.msra.mxu0 %v1282
  %2295 = vmatpush.msra.mxu0 %v1279
  %2296 = vmatpush.msra.mxu0 %v1276
  %2297 = vmatpush.msra.mxu0 %v1273
  %2298 = vmatpush.msra.mxu0 %v1270
  %2299 = vmatpush.msra.mxu0 %v1267
  %2300 = vmatpush.msra.mxu0 %v1264
  %2301 = vmatpush.msra.mxu0 %v1261
  %2302 = vmatpush.msra.mxu0 %v1258
  %2303 = vmatpush.msra.mxu0 %v1255
  %2304 = vmatmul.f32.gmra.mxu0 %v2244
  %v2305 = vpop.f32.mrf.mxu0
  %v2306 = vadd.f32 0.0, %v2305
  %2307 = vdwg.mxu0
  %v2308 = vadd.f32 %v2245, %v2266
  %v2309 = vadd.f32 %v2246, %v2286
  %v2310 = vxor.u32 %v2308, 2147483648
  %v2311 = vxor.u32 %v2309, 2147483648
  %v2312 = vmul.f32 %v2310, 1.442695
  %v2313 = vpow.pop %v2312
  %v2314 = vmul.f32 %v2311, 1.442695
  %v2315 = vpow.pop %v2314
  %v2316 = vadd.f32 %v2313, 1.0
  %v2317 = vadd.f32 %v2315, 1.0
  %v2318 = vrcp.pop %v2316
  %v2319 = vmul.f32 %v2316, %v2318
  %v2320 = vsub.f32 1.0, %v2319
  %v2321 = vmul.f32 %v2318, %v2320
  %v2322 = vadd.f32 %v2318, %v2321
  %vm2323 = vweird.f32 %v2316
  %vm2324 = vweird.f32 %v2318
  %vm2325 = vmor %vm2323, %vm2324
  %v2326 = vsel %vm2325, %v2318, %v2322
  %v2327 = vand.u32 2147483647, %v2316
  %vm2328 = vcmp.eq.f32.partialorder %v2327, 8.507059e+37
  %v2329 = vand.u32 %v2316, 2147483648
  %v2330 = vor.u32 1.1754944e-38, %v2329
  %v2331 = vsel %vm2328, %v2330, %v2326
  %v2332 = vmul.f32 1.0, %v2331
  %v2333 = vrcp.pop %v2317
  %v2334 = vmul.f32 %v2317, %v2333
  %v2335 = vsub.f32 1.0, %v2334
  %v2336 = vmul.f32 %v2333, %v2335
  %v2337 = vadd.f32 %v2333, %v2336
  %vm2338 = vweird.f32 %v2317
  %vm2339 = vweird.f32 %v2333
  %vm2340 = vmor %vm2338, %vm2339
  %v2341 = vsel %vm2340, %v2333, %v2337
  %v2342 = vand.u32 2147483647, %v2317
  %vm2343 = vcmp.eq.f32.partialorder %v2342, 8.507059e+37
  %v2344 = vand.u32 %v2317, 2147483648
  %v2345 = vor.u32 1.1754944e-38, %v2344
  %v2346 = vsel %vm2343, %v2345, %v2341
  %v2347 = vmul.f32 1.0, %v2346
  %v2348 = vadd.f32 %v2306, %v1304
  %v2349 = vmul.f32 %v2332, %v2348
  %v2350 = vadd.f32 %v2247, %v2349
  %v2351 = vtanh.pop %v2350
  %v2352 = vsub.f32 1.0, %v2347
  %v2353 = vmul.f32 %v2352, %v2351
  %v2354 = vmul.f32 %v2347, %v2244
  %v2355 = vadd.f32 %v2353, %v2354
  %v2356 = vld [vmem:[%s9] sm:$0xff]
  %v2357 = vld [vmem:[%s9 + $0x8] sm:$0xff]
  %v2358 = vld [vmem:[%s9 + $0x10] sm:$0xff]
  %v2359 = vld [vmem:[%s9 + $0x18] sm:$0xff]
  %v2360 = vld [vmem:[%s9 + $0x20] sm:$0xff]
  %v2361 = vld [vmem:[%s9 + $0x28] sm:$0xff]
  %v2362 = vld [vmem:[%s9 + $0x30] sm:$0xff]
  %v2363 = vld [vmem:[%s9 + $0x38] sm:$0xff]
  %v2364 = vld [vmem:[%s9 + $0x40] sm:$0xff]
  %v2365 = vld [vmem:[%s9 + $0x48] sm:$0xff]
  %v2366 = vld [vmem:[%s9 + $0x50] sm:$0xff]
  %v2367 = vld [vmem:[%s9 + $0x58] sm:$0xff]
  %v2368 = vld [vmem:[%s9 + $0x60] sm:$0xff]
  %v2369 = vld [vmem:[%s9 + $0x68] sm:$0xff]
  %v2370 = vld [vmem:[%s9 + $0x70] sm:$0xff]
  %v2371 = vld [vmem:[%s9 + $0x78] sm:$0xff]
  %v2372 = vld [vmem:[%s10] sm:$0x1]
  %v2374 = vperm.slane %v2372, 0
  %2376 = vmatpush.msra.mxu0 %v2371
  %2377 = vmatpush.msra.mxu0 %v2370
  %2378 = vmatpush.msra.mxu0 %v2369
  %2379 = vmatpush.msra.mxu0 %v2368
  %2380 = vmatpush.msra.mxu0 %v2367
  %2381 = vmatpush.msra.mxu0 %v2366
  %2382 = vmatpush.msra.mxu0 %v2365
  %2383 = vmatpush.msra.mxu0 %v2364
  %2384 = vmatpush.msra.mxu0 %v2363
  %2385 = vmatpush.msra.mxu0 %v2362
  %2386 = vmatpush.msra.mxu0 %v2361
  %2387 = vmatpush.msra.mxu0 %v2360
  %2388 = vmatpush.msra.mxu0 %v2359
  %2389 = vmatpush.msra.mxu0 %v2358
  %2390 = vmatpush.msra.mxu0 %v2357
  %2391 = vmatpush.msra.mxu0 %v2356
  %2392 = vmatmul.f32.gmra.mxu0 %v2355
  %v2393 = vpop.f32.mrf.mxu0
  %v2394 = vadd.f32 %v2374, %v2393
  %2395 = vdwg.mxu0
  %v2396 = vmul.f32 %v2394, %v2394
  %2397 = vadd.xlane.f32.xlu0 %v2396
  %v2398 = vpop.xlane.xlu0 %2397
  %v2399 = vmax.f32 %v2398, 1e-24
  %v2400 = vrsqrt.pop %v2399
  %v2401 = vmul.f32 %v2400, %v2399
  %v2402 = vmul.f32 %v2401, %v2400
  %v2403 = vmul.f32 0.5, %v2402
  %v2404 = vsub.f32 1.5, %v2403
  %v2405 = vmul.f32 %v2400, %v2404
  %vm2406 = vweird.f32 %v2399
  %vm2407 = vweird.f32 %v2400
  %vm2408 = vmor %vm2406, %vm2407
  %v2409 = vsel %vm2408, %v2400, %v2405
  %v2410 = vmul.f32 %v2394, %v2409
  %2411 = vst [vmem:[%s15] sm:$0xff] %v2410
  %v2412 = vmax.f32 %v2410, 0.0
  %v2413 = vld [vmem:[%s11] sm:$0x1]
  %v2415 = vperm.slane %v2413, 0
  %v2417 = vmul.f32 %v2412, %v2415
  %v2418 = vld [vmem:[%s12] sm:$0x1]
  %v2420 = vperm.slane %v2418, 0
  %v2422 = vadd.f32 %v2417, %v2420
  %v2423 = vld [vmem:[%s13] sm:$0xff]
  %v2424 = vld [vmem:[%s13 + $0x8] sm:$0xff]
  %v2425 = vld [vmem:[%s13 + $0x10] sm:$0xff]
  %v2426 = vld [vmem:[%s13 + $0x18] sm:$0xff]
  %v2427 = vld [vmem:[%s13 + $0x20] sm:$0xff]
  %v2428 = vld [vmem:[%s13 + $0x28] sm:$0xff]
  %v2429 = vld [vmem:[%s13 + $0x30] sm:$0xff]
  %v2430 = vld [vmem:[%s13 + $0x38] sm:$0xff]
  %v2431 = vld [vmem:[%s13 + $0x40] sm:$0xff]
  %v2432 = vld [vmem:[%s13 + $0x48] sm:$0xff]
  %v2433 = vld [vmem:[%s13 + $0x50] sm:$0xff]
  %v2434 = vld [vmem:[%s13 + $0x58] sm:$0xff]
  %v2435 = vld [vmem:[%s13 + $0x60] sm:$0xff]
  %v2436 = vld [vmem:[%s13 + $0x68] sm:$0xff]
  %v2437 = vld [vmem:[%s13 + $0x70] sm:$0xff]
  %v2438 = vld [vmem:[%s13 + $0x78] sm:$0xff]
  %v2439 = vld [vmem:[%s14] sm:$0x1]
  %v2441 = vperm.slane %v2439, 0
  %2443 = vmatpush.msra.mxu0 %v2438
  %2444 = vmatpush.msra.mxu0 %v2437
  %2445 = vmatpush.msra.mxu0 %v2436
  %2446 = vmatpush.msra.mxu0 %v2435
  %2447 = vmatpush.msra.mxu0 %v2434
  %2448 = vmatpush.msra.mxu0 %v2433
  %2449 = vmatpush.msra.mxu0 %v2432
  %2450 = vmatpush.msra.mxu0 %v2431
  %2451 = vmatpush.msra.mxu0 %v2430
  %2452 = vmatpush.msra.mxu0 %v2429
  %2453 = vmatpush.msra.mxu0 %v2428
  %2454 = vmatpush.msra.mxu0 %v2427
  %2455 = vmatpush.msra.mxu0 %v2426
  %2456 = vmatpush.msra.mxu0 %v2425
  %2457 = vmatpush.msra.mxu0 %v2424
  %2458 = vmatpush.msra.mxu0 %v2423
  %2459 = vmatmul.f32.gmra.mxu0 %v2422
  %v2460 = vpop.f32.mrf.mxu0
  %v2461 = vadd.f32 %v2441, %v2460
  %2462 = vdwg.mxu0
  %2463 = vst [vmem:[%s16] sm:$0xff] %v2461
  // Predicated region
  $region62: #{classifier_forward.1} parent=0 // pred_check
    _
  $region63: #{classifier_forward.1} parent=0 // pred_check_branch
    %2465 = sbr.rel (0) target = $region65
  $region64: #{classifier_forward.1} parent=0 // pred_region
    _
  $region65: #{classifier_forward.1} parent=0 // pred_fallthru
    _
  // Predicated region
  $region66: #{classifier_forward.1} parent=0 // pred_check
    _
  $region67: #{classifier_forward.1} parent=0 // pred_check_branch
    %2467 = sbr.rel (0) target = $region69
  $region68: #{classifier_forward.1} parent=0 // pred_region
    _
  $region69: #{classifier_forward.1} parent=0 // pred_fallthru
    _
  // Predicated region
  $region70: #{classifier_forward.1} parent=0 // pred_check
    _
  $region71: #{classifier_forward.1} parent=0 // pred_check_branch
    %2469 = sbr.rel (0) target = $region73
  $region72: #{classifier_forward.1} parent=0 // pred_region
    _
  $region73: #{classifier_forward.1} parent=0 // pred_fallthru
    _
  // Predicated region
  $region74: #{classifier_forward.1} parent=0 // pred_check
    _
  $region75: #{classifier_forward.1} parent=0 // pred_check_branch
    %2471 = sbr.rel (0) target = $region77
  $region76: #{classifier_forward.1} parent=0 // pred_region
    _
  $region77: #{classifier_forward.1} parent=0 // pred_fallthru
    _

</llo_original>
